<compile_context>
chip_gen: v6e
topology: v6e:2x2x1
jax: 0.10.0
libtpu: 0.0.40
codegen_flags: <defaults>
</compile_context>

<pallas_src>
import jax
import jax.numpy as jnp
from jax.experimental import pallas as pl
from jax.experimental.pallas import tpu as pltpu

K = 5           # conv kernel size
C1_OUT = 6      # conv1 output channels
C2_OUT = 16     # conv2 output channels
NUM_CLASSES = 10
VMEM_LIMIT = 32 * 1024 * 1024


def _round_up(n, m):
    return (n + m - 1) // m * m


# ---------------- Pallas kernels ----------------

def conv_relu_pool_kernel(p_ref, w_ref, b_ref, o_ref):
    """Fused conv (im2col matmul) + bias + ReLU + 2x2 max-pool epilogue.

    p_ref: (4, TR, KKCp) bf16 patches; leading axis = the 4 pixels of each pool window.
    w_ref: (KKCp, Opad) bf16   b_ref: (1, Opad) f32   o_ref: (TR, Opad) f32.
    One long matmul over all 4 quadrants (better MXU cadence than 4 short ones),
    then a 4-way elementwise max over row slabs implements the 2x2 max-pool.
    """
    q, tr, kk = p_ref.shape
    p = p_ref[...].reshape(q * tr, kk)                      # tile-aligned, free reshape
    y = jnp.dot(p, w_ref[...], preferred_element_type=jnp.float32)   # (4*tr, Opad) f32
    m = jnp.maximum(jnp.maximum(y[0 * tr:1 * tr], y[1 * tr:2 * tr]),
                    jnp.maximum(y[2 * tr:3 * tr], y[3 * tr:4 * tr]))
    # bias is quadrant-independent and ReLU is monotonic => add bias after the max.
    o_ref[...] = jnp.maximum(m + b_ref[...], 0.0)


def fc_kernel(h_ref, w1_ref, b1_ref, w2_ref, b2_ref, w3_ref, b3_ref, ch_ref, x_ref):
    """Fused FC head on a batch-row tile: ch = relu(h@W1+b1)@W2+b2 ; x = ch@W3+b3."""
    a1 = jnp.dot(h_ref[...], w1_ref[...], preferred_element_type=jnp.float32) + b1_ref[...]
    a1 = jnp.maximum(a1, 0.0)
    ch = jnp.dot(a1, w2_ref[...], preferred_element_type=jnp.float32) + b2_ref[...]
    ch_ref[...] = ch
    x_ref[...] = jnp.dot(ch, w3_ref[...], preferred_element_type=jnp.float32) + b3_ref[...]


# ---------------- Wrappers ----------------

def conv_relu_pool(x_nhwc, w_mat, b_row, out_channels, max_tile_rows=1024):
    """Valid 5x5 conv + bias + ReLU + 2x2/2 max-pool, returned as NHWC (f32)."""
    B, H, W, C = x_nhwc.shape
    Ho, Wo = H - K + 1, W - K + 1
    # Fused pool epilogue assumes even conv output dims (true for 28x28 and 10x10 here).
    assert Ho % 2 == 0 and Wo % 2 == 0
    Hp, Wp = Ho // 2, Wo // 2
    KKC = K * K * C
    KKCp, Opad = w_mat.shape

    # im2col (wrapper-side XLA glue), column order (kh, kw, c) matching the weight prep.
    # bf16 patches: halves HBM traffic of the dominant stream; accumulation stays f32.
    xb = x_nhwc.astype(jnp.bfloat16)
    cols = [xb[:, kh:kh + Ho, kw:kw + Wo, :] for kh in range(K) for kw in range(K)]
    patches = jnp.concatenate(cols, axis=-1)                      # (B, Ho, Wo, KKC)
    if KKCp != KKC:
        patches = jnp.pad(patches, ((0, 0), (0, 0), (0, 0), (0, KKCp - KKC)))

    # Group the 4 pixels of each 2x2 pool window on a leading "quadrant" axis so the
    # pool becomes an elementwise max inside the kernel epilogue.
    quads = [patches[:, dh::2, dw::2, :].reshape(B * Hp * Wp, KKCp)
             for dh in range(2) for dw in range(2)]
    patches_q = jnp.stack(quads, axis=0)                          # (4, N4, KKCp) bf16

    N4 = B * Hp * Wp
    # Row tile: multiple of 16 sublanes (bf16), capped so the grid has >=2 steps
    # whenever possible (v7x megacore needs multiple steps to use both TensorCores).
    tr = min(max_tile_rows, max(16, _round_up((N4 + 1) // 2, 16)))
    N4p = _round_up(N4, tr)
    if N4p != N4:
        patches_q = jnp.pad(patches_q, ((0, 0), (0, N4p - N4), (0, 0)))

    out = pl.pallas_call(
        conv_relu_pool_kernel,
        out_shape=jax.ShapeDtypeStruct((N4p, Opad), jnp.float32),
        grid=(N4p // tr,),
        in_specs=[
            pl.BlockSpec((4, tr, KKCp), lambda i: (0, i, 0)),
            pl.BlockSpec((KKCp, Opad), lambda i: (0, 0)),   # resident weights
            pl.BlockSpec((1, Opad), lambda i: (0, 0)),      # resident bias
        ],
        out_specs=pl.BlockSpec((tr, Opad), lambda i: (i, 0)),
        compiler_params=pltpu.CompilerParams(
            dimension_semantics=("parallel",),
            vmem_limit_bytes=VMEM_LIMIT,
        ),
    )(patches_q, w_mat, b_row)

    return out[:N4, :out_channels].reshape(B, Hp, Wp, out_channels)


def fc_head(h, w1, b1, w2, b2, w3, b3, n_classes, max_tile_rows=512):
    """Fused 3-layer FC head, gridded over batch-row tiles (weights stay resident)."""
    B, D = h.shape
    H1 = w1.shape[1]
    H2 = w2.shape[1]
    O3p = w3.shape[1]

    tb = min(max_tile_rows, max(8, _round_up((B + 1) // 2, 8)))   # >=2 steps when B>=16
    Bp = _round_up(B, tb)
    hp = jnp.pad(h, ((0, Bp - B), (0, 0))) if Bp != B else h

    ch, x_pad = pl.pallas_call(
        fc_kernel,
        out_shape=(jax.ShapeDtypeStruct((Bp, H2), jnp.float32),
                   jax.ShapeDtypeStruct((Bp, O3p), jnp.float32)),
        grid=(Bp // tb,),
        in_specs=[
            pl.BlockSpec((tb, D), lambda i: (i, 0)),
            pl.BlockSpec((D, H1), lambda i: (0, 0)),
            pl.BlockSpec((1, H1), lambda i: (0, 0)),
            pl.BlockSpec((H1, H2), lambda i: (0, 0)),
            pl.BlockSpec((1, H2), lambda i: (0, 0)),
            pl.BlockSpec((H2, O3p), lambda i: (0, 0)),
            pl.BlockSpec((1, O3p), lambda i: (0, 0)),
        ],
        out_specs=(pl.BlockSpec((tb, H2), lambda i: (i, 0)),
                   pl.BlockSpec((tb, O3p), lambda i: (i, 0))),
        compiler_params=pltpu.CompilerParams(
            dimension_semantics=("parallel",),
            vmem_limit_bytes=VMEM_LIMIT,
        ),
    )(hp, w1, b1, w2, b2, w3, b3)
    return ch[:B], x_pad[:B, :n_classes]


# ---------------- Parameter prep (one-time, host side) ----------------

def prepare_params(p):
    """Transpose / zero-pad torch-shaped params into kernel-friendly layouts."""
    def conv_prep(w, b):
        O, C, kh, kw = w.shape
        KKC = kh * kw * C
        KKCp = _round_up(KKC, 16)         # bf16 sublane-aligned contraction dim
        Op = _round_up(O, 128)            # lane-dense output channels
        w_mat = jnp.transpose(w, (2, 3, 1, 0)).reshape(KKC, O)   # rows in (kh, kw, c)
        w_mat = jnp.pad(w_mat, ((0, KKCp - KKC), (0, Op - O))).astype(jnp.bfloat16)
        b_row = jnp.pad(b, (0, Op - O)).reshape(1, Op).astype(jnp.float32)
        return w_mat, b_row

    c1_w, c1_b = conv_prep(p["conv1_w"], p["conv1_b"])
    c2_w, c2_b = conv_prep(p["conv2_w"], p["conv2_b"])

    O3 = p["fc3_w"].shape[0]
    O3p = _round_up(O3, 128)
    return {
        "c1_w": c1_w, "c1_b": c1_b,
        "c2_w": c2_w, "c2_b": c2_b,
        "f1_w": p["fc1_w"].T, "f1_b": p["fc1_b"].reshape(1, -1),
        "f2_w": p["fc2_w"].T, "f2_b": p["fc2_b"].reshape(1, -1),
        "f3_w": jnp.pad(p["fc3_w"].T, ((0, 0), (0, O3p - O3))),
        "f3_b": jnp.pad(p["fc3_b"], (0, O3p - O3)).reshape(1, O3p),
    }


# ---------------- Forward pass ----------------

def cnn_cifar10_forward(x_nchw, pp):
    B = x_nchw.shape[0]
    x = jnp.transpose(x_nchw, (0, 2, 3, 1))                              # NCHW -> NHWC

    h1 = conv_relu_pool(x, pp["c1_w"], pp["c1_b"], C1_OUT)               # (B,14,14,6)
    h2 = conv_relu_pool(h1, pp["c2_w"], pp["c2_b"], C2_OUT)              # (B,5,5,16)

    # PyTorch flatten order (C, H, W); h is itself a returned tensor of the module.
    h = jnp.transpose(h2, (0, 3, 1, 2)).reshape(B, C2_OUT * 5 * 5)       # (B, 400)

    ch, logits = fc_head(h, pp["f1_w"], pp["f1_b"], pp["f2_w"], pp["f2_b"],
                         pp["f3_w"], pp["f3_b"], NUM_CLASSES)
    return ch, h, logits


# ---------------- Params + pure-JAX reference (sanity check) ----------------

def init_params(key):
    ks = jax.random.split(key, 10)
    s = 0.05
    n = jax.random.normal
    return {
        "conv1_w": s * n(ks[0], (6, 3, 5, 5), jnp.float32),
        "conv1_b": s * n(ks[1], (6,), jnp.float32),
        "conv2_w": s * n(ks[2], (16, 6, 5, 5), jnp.float32),
        "conv2_b": s * n(ks[3], (16,), jnp.float32),
        "fc1_w": s * n(ks[4], (256, 400), jnp.float32),
        "fc1_b": s * n(ks[5], (256,), jnp.float32),
        "fc2_w": s * n(ks[6], (128, 256), jnp.float32),
        "fc2_b": s * n(ks[7], (128,), jnp.float32),
        "fc3_w": s * n(ks[8], (10, 128), jnp.float32),
        "fc3_b": s * n(ks[9], (10,), jnp.float32),
    }


def _reference_forward(x_nchw, p):
    hi = jax.lax.Precision.HIGHEST

    def conv(x, w, b):
        y = jax.lax.conv_general_dilated(
            x, w, window_strides=(1, 1), padding="VALID",
            dimension_numbers=("NCHW", "OIHW", "NCHW"), precision=hi)
        return y + b[None, :, None, None]

    def pool(x):
        return jax.lax.reduce_window(x, -jnp.inf, jax.lax.max,
                                     (1, 1, 2, 2), (1, 1, 2, 2), "VALID")

    h = pool(jnp.maximum(conv(x_nchw, p["conv1_w"], p["conv1_b"]), 0.0))
    h = pool(jnp.maximum(conv(h, p["conv2_w"], p["conv2_b"]), 0.0))
    hf = h.reshape(x_nchw.shape[0], -1)
    ch = jnp.maximum(jnp.dot(hf, p["fc1_w"].T, precision=hi) + p["fc1_b"], 0.0)
    ch = jnp.dot(ch, p["fc2_w"].T, precision=hi) + p["fc2_b"]
    out = jnp.dot(ch, p["fc3_w"].T, precision=hi) + p["fc3_b"]
    return ch, hf, out


if __name__ == "__main__":
    key = jax.random.PRNGKey(0)
    k_x, k_p = jax.random.split(key)
    x = jax.random.normal(k_x, (2, 3, 32, 32), jnp.float32)   # CIFAR-10 sized input
    params = init_params(k_p)
    prepped = prepare_params(params)                          # one-time weight prep

    fwd = jax.jit(cnn_cifar10_forward)
    ch, h, logits = fwd(x, prepped)
    jax.block_until_ready((ch, h, logits))

    assert ch.shape == (2, 128) and h.shape == (2, 400) and logits.shape == (2, 10)
    assert jnp.all(jnp.isfinite(ch)) and jnp.all(jnp.isfinite(h)) and jnp.all(jnp.isfinite(logits))

    ch_ref, h_ref, logits_ref = _reference_forward(x, params)
    # Tolerances account for the bf16 conv-patch/weight path (f32 MXU accumulation).
    assert jnp.allclose(h, h_ref, rtol=5e-2, atol=2e-2)
    assert jnp.allclose(ch, ch_ref, rtol=5e-2, atol=2e-2)
    assert jnp.allclose(logits, logits_ref, rtol=5e-2, atol=2e-2)

    print("KERNEL_OK")
</pallas_src>

<mosaic_0001>
module attributes {stable_mosaic.version = 11 : i64} {
  func.func @conv_relu_pool_kernel(%arg0: i32, %arg1: memref<4x208x80xbf16, #tpu.memory_space<vmem>>, %arg2: memref<80x128xbf16, #tpu.memory_space<vmem>>, %arg3: memref<1x128xf32, #tpu.memory_space<vmem>>, %arg4: memref<208x128xf32, #tpu.memory_space<vmem>>) attributes {dimension_semantics = [#tpu.dimension_semantics<parallel>], iteration_bounds = array<i64: 2>, scalar_prefetch = 0 : i64, scratch_operands = 0 : i64, tpu.core_type = #tpu.core_type<tc>, window_params = [{transform_indices = @transform_0, window_bounds = array<i64: 4, 208, 80>}, {pipeline_mode = #tpu.pipeline_mode<synchronous>, transform_indices = @transform_1, window_bounds = array<i64: 80, 128>}, {pipeline_mode = #tpu.pipeline_mode<synchronous>, transform_indices = @transform_2, window_bounds = array<i64: 1, 128>}, {transform_indices = @transform_3, window_bounds = array<i64: 208, 128>}]} {
    %c0 = arith.constant 0 : index
    %c0_0 = arith.constant 0 : index
    %c0_1 = arith.constant 0 : index
    %0 = vector.load %arg1[%c0, %c0_0, %c0_1] : memref<4x208x80xbf16, #tpu.memory_space<vmem>>, vector<4x208x80xbf16>
    %1 = vector.shape_cast %0 : vector<4x208x80xbf16> to vector<832x80xbf16>
    %c0_2 = arith.constant 0 : index
    %c0_3 = arith.constant 0 : index
    %2 = vector.load %arg2[%c0_2, %c0_3] : memref<80x128xbf16, #tpu.memory_space<vmem>>, vector<80x128xbf16>
    %cst = arith.constant dense<0.000000e+00> : vector<832x128xf32>
    %3 = tpu.matmul %1, %2, %cst {dimension_numbers = #tpu.dot_dimension_numbers<[1], [0], [0], [1], [0, 0, 1, 1], [], []>} : vector<832x80xbf16>, vector<80x128xbf16>, vector<832x128xf32> -> vector<832x128xf32>
    %4 = vector.extract_strided_slice %3 {offsets = [0, 0], sizes = [208, 128], strides = [1, 1]} : vector<832x128xf32> to vector<208x128xf32>
    %5 = vector.extract_strided_slice %3 {offsets = [208, 0], sizes = [208, 128], strides = [1, 1]} : vector<832x128xf32> to vector<208x128xf32>
    %6 = arith.maximumf %4, %5 : vector<208x128xf32>
    %7 = vector.extract_strided_slice %3 {offsets = [416, 0], sizes = [208, 128], strides = [1, 1]} : vector<832x128xf32> to vector<208x128xf32>
    %8 = vector.extract_strided_slice %3 {offsets = [624, 0], sizes = [208, 128], strides = [1, 1]} : vector<832x128xf32> to vector<208x128xf32>
    %9 = arith.maximumf %7, %8 : vector<208x128xf32>
    %10 = arith.maximumf %6, %9 : vector<208x128xf32>
    %c0_4 = arith.constant 0 : index
    %c0_5 = arith.constant 0 : index
    %11 = vector.load %arg3[%c0_4, %c0_5] : memref<1x128xf32, #tpu.memory_space<vmem>>, vector<1x128xf32>
    %12 = vector.broadcast %11 : vector<1x128xf32> to vector<208x128xf32>
    %13 = arith.addf %10, %12 : vector<208x128xf32>
    %cst_6 = arith.constant 0.000000e+00 : f32
    %14 = vector.broadcast %cst_6 : f32 to vector<208x128xf32>
    %15 = arith.maximumf %13, %14 : vector<208x128xf32>
    %c0_7 = arith.constant 0 : index
    %c0_8 = arith.constant 0 : index
    %16 = vector.load %arg4[%c0_7, %c0_8] : memref<208x128xf32, #tpu.memory_space<vmem>>, vector<208x128xf32>
    tpu.vector_store %arg4[%c0_7, %c0_8], %15 {strides = array<i32>} : memref<208x128xf32, #tpu.memory_space<vmem>>, vector<208x128xf32>,
    return
  }
  func.func @transform_0(%arg0: i32) -> (i32, i32, i32) {
    %c0_i32 = arith.constant 0 : i32
    %c0_i32_0 = arith.constant 0 : i32
    %c0_i32_1 = arith.constant 0 : i32
    return %c0_i32, %arg0, %c0_i32_0 : i32, i32, i32
  }
  func.func @transform_1(%arg0: i32) -> (i32, i32) {
    %c0_i32 = arith.constant 0 : i32
    %c0_i32_0 = arith.constant 0 : i32
    %c0_i32_1 = arith.constant 0 : i32
    return %c0_i32, %c0_i32_0 : i32, i32
  }
  func.func @transform_2(%arg0: i32) -> (i32, i32) {
    %c0_i32 = arith.constant 0 : i32
    %c0_i32_0 = arith.constant 0 : i32
    %c0_i32_1 = arith.constant 0 : i32
    return %c0_i32, %c0_i32_0 : i32, i32
  }
  func.func @transform_3(%arg0: i32) -> (i32, i32) {
    %c0_i32 = arith.constant 0 : i32
    %c0_i32_0 = arith.constant 0 : i32
    return %arg0, %c0_i32 : i32, i32
  }
}

module attributes {stable_mosaic.version = 11 : i64} {
  func.func @conv_relu_pool_kernel(%arg0: i32, %arg1: memref<4x32x160xbf16, #tpu.memory_space<vmem>>, %arg2: memref<160x128xbf16, #tpu.memory_space<vmem>>, %arg3: memref<1x128xf32, #tpu.memory_space<vmem>>, %arg4: memref<32x128xf32, #tpu.memory_space<vmem>>) attributes {dimension_semantics = [#tpu.dimension_semantics<parallel>], iteration_bounds = array<i64: 2>, scalar_prefetch = 0 : i64, scratch_operands = 0 : i64, tpu.core_type = #tpu.core_type<tc>, window_params = [{transform_indices = @transform_0, window_bounds = array<i64: 4, 32, 160>}, {pipeline_mode = #tpu.pipeline_mode<synchronous>, transform_indices = @transform_1, window_bounds = array<i64: 160, 128>}, {pipeline_mode = #tpu.pipeline_mode<synchronous>, transform_indices = @transform_2, window_bounds = array<i64: 1, 128>}, {transform_indices = @transform_3, window_bounds = array<i64: 32, 128>}]} {
    %c0 = arith.constant 0 : index
    %c0_0 = arith.constant 0 : index
    %c0_1 = arith.constant 0 : index
    %0 = vector.load %arg1[%c0, %c0_0, %c0_1] : memref<4x32x160xbf16, #tpu.memory_space<vmem>>, vector<4x32x160xbf16>
    %1 = vector.shape_cast %0 : vector<4x32x160xbf16> to vector<128x160xbf16>
    %c0_2 = arith.constant 0 : index
    %c0_3 = arith.constant 0 : index
    %2 = vector.load %arg2[%c0_2, %c0_3] : memref<160x128xbf16, #tpu.memory_space<vmem>>, vector<160x128xbf16>
    %cst = arith.constant dense<0.000000e+00> : vector<128x128xf32>
    %3 = tpu.matmul %1, %2, %cst {dimension_numbers = #tpu.dot_dimension_numbers<[1], [0], [0], [1], [0, 0, 1, 1], [], []>} : vector<128x160xbf16>, vector<160x128xbf16>, vector<128x128xf32> -> vector<128x128xf32>
    %4 = vector.extract_strided_slice %3 {offsets = [0, 0], sizes = [32, 128], strides = [1, 1]} : vector<128x128xf32> to vector<32x128xf32>
    %5 = vector.extract_strided_slice %3 {offsets = [32, 0], sizes = [32, 128], strides = [1, 1]} : vector<128x128xf32> to vector<32x128xf32>
    %6 = arith.maximumf %4, %5 : vector<32x128xf32>
    %7 = vector.extract_strided_slice %3 {offsets = [64, 0], sizes = [32, 128], strides = [1, 1]} : vector<128x128xf32> to vector<32x128xf32>
    %8 = vector.extract_strided_slice %3 {offsets = [96, 0], sizes = [32, 128], strides = [1, 1]} : vector<128x128xf32> to vector<32x128xf32>
    %9 = arith.maximumf %7, %8 : vector<32x128xf32>
    %10 = arith.maximumf %6, %9 : vector<32x128xf32>
    %c0_4 = arith.constant 0 : index
    %c0_5 = arith.constant 0 : index
    %11 = vector.load %arg3[%c0_4, %c0_5] : memref<1x128xf32, #tpu.memory_space<vmem>>, vector<1x128xf32>
    %12 = vector.broadcast %11 : vector<1x128xf32> to vector<32x128xf32>
    %13 = arith.addf %10, %12 : vector<32x128xf32>
    %cst_6 = arith.constant 0.000000e+00 : f32
    %14 = vector.broadcast %cst_6 : f32 to vector<32x128xf32>
    %15 = arith.maximumf %13, %14 : vector<32x128xf32>
    %c0_7 = arith.constant 0 : index
    %c0_8 = arith.constant 0 : index
    %16 = vector.load %arg4[%c0_7, %c0_8] : memref<32x128xf32, #tpu.memory_space<vmem>>, vector<32x128xf32>
    tpu.vector_store %arg4[%c0_7, %c0_8], %15 {strides = array<i32>} : memref<32x128xf32, #tpu.memory_space<vmem>>, vector<32x128xf32>,
    return
  }
  func.func @transform_0(%arg0: i32) -> (i32, i32, i32) {
    %c0_i32 = arith.constant 0 : i32
    %c0_i32_0 = arith.constant 0 : i32
    %c0_i32_1 = arith.constant 0 : i32
    return %c0_i32, %arg0, %c0_i32_0 : i32, i32, i32
  }
  func.func @transform_1(%arg0: i32) -> (i32, i32) {
    %c0_i32 = arith.constant 0 : i32
    %c0_i32_0 = arith.constant 0 : i32
    %c0_i32_1 = arith.constant 0 : i32
    return %c0_i32, %c0_i32_0 : i32, i32
  }
  func.func @transform_2(%arg0: i32) -> (i32, i32) {
    %c0_i32 = arith.constant 0 : i32
    %c0_i32_0 = arith.constant 0 : i32
    %c0_i32_1 = arith.constant 0 : i32
    return %c0_i32, %c0_i32_0 : i32, i32
  }
  func.func @transform_3(%arg0: i32) -> (i32, i32) {
    %c0_i32 = arith.constant 0 : i32
    %c0_i32_0 = arith.constant 0 : i32
    return %arg0, %c0_i32 : i32, i32
  }
}

module attributes {stable_mosaic.version = 11 : i64} {
  func.func @fc_kernel(%arg0: i32, %arg1: memref<8x400xf32, #tpu.memory_space<vmem>>, %arg2: memref<400x256xf32, #tpu.memory_space<vmem>>, %arg3: memref<1x256xf32, #tpu.memory_space<vmem>>, %arg4: memref<256x128xf32, #tpu.memory_space<vmem>>, %arg5: memref<1x128xf32, #tpu.memory_space<vmem>>, %arg6: memref<128x128xf32, #tpu.memory_space<vmem>>, %arg7: memref<1x128xf32, #tpu.memory_space<vmem>>, %arg8: memref<8x128xf32, #tpu.memory_space<vmem>>, %arg9: memref<8x128xf32, #tpu.memory_space<vmem>>) attributes {dimension_semantics = [#tpu.dimension_semantics<parallel>], iteration_bounds = array<i64: 1>, scalar_prefetch = 0 : i64, scratch_operands = 0 : i64, tpu.core_type = #tpu.core_type<tc>, window_params = [{transform_indices = @transform_0, window_bounds = array<i64: 8, 400>}, {pipeline_mode = #tpu.pipeline_mode<synchronous>, transform_indices = @transform_1, window_bounds = array<i64: 400, 256>}, {pipeline_mode = #tpu.pipeline_mode<synchronous>, transform_indices = @transform_2, window_bounds = array<i64: 1, 256>}, {pipeline_mode = #tpu.pipeline_mode<synchronous>, transform_indices = @transform_3, window_bounds = array<i64: 256, 128>}, {pipeline_mode = #tpu.pipeline_mode<synchronous>, transform_indices = @transform_4, window_bounds = array<i64: 1, 128>}, {pipeline_mode = #tpu.pipeline_mode<synchronous>, transform_indices = @transform_5, window_bounds = array<i64: 128, 128>}, {pipeline_mode = #tpu.pipeline_mode<synchronous>, transform_indices = @transform_6, window_bounds = array<i64: 1, 128>}, {transform_indices = @transform_7, window_bounds = array<i64: 8, 128>}, {transform_indices = @transform_8, window_bounds = array<i64: 8, 128>}]} {
    %c0 = arith.constant 0 : index
    %c0_0 = arith.constant 0 : index
    %0 = vector.load %arg1[%c0, %c0_0] : memref<8x400xf32, #tpu.memory_space<vmem>>, vector<8x400xf32>
    %c0_1 = arith.constant 0 : index
    %c0_2 = arith.constant 0 : index
    %1 = vector.load %arg2[%c0_1, %c0_2] : memref<400x256xf32, #tpu.memory_space<vmem>>, vector<400x256xf32>
    %cst = arith.constant dense<0.000000e+00> : vector<8x256xf32>
    %2 = tpu.matmul %0, %1, %cst {dimension_numbers = #tpu.dot_dimension_numbers<[1], [0], [0], [1], [0, 0, 1, 1], [], []>} : vector<8x400xf32>, vector<400x256xf32>, vector<8x256xf32> -> vector<8x256xf32>
    %c0_3 = arith.constant 0 : index
    %c0_4 = arith.constant 0 : index
    %3 = vector.load %arg3[%c0_3, %c0_4] : memref<1x256xf32, #tpu.memory_space<vmem>>, vector<1x256xf32>
    %4 = vector.broadcast %3 : vector<1x256xf32> to vector<8x256xf32>
    %5 = arith.addf %2, %4 : vector<8x256xf32>
    %cst_5 = arith.constant 0.000000e+00 : f32
    %6 = vector.broadcast %cst_5 : f32 to vector<8x256xf32>
    %7 = arith.maximumf %5, %6 : vector<8x256xf32>
    %c0_6 = arith.constant 0 : index
    %c0_7 = arith.constant 0 : index
    %8 = vector.load %arg4[%c0_6, %c0_7] : memref<256x128xf32, #tpu.memory_space<vmem>>, vector<256x128xf32>
    %cst_8 = arith.constant dense<0.000000e+00> : vector<8x128xf32>
    %9 = tpu.matmul %7, %8, %cst_8 {dimension_numbers = #tpu.dot_dimension_numbers<[1], [0], [0], [1], [0, 0, 1, 1], [], []>} : vector<8x256xf32>, vector<256x128xf32>, vector<8x128xf32> -> vector<8x128xf32>
    %c0_9 = arith.constant 0 : index
    %c0_10 = arith.constant 0 : index
    %10 = vector.load %arg5[%c0_9, %c0_10] : memref<1x128xf32, #tpu.memory_space<vmem>>, vector<1x128xf32>
    %11 = vector.broadcast %10 : vector<1x128xf32> to vector<8x128xf32>
    %12 = arith.addf %9, %11 : vector<8x128xf32>
    %c0_11 = arith.constant 0 : index
    %c0_12 = arith.constant 0 : index
    %13 = vector.load %arg8[%c0_11, %c0_12] : memref<8x128xf32, #tpu.memory_space<vmem>>, vector<8x128xf32>
    tpu.vector_store %arg8[%c0_11, %c0_12], %12 {strides = array<i32>} : memref<8x128xf32, #tpu.memory_space<vmem>>, vector<8x128xf32>,
    %c0_13 = arith.constant 0 : index
    %c0_14 = arith.constant 0 : index
    %14 = vector.load %arg6[%c0_13, %c0_14] : memref<128x128xf32, #tpu.memory_space<vmem>>, vector<128x128xf32>
    %cst_15 = arith.constant dense<0.000000e+00> : vector<8x128xf32>
    %15 = tpu.matmul %12, %14, %cst_15 {dimension_numbers = #tpu.dot_dimension_numbers<[1], [0], [0], [1], [0, 0, 1, 1], [], []>} : vector<8x128xf32>, vector<128x128xf32>, vector<8x128xf32> -> vector<8x128xf32>
    %c0_16 = arith.constant 0 : index
    %c0_17 = arith.constant 0 : index
    %16 = vector.load %arg7[%c0_16, %c0_17] : memref<1x128xf32, #tpu.memory_space<vmem>>, vector<1x128xf32>
    %17 = vector.broadcast %16 : vector<1x128xf32> to vector<8x128xf32>
    %18 = arith.addf %15, %17 : vector<8x128xf32>
    %c0_18 = arith.constant 0 : index
    %c0_19 = arith.constant 0 : index
    %19 = vector.load %arg9[%c0_18, %c0_19] : memref<8x128xf32, #tpu.memory_space<vmem>>, vector<8x128xf32>
    tpu.vector_store %arg9[%c0_18, %c0_19], %18 {strides = array<i32>} : memref<8x128xf32, #tpu.memory_space<vmem>>, vector<8x128xf32>,
    return
  }
  func.func @transform_0(%arg0: i32) -> (i32, i32) {
    %c0_i32 = arith.constant 0 : i32
    %c0_i32_0 = arith.constant 0 : i32
    return %arg0, %c0_i32 : i32, i32
  }
  func.func @transform_1(%arg0: i32) -> (i32, i32) {
    %c0_i32 = arith.constant 0 : i32
    %c0_i32_0 = arith.constant 0 : i32
    %c0_i32_1 = arith.constant 0 : i32
    return %c0_i32, %c0_i32_0 : i32, i32
  }
  func.func @transform_2(%arg0: i32) -> (i32, i32) {
    %c0_i32 = arith.constant 0 : i32
    %c0_i32_0 = arith.constant 0 : i32
    %c0_i32_1 = arith.constant 0 : i32
    return %c0_i32, %c0_i32_0 : i32, i32
  }
  func.func @transform_3(%arg0: i32) -> (i32, i32) {
    %c0_i32 = arith.constant 0 : i32
    %c0_i32_0 = arith.constant 0 : i32
    %c0_i32_1 = arith.constant 0 : i32
    return %c0_i32, %c0_i32_0 : i32, i32
  }
  func.func @transform_4(%arg0: i32) -> (i32, i32) {
    %c0_i32 = arith.constant 0 : i32
    %c0_i32_0 = arith.constant 0 : i32
    %c0_i32_1 = arith.constant 0 : i32
    return %c0_i32, %c0_i32_0 : i32, i32
  }
  func.func @transform_5(%arg0: i32) -> (i32, i32) {
    %c0_i32 = arith.constant 0 : i32
    %c0_i32_0 = arith.constant 0 : i32
    %c0_i32_1 = arith.constant 0 : i32
    return %c0_i32, %c0_i32_0 : i32, i32
  }
  func.func @transform_6(%arg0: i32) -> (i32, i32) {
    %c0_i32 = arith.constant 0 : i32
    %c0_i32_0 = arith.constant 0 : i32
    %c0_i32_1 = arith.constant 0 : i32
    return %c0_i32, %c0_i32_0 : i32, i32
  }
  func.func @transform_7(%arg0: i32) -> (i32, i32) {
    %c0_i32 = arith.constant 0 : i32
    %c0_i32_0 = arith.constant 0 : i32
    return %arg0, %c0_i32 : i32, i32
  }
  func.func @transform_8(%arg0: i32) -> (i32, i32) {
    %c0_i32 = arith.constant 0 : i32
    %c0_i32_0 = arith.constant 0 : i32
    return %arg0, %c0_i32 : i32, i32
  }
}

</mosaic_0001>

<llo_original>
// kernel: cnn_cifar10_forward.3
$region0: #{cnn_cifar10_forward.3}
  #allocation0 [shape = 'u32[]', space=smem, size = 0x4, offset = 0x4, fixed_abs, tag = 'smem constant byte address 0x4 - core index']
  #allocation1 [shape = 'u32[144,128]{1,0:T(1,128)}', space=vmem, size = 0x12000, scoped, tag = 'internal scratch']
  %s0 = inlined_call_operand.vmem [shape: bf16[4,416,80], index: 0, kind: input, shape index: {}]
  %s1 = inlined_call_operand.vmem [shape: bf16[80,128], index: 1, kind: input, shape index: {}]
  %s2 = inlined_call_operand.vmem [shape: f32[1,128], index: 2, kind: input, shape index: {}]
  %s3 = inlined_call_operand.vmem [shape: f32[416,128], index: 3, kind: output, shape index: {}]
  %s4 = sld [smem:[#allocation0]]
  $region86: #{cnn_cifar10_forward.3} parent=0
    _
  %s6 = ssub.s32 1, %s4
  %s7 = scalar_select 0, %s6, %s4
  $region1: #{cnn_cifar10_forward.3} parent=0
    #allocation2 [shape = 'u8[425984]{0}', space=vmem, size = 0x68000, scoped, tag = 'input window, operand 0']
    loop: start=0, step=1, limit=4
    $region2: #{cnn_cifar10_forward.3} parent=1 // loop_pre_header
      _
    $region3: #{cnn_cifar10_forward.3} parent=1 // loop_header
      %s9 = sphi 0, %s13
      %p10 = scmp.ge.s32.totalorder %s9, 4
      %s19 = sphi 0, %s21
      %s22 = sphi 0, %s19
      %s23 = sphi 0, %s22
      %s39 = sphi 0, %s23
      %s43 = sphi 0, %s43
      %s45 = sphi 0, %s43
      %s46 = sphi 0, %s45
      %s60 = sphi 0, %s46
      %s64 = sphi 0, %s64
      %s66 = sphi 0, %s64
      %s67 = sphi 0, %s66
      %s81 = sphi 0, %s67
      %s87 = sphi 0, %s89
      %s90 = sphi 0, %s87
      %s91 = sphi 0, %s90
      %s107 = sphi 0, %s91
    $region4: #{cnn_cifar10_forward.3} parent=1 // loop_header_branch
      %12 = sbr.rel (%p10) target = $region8
    $region5: #{cnn_cifar10_forward.3} parent=1 // loop_body
      %s14 = ssub.s32 %s9, 1
      %s15 = ssub.s32 %s9, 2
      %s16 = sadd.s32 %s9, 1
      %s17 = ssub.s32 %s9, %s16
      %p18 = scmp.eq.s32.totalorder %s17, 0
      %s20 = sadd.s32 %s19, 1
      %s21 = scalar_select %p18, %s19, %s20
      %p24 = pneg %p18
      %p25 = scmp.eq.s32.totalorder %s9, 1
      %p26 = por %p24, %p25
      %p27 = scmp.ne.s32.totalorder %s19, %s22
      %p28 = scmp.eq.s32.totalorder %s9, 0
      %p29 = por %p27, %p28
      %p30 = scmp.ne.s32.totalorder %s19, %s22
      %p31 = scmp.eq.s32.totalorder %s14, 1
      %p32 = por %p30, %p31
      %p33 = scmp.ne.s32.totalorder %s22, %s23
      %p34 = scmp.eq.s32.totalorder %s14, 0
      %p35 = por %p33, %p34
      %p36 = scmp.ne.s32.totalorder %s22, %s23
      %p37 = scmp.eq.s32.totalorder %s15, 1
      %p38 = por %p36, %p37
      %p40 = scmp.ne.s32.totalorder %s23, %s39
      %p41 = scmp.eq.s32.totalorder %s15, 0
      %p42 = por %p40, %p41
      %s44 = sadd.s32 %s43, 1
      %p47 = scmp.eq.s32.totalorder %s9, 1
      %p48 = scmp.ne.s32.totalorder %s43, %s45
      %p49 = scmp.eq.s32.totalorder %s9, 0
      %p50 = por %p48, %p49
      %p51 = scmp.ne.s32.totalorder %s43, %s45
      %p52 = scmp.eq.s32.totalorder %s14, 1
      %p53 = por %p51, %p52
      %p54 = scmp.ne.s32.totalorder %s45, %s46
      %p55 = scmp.eq.s32.totalorder %s14, 0
      %p56 = por %p54, %p55
      %p57 = scmp.ne.s32.totalorder %s45, %s46
      %p58 = scmp.eq.s32.totalorder %s15, 1
      %p59 = por %p57, %p58
      %p61 = scmp.ne.s32.totalorder %s46, %s60
      %p62 = scmp.eq.s32.totalorder %s15, 0
      %p63 = por %p61, %p62
      %s65 = sadd.s32 %s64, 1
      %p68 = scmp.eq.s32.totalorder %s9, 1
      %p69 = scmp.ne.s32.totalorder %s64, %s66
      %p70 = scmp.eq.s32.totalorder %s9, 0
      %p71 = por %p69, %p70
      %p72 = scmp.ne.s32.totalorder %s64, %s66
      %p73 = scmp.eq.s32.totalorder %s14, 1
      %p74 = por %p72, %p73
      %p75 = scmp.ne.s32.totalorder %s66, %s67
      %p76 = scmp.eq.s32.totalorder %s14, 0
      %p77 = por %p75, %p76
      %p78 = scmp.ne.s32.totalorder %s66, %s67
      %p79 = scmp.eq.s32.totalorder %s15, 1
      %p80 = por %p78, %p79
      %p82 = scmp.ne.s32.totalorder %s67, %s81
      %p83 = scmp.eq.s32.totalorder %s15, 0
      %p84 = por %p82, %p83
      %s85 = ssub.s32 %s9, %s16
      %p86 = scmp.eq.s32.totalorder %s85, 0
      %s88 = sadd.s32 %s87, 1
      %s89 = scalar_select %p86, %s87, %s88
      %p92 = pneg %p86
      %p93 = scmp.eq.s32.totalorder %s9, 1
      %p94 = por %p92, %p93
      %p95 = scmp.ne.s32.totalorder %s87, %s90
      %p96 = scmp.eq.s32.totalorder %s9, 0
      %p97 = por %p95, %p96
      %p98 = scmp.ne.s32.totalorder %s87, %s90
      %p99 = scmp.eq.s32.totalorder %s14, 1
      %p100 = por %p98, %p99
      %p101 = scmp.ne.s32.totalorder %s90, %s91
      %p102 = scmp.eq.s32.totalorder %s14, 0
      %p103 = por %p101, %p102
      %p104 = scmp.ne.s32.totalorder %s90, %s91
      %p105 = scmp.eq.s32.totalorder %s15, 1
      %p106 = por %p104, %p105
      %p108 = scmp.ne.s32.totalorder %s91, %s107
      %p109 = scmp.eq.s32.totalorder %s15, 0
      %p110 = por %p108, %p109
      %p111 = scmp.le.s32.totalorder 1, %s9
      %p112 = scmp.lt.s32.totalorder %s9, 3
      %p113 = pnand %p111, %p112
      %p114 = pneg %p113
      // Predicated region
      $region9: #{cnn_cifar10_forward.3} parent=5 // pred_check
        _
      $region10: #{cnn_cifar10_forward.3} parent=5 // pred_check_branch
        %116 = sbr.rel (%p113) target = $region12
      $region11: #{cnn_cifar10_forward.3} parent=5 // pred_region
        %s117 = ssub.s32 %s9, 1
        // Predicated region
        $region13: #{cnn_cifar10_forward.3} parent=11 // pred_check
          %p118 = pneg %p56
        $region14: #{cnn_cifar10_forward.3} parent=11 // pred_check_branch
          %120 = sbr.rel (%p118) target = $region16
        $region15: #{cnn_cifar10_forward.3} parent=11 // pred_region
          _
        $region16: #{cnn_cifar10_forward.3} parent=11 // pred_fallthru
          _
        // Predicated region
        $region17: #{cnn_cifar10_forward.3} parent=11 // pred_check
          %p121 = pneg %p77
        $region18: #{cnn_cifar10_forward.3} parent=11 // pred_check_branch
          %123 = sbr.rel (%p121) target = $region20
        $region19: #{cnn_cifar10_forward.3} parent=11 // pred_region
          _
        $region20: #{cnn_cifar10_forward.3} parent=11 // pred_fallthru
          _
      $region12: #{cnn_cifar10_forward.3} parent=5 // pred_fallthru
        _
      %p124 = scmp.lt.s32.totalorder %s9, 2
      // Predicated region
      $region21: #{cnn_cifar10_forward.3} parent=5 // pred_check
        %p125 = pneg %p124
      $region22: #{cnn_cifar10_forward.3} parent=5 // pred_check_branch
        %127 = sbr.rel (%p125) target = $region24
      $region23: #{cnn_cifar10_forward.3} parent=5 // pred_region
        // Predicated region
        $region25: #{cnn_cifar10_forward.3} parent=23 // pred_check
          %p128 = pneg %p29
        $region26: #{cnn_cifar10_forward.3} parent=23 // pred_check_branch
          %130 = sbr.rel (%p128) target = $region28
        $region27: #{cnn_cifar10_forward.3} parent=23 // pred_region
          %s131 = sand.u32 %s19, 1
          %s132 = sand.u32 %s19, 1
          %s133 = smul.addr %s132, 416
          %s134 = scalar_lea.vmem [#allocation2], %s133
          %s135 = smul.u32 26, %s9
          %s136 = smul.addr %s135, 4
          %s137 = scalar_lea.vmem %s0, %s136
          // Predicated region
          $region29: #{cnn_cifar10_forward.3} parent=27 // pred_check
            _
          $region30: #{cnn_cifar10_forward.3} parent=27 // pred_check_branch
            %139 = sbr.rel (0) target = $region32
          $region31: #{cnn_cifar10_forward.3} parent=27 // pred_region
            // Predicated region
            $region33: #{cnn_cifar10_forward.3} parent=31 // pred_check
              _
            $region34: #{cnn_cifar10_forward.3} parent=31 // pred_check_branch
              %141 = sbr.rel target = $region36
            $region35: #{cnn_cifar10_forward.3} parent=31 // pred_region
              // Predicated region
              $region48: #{cnn_cifar10_forward.3} parent=35 // pred_check
                _
              $region49: #{cnn_cifar10_forward.3} parent=35 // pred_check_branch
                %363 = sbr.rel (0) target = $region51
              $region50: #{cnn_cifar10_forward.3} parent=35 // pred_region
                loop: start=0, step=1, limit=1
                $region52: #{cnn_cifar10_forward.3} parent=50 // loop_pre_header
                  _
                $region53: #{cnn_cifar10_forward.3} parent=50 // loop_header
                  %s365 = sphi 0, %s369
                  %p366 = scmp.ge.s32.totalorder %s365, 1
                  %s370 = sphi %s137, %s137
                  %s371 = sphi %s134, %s134
                $region54: #{cnn_cifar10_forward.3} parent=50 // loop_header_branch
                  %368 = sbr.rel (%p366) target = $region58
                $region55: #{cnn_cifar10_forward.3} parent=50 // loop_body
                  _
                $region56: #{cnn_cifar10_forward.3} parent=50 // loop_footer
                  %s369 = sadd.s32 1, %s365
                $region57: #{cnn_cifar10_forward.3} parent=50 // loop_footer_branch
                  %364 = sbr.rel target = $region53
                $region58: #{cnn_cifar10_forward.3} parent=50 // loop_exit
                  _
                %s373 = ssub.s32 16, 1
                loop: start=0, step=1, limit=1
                $region59: #{cnn_cifar10_forward.3} parent=50 // loop_pre_header
                  _
                $region60: #{cnn_cifar10_forward.3} parent=50 // loop_header
                  %s375 = sphi 0, %s379
                  %p376 = scmp.ge.s32.totalorder %s375, 1
                  %s380 = sphi %s137, %s137
                  %s381 = sphi %s134, %s134
                $region61: #{cnn_cifar10_forward.3} parent=50 // loop_header_branch
                  %378 = sbr.rel (%p376) target = $region65
                $region62: #{cnn_cifar10_forward.3} parent=50 // loop_body
                  %v382 = vld [vmem:[%s380] sm:%s373]
                  %383 = vst [vmem:[%s381] sm:%s373] %v382
                  %v384 = vld [vmem:[%s380 + $0x4] sm:%s373]
                  %385 = vst [vmem:[%s381 + $0x4] sm:%s373] %v384
                  %v386 = vld [vmem:[%s380 + $0x8] sm:%s373]
                  %387 = vst [vmem:[%s381 + $0x8] sm:%s373] %v386
                  %v388 = vld [vmem:[%s380 + $0xc] sm:%s373]
                  %389 = vst [vmem:[%s381 + $0xc] sm:%s373] %v388
                  %v390 = vld [vmem:[%s380 + $0x10] sm:%s373]
                  %391 = vst [vmem:[%s381 + $0x10] sm:%s373] %v390
                  %v392 = vld [vmem:[%s380 + $0x14] sm:%s373]
                  %393 = vst [vmem:[%s381 + $0x14] sm:%s373] %v392
                  %v394 = vld [vmem:[%s380 + $0x18] sm:%s373]
                  %395 = vst [vmem:[%s381 + $0x18] sm:%s373] %v394
                  %v396 = vld [vmem:[%s380 + $0x1c] sm:%s373]
                  %397 = vst [vmem:[%s381 + $0x1c] sm:%s373] %v396
                  %v398 = vld [vmem:[%s380 + $0x20] sm:%s373]
                  %399 = vst [vmem:[%s381 + $0x20] sm:%s373] %v398
                  %v400 = vld [vmem:[%s380 + $0x24] sm:%s373]
                  %401 = vst [vmem:[%s381 + $0x24] sm:%s373] %v400
                  %v402 = vld [vmem:[%s380 + $0x28] sm:%s373]
                  %403 = vst [vmem:[%s381 + $0x28] sm:%s373] %v402
                  %v404 = vld [vmem:[%s380 + $0x2c] sm:%s373]
                  %405 = vst [vmem:[%s381 + $0x2c] sm:%s373] %v404
                  %v406 = vld [vmem:[%s380 + $0x30] sm:%s373]
                  %407 = vst [vmem:[%s381 + $0x30] sm:%s373] %v406
                  %v408 = vld [vmem:[%s380 + $0x34] sm:%s373]
                  %409 = vst [vmem:[%s381 + $0x34] sm:%s373] %v408
                  %v410 = vld [vmem:[%s380 + $0x38] sm:%s373]
                  %411 = vst [vmem:[%s381 + $0x38] sm:%s373] %v410
                  %v412 = vld [vmem:[%s380 + $0x3c] sm:%s373]
                  %413 = vst [vmem:[%s381 + $0x3c] sm:%s373] %v412
                  %v414 = vld [vmem:[%s380 + $0x40] sm:%s373]
                  %415 = vst [vmem:[%s381 + $0x40] sm:%s373] %v414
                  %v416 = vld [vmem:[%s380 + $0x44] sm:%s373]
                  %417 = vst [vmem:[%s381 + $0x44] sm:%s373] %v416
                  %v418 = vld [vmem:[%s380 + $0x48] sm:%s373]
                  %419 = vst [vmem:[%s381 + $0x48] sm:%s373] %v418
                  %v420 = vld [vmem:[%s380 + $0x4c] sm:%s373]
                  %421 = vst [vmem:[%s381 + $0x4c] sm:%s373] %v420
                  %v422 = vld [vmem:[%s380 + $0x50] sm:%s373]
                  %423 = vst [vmem:[%s381 + $0x50] sm:%s373] %v422
                  %v424 = vld [vmem:[%s380 + $0x54] sm:%s373]
                  %425 = vst [vmem:[%s381 + $0x54] sm:%s373] %v424
                  %v426 = vld [vmem:[%s380 + $0x58] sm:%s373]
                  %427 = vst [vmem:[%s381 + $0x58] sm:%s373] %v426
                  %v428 = vld [vmem:[%s380 + $0x5c] sm:%s373]
                  %429 = vst [vmem:[%s381 + $0x5c] sm:%s373] %v428
                  %v430 = vld [vmem:[%s380 + $0x60] sm:%s373]
                  %431 = vst [vmem:[%s381 + $0x60] sm:%s373] %v430
                  %v432 = vld [vmem:[%s380 + $0x64] sm:%s373]
                  %433 = vst [vmem:[%s381 + $0x64] sm:%s373] %v432
                  %v434 = vld [vmem:[%s380 + $0xd0] sm:%s373]
                  %435 = vst [vmem:[%s381 + $0x68] sm:%s373] %v434
                  %v436 = vld [vmem:[%s380 + $0xd4] sm:%s373]
                  %437 = vst [vmem:[%s381 + $0x6c] sm:%s373] %v436
                  %v438 = vld [vmem:[%s380 + $0xd8] sm:%s373]
                  %439 = vst [vmem:[%s381 + $0x70] sm:%s373] %v438
                  %v440 = vld [vmem:[%s380 + $0xdc] sm:%s373]
                  %441 = vst [vmem:[%s381 + $0x74] sm:%s373] %v440
                  %v442 = vld [vmem:[%s380 + $0xe0] sm:%s373]
                  %443 = vst [vmem:[%s381 + $0x78] sm:%s373] %v442
                  %v444 = vld [vmem:[%s380 + $0xe4] sm:%s373]
                  %445 = vst [vmem:[%s381 + $0x7c] sm:%s373] %v444
                  %v446 = vld [vmem:[%s380 + $0xe8] sm:%s373]
                  %447 = vst [vmem:[%s381 + $0x80] sm:%s373] %v446
                  %v448 = vld [vmem:[%s380 + $0xec] sm:%s373]
                  %449 = vst [vmem:[%s381 + $0x84] sm:%s373] %v448
                  %v450 = vld [vmem:[%s380 + $0xf0] sm:%s373]
                  %451 = vst [vmem:[%s381 + $0x88] sm:%s373] %v450
                  %v452 = vld [vmem:[%s380 + $0xf4] sm:%s373]
                  %453 = vst [vmem:[%s381 + $0x8c] sm:%s373] %v452
                  %v454 = vld [vmem:[%s380 + $0xf8] sm:%s373]
                  %455 = vst [vmem:[%s381 + $0x90] sm:%s373] %v454
                  %v456 = vld [vmem:[%s380 + $0xfc] sm:%s373]
                  %457 = vst [vmem:[%s381 + $0x94] sm:%s373] %v456
                  %v458 = vld [vmem:[%s380 + $0x100] sm:%s373]
                  %459 = vst [vmem:[%s381 + $0x98] sm:%s373] %v458
                  %v460 = vld [vmem:[%s380 + $0x104] sm:%s373]
                  %461 = vst [vmem:[%s381 + $0x9c] sm:%s373] %v460
                  %v462 = vld [vmem:[%s380 + $0x108] sm:%s373]
                  %463 = vst [vmem:[%s381 + $0xa0] sm:%s373] %v462
                  %v464 = vld [vmem:[%s380 + $0x10c] sm:%s373]
                  %465 = vst [vmem:[%s381 + $0xa4] sm:%s373] %v464
                  %v466 = vld [vmem:[%s380 + $0x110] sm:%s373]
                  %467 = vst [vmem:[%s381 + $0xa8] sm:%s373] %v466
                  %v468 = vld [vmem:[%s380 + $0x114] sm:%s373]
                  %469 = vst [vmem:[%s381 + $0xac] sm:%s373] %v468
                  %v470 = vld [vmem:[%s380 + $0x118] sm:%s373]
                  %471 = vst [vmem:[%s381 + $0xb0] sm:%s373] %v470
                  %v472 = vld [vmem:[%s380 + $0x11c] sm:%s373]
                  %473 = vst [vmem:[%s381 + $0xb4] sm:%s373] %v472
                  %v474 = vld [vmem:[%s380 + $0x120] sm:%s373]
                  %475 = vst [vmem:[%s381 + $0xb8] sm:%s373] %v474
                  %v476 = vld [vmem:[%s380 + $0x124] sm:%s373]
                  %477 = vst [vmem:[%s381 + $0xbc] sm:%s373] %v476
                  %v478 = vld [vmem:[%s380 + $0x128] sm:%s373]
                  %479 = vst [vmem:[%s381 + $0xc0] sm:%s373] %v478
                  %v480 = vld [vmem:[%s380 + $0x12c] sm:%s373]
                  %481 = vst [vmem:[%s381 + $0xc4] sm:%s373] %v480
                  %v482 = vld [vmem:[%s380 + $0x130] sm:%s373]
                  %483 = vst [vmem:[%s381 + $0xc8] sm:%s373] %v482
                  %v484 = vld [vmem:[%s380 + $0x134] sm:%s373]
                  %485 = vst [vmem:[%s381 + $0xcc] sm:%s373] %v484
                  %v486 = vld [vmem:[%s380 + $0x1a0] sm:%s373]
                  %487 = vst [vmem:[%s381 + $0xd0] sm:%s373] %v486
                  %v488 = vld [vmem:[%s380 + $0x1a4] sm:%s373]
                  %489 = vst [vmem:[%s381 + $0xd4] sm:%s373] %v488
                  %v490 = vld [vmem:[%s380 + $0x1a8] sm:%s373]
                  %491 = vst [vmem:[%s381 + $0xd8] sm:%s373] %v490
                  %v492 = vld [vmem:[%s380 + $0x1ac] sm:%s373]
                  %493 = vst [vmem:[%s381 + $0xdc] sm:%s373] %v492
                  %v494 = vld [vmem:[%s380 + $0x1b0] sm:%s373]
                  %495 = vst [vmem:[%s381 + $0xe0] sm:%s373] %v494
                  %v496 = vld [vmem:[%s380 + $0x1b4] sm:%s373]
                  %497 = vst [vmem:[%s381 + $0xe4] sm:%s373] %v496
                  %v498 = vld [vmem:[%s380 + $0x1b8] sm:%s373]
                  %499 = vst [vmem:[%s381 + $0xe8] sm:%s373] %v498
                  %v500 = vld [vmem:[%s380 + $0x1bc] sm:%s373]
                  %501 = vst [vmem:[%s381 + $0xec] sm:%s373] %v500
                  %v502 = vld [vmem:[%s380 + $0x1c0] sm:%s373]
                  %503 = vst [vmem:[%s381 + $0xf0] sm:%s373] %v502
                  %v504 = vld [vmem:[%s380 + $0x1c4] sm:%s373]
                  %505 = vst [vmem:[%s381 + $0xf4] sm:%s373] %v504
                  %v506 = vld [vmem:[%s380 + $0x1c8] sm:%s373]
                  %507 = vst [vmem:[%s381 + $0xf8] sm:%s373] %v506
                  %v508 = vld [vmem:[%s380 + $0x1cc] sm:%s373]
                  %509 = vst [vmem:[%s381 + $0xfc] sm:%s373] %v508
                  %v510 = vld [vmem:[%s380 + $0x1d0] sm:%s373]
                  %511 = vst [vmem:[%s381 + $0x100] sm:%s373] %v510
                  %v512 = vld [vmem:[%s380 + $0x1d4] sm:%s373]
                  %513 = vst [vmem:[%s381 + $0x104] sm:%s373] %v512
                  %v514 = vld [vmem:[%s380 + $0x1d8] sm:%s373]
                  %515 = vst [vmem:[%s381 + $0x108] sm:%s373] %v514
                  %v516 = vld [vmem:[%s380 + $0x1dc] sm:%s373]
                  %517 = vst [vmem:[%s381 + $0x10c] sm:%s373] %v516
                  %v518 = vld [vmem:[%s380 + $0x1e0] sm:%s373]
                  %519 = vst [vmem:[%s381 + $0x110] sm:%s373] %v518
                  %v520 = vld [vmem:[%s380 + $0x1e4] sm:%s373]
                  %521 = vst [vmem:[%s381 + $0x114] sm:%s373] %v520
                  %v522 = vld [vmem:[%s380 + $0x1e8] sm:%s373]
                  %523 = vst [vmem:[%s381 + $0x118] sm:%s373] %v522
                  %v524 = vld [vmem:[%s380 + $0x1ec] sm:%s373]
                  %525 = vst [vmem:[%s381 + $0x11c] sm:%s373] %v524
                  %v526 = vld [vmem:[%s380 + $0x1f0] sm:%s373]
                  %527 = vst [vmem:[%s381 + $0x120] sm:%s373] %v526
                  %v528 = vld [vmem:[%s380 + $0x1f4] sm:%s373]
                  %529 = vst [vmem:[%s381 + $0x124] sm:%s373] %v528
                  %v530 = vld [vmem:[%s380 + $0x1f8] sm:%s373]
                  %531 = vst [vmem:[%s381 + $0x128] sm:%s373] %v530
                  %v532 = vld [vmem:[%s380 + $0x1fc] sm:%s373]
                  %533 = vst [vmem:[%s381 + $0x12c] sm:%s373] %v532
                  %v534 = vld [vmem:[%s380 + $0x200] sm:%s373]
                  %535 = vst [vmem:[%s381 + $0x130] sm:%s373] %v534
                  %v536 = vld [vmem:[%s380 + $0x204] sm:%s373]
                  %537 = vst [vmem:[%s381 + $0x134] sm:%s373] %v536
                  %v538 = vld [vmem:[%s380 + $0x270] sm:%s373]
                  %539 = vst [vmem:[%s381 + $0x138] sm:%s373] %v538
                  %v540 = vld [vmem:[%s380 + $0x274] sm:%s373]
                  %541 = vst [vmem:[%s381 + $0x13c] sm:%s373] %v540
                  %v542 = vld [vmem:[%s380 + $0x278] sm:%s373]
                  %543 = vst [vmem:[%s381 + $0x140] sm:%s373] %v542
                  %v544 = vld [vmem:[%s380 + $0x27c] sm:%s373]
                  %545 = vst [vmem:[%s381 + $0x144] sm:%s373] %v544
                  %v546 = vld [vmem:[%s380 + $0x280] sm:%s373]
                  %547 = vst [vmem:[%s381 + $0x148] sm:%s373] %v546
                  %v548 = vld [vmem:[%s380 + $0x284] sm:%s373]
                  %549 = vst [vmem:[%s381 + $0x14c] sm:%s373] %v548
                  %v550 = vld [vmem:[%s380 + $0x288] sm:%s373]
                  %551 = vst [vmem:[%s381 + $0x150] sm:%s373] %v550
                  %v552 = vld [vmem:[%s380 + $0x28c] sm:%s373]
                  %553 = vst [vmem:[%s381 + $0x154] sm:%s373] %v552
                  %v554 = vld [vmem:[%s380 + $0x290] sm:%s373]
                  %555 = vst [vmem:[%s381 + $0x158] sm:%s373] %v554
                  %v556 = vld [vmem:[%s380 + $0x294] sm:%s373]
                  %557 = vst [vmem:[%s381 + $0x15c] sm:%s373] %v556
                  %v558 = vld [vmem:[%s380 + $0x298] sm:%s373]
                  %559 = vst [vmem:[%s381 + $0x160] sm:%s373] %v558
                  %v560 = vld [vmem:[%s380 + $0x29c] sm:%s373]
                  %561 = vst [vmem:[%s381 + $0x164] sm:%s373] %v560
                  %v562 = vld [vmem:[%s380 + $0x2a0] sm:%s373]
                  %563 = vst [vmem:[%s381 + $0x168] sm:%s373] %v562
                  %v564 = vld [vmem:[%s380 + $0x2a4] sm:%s373]
                  %565 = vst [vmem:[%s381 + $0x16c] sm:%s373] %v564
                  %v566 = vld [vmem:[%s380 + $0x2a8] sm:%s373]
                  %567 = vst [vmem:[%s381 + $0x170] sm:%s373] %v566
                  %v568 = vld [vmem:[%s380 + $0x2ac] sm:%s373]
                  %569 = vst [vmem:[%s381 + $0x174] sm:%s373] %v568
                  %v570 = vld [vmem:[%s380 + $0x2b0] sm:%s373]
                  %571 = vst [vmem:[%s381 + $0x178] sm:%s373] %v570
                  %v572 = vld [vmem:[%s380 + $0x2b4] sm:%s373]
                  %573 = vst [vmem:[%s381 + $0x17c] sm:%s373] %v572
                  %v574 = vld [vmem:[%s380 + $0x2b8] sm:%s373]
                  %575 = vst [vmem:[%s381 + $0x180] sm:%s373] %v574
                  %v576 = vld [vmem:[%s380 + $0x2bc] sm:%s373]
                  %577 = vst [vmem:[%s381 + $0x184] sm:%s373] %v576
                  %v578 = vld [vmem:[%s380 + $0x2c0] sm:%s373]
                  %579 = vst [vmem:[%s381 + $0x188] sm:%s373] %v578
                  %v580 = vld [vmem:[%s380 + $0x2c4] sm:%s373]
                  %581 = vst [vmem:[%s381 + $0x18c] sm:%s373] %v580
                  %v582 = vld [vmem:[%s380 + $0x2c8] sm:%s373]
                  %583 = vst [vmem:[%s381 + $0x190] sm:%s373] %v582
                  %v584 = vld [vmem:[%s380 + $0x2cc] sm:%s373]
                  %585 = vst [vmem:[%s381 + $0x194] sm:%s373] %v584
                  %v586 = vld [vmem:[%s380 + $0x2d0] sm:%s373]
                  %587 = vst [vmem:[%s381 + $0x198] sm:%s373] %v586
                  %v588 = vld [vmem:[%s380 + $0x2d4] sm:%s373]
                  %589 = vst [vmem:[%s381 + $0x19c] sm:%s373] %v588
                $region63: #{cnn_cifar10_forward.3} parent=50 // loop_footer
                  %s379 = sadd.s32 1, %s375
                $region64: #{cnn_cifar10_forward.3} parent=50 // loop_footer_branch
                  %374 = sbr.rel target = $region60
                $region65: #{cnn_cifar10_forward.3} parent=50 // loop_exit
                  _
              $region51: #{cnn_cifar10_forward.3} parent=35 // pred_fallthru
                _
            $region36: #{cnn_cifar10_forward.3} parent=31 // pred_fallthru
              _
            // Predicated region
            $region37: #{cnn_cifar10_forward.3} parent=31 // pred_check
              _
            $region38: #{cnn_cifar10_forward.3} parent=31 // pred_check_branch
              %143 = sbr.rel (0) target = $region40
            $region39: #{cnn_cifar10_forward.3} parent=31 // pred_region
              %s145 = ssub.s32 16, 1
              loop: start=0, step=1, limit=1
              $region41: #{cnn_cifar10_forward.3} parent=39 // loop_pre_header
                _
              $region42: #{cnn_cifar10_forward.3} parent=39 // loop_header
                %s147 = sphi 0, %s151
                %p148 = scmp.ge.s32.totalorder %s147, 1
                %s152 = sphi %s137, %s137
                %s153 = sphi %s134, %s134
              $region43: #{cnn_cifar10_forward.3} parent=39 // loop_header_branch
                %150 = sbr.rel (%p148) target = $region47
              $region44: #{cnn_cifar10_forward.3} parent=39 // loop_body
                %v154 = vld [vmem:[%s152] sm:%s145]
                %155 = vst [vmem:[%s153] sm:%s145] %v154
                %v156 = vld [vmem:[%s152 + $0x4] sm:%s145]
                %157 = vst [vmem:[%s153 + $0x4] sm:%s145] %v156
                %v158 = vld [vmem:[%s152 + $0x8] sm:%s145]
                %159 = vst [vmem:[%s153 + $0x8] sm:%s145] %v158
                %v160 = vld [vmem:[%s152 + $0xc] sm:%s145]
                %161 = vst [vmem:[%s153 + $0xc] sm:%s145] %v160
                %v162 = vld [vmem:[%s152 + $0x10] sm:%s145]
                %163 = vst [vmem:[%s153 + $0x10] sm:%s145] %v162
                %v164 = vld [vmem:[%s152 + $0x14] sm:%s145]
                %165 = vst [vmem:[%s153 + $0x14] sm:%s145] %v164
                %v166 = vld [vmem:[%s152 + $0x18] sm:%s145]
                %167 = vst [vmem:[%s153 + $0x18] sm:%s145] %v166
                %v168 = vld [vmem:[%s152 + $0x1c] sm:%s145]
                %169 = vst [vmem:[%s153 + $0x1c] sm:%s145] %v168
                %v170 = vld [vmem:[%s152 + $0x20] sm:%s145]
                %171 = vst [vmem:[%s153 + $0x20] sm:%s145] %v170
                %v172 = vld [vmem:[%s152 + $0x24] sm:%s145]
                %173 = vst [vmem:[%s153 + $0x24] sm:%s145] %v172
                %v174 = vld [vmem:[%s152 + $0x28] sm:%s145]
                %175 = vst [vmem:[%s153 + $0x28] sm:%s145] %v174
                %v176 = vld [vmem:[%s152 + $0x2c] sm:%s145]
                %177 = vst [vmem:[%s153 + $0x2c] sm:%s145] %v176
                %v178 = vld [vmem:[%s152 + $0x30] sm:%s145]
                %179 = vst [vmem:[%s153 + $0x30] sm:%s145] %v178
                %v180 = vld [vmem:[%s152 + $0x34] sm:%s145]
                %181 = vst [vmem:[%s153 + $0x34] sm:%s145] %v180
                %v182 = vld [vmem:[%s152 + $0x38] sm:%s145]
                %183 = vst [vmem:[%s153 + $0x38] sm:%s145] %v182
                %v184 = vld [vmem:[%s152 + $0x3c] sm:%s145]
                %185 = vst [vmem:[%s153 + $0x3c] sm:%s145] %v184
                %v186 = vld [vmem:[%s152 + $0x40] sm:%s145]
                %187 = vst [vmem:[%s153 + $0x40] sm:%s145] %v186
                %v188 = vld [vmem:[%s152 + $0x44] sm:%s145]
                %189 = vst [vmem:[%s153 + $0x44] sm:%s145] %v188
                %v190 = vld [vmem:[%s152 + $0x48] sm:%s145]
                %191 = vst [vmem:[%s153 + $0x48] sm:%s145] %v190
                %v192 = vld [vmem:[%s152 + $0x4c] sm:%s145]
                %193 = vst [vmem:[%s153 + $0x4c] sm:%s145] %v192
                %v194 = vld [vmem:[%s152 + $0x50] sm:%s145]
                %195 = vst [vmem:[%s153 + $0x50] sm:%s145] %v194
                %v196 = vld [vmem:[%s152 + $0x54] sm:%s145]
                %197 = vst [vmem:[%s153 + $0x54] sm:%s145] %v196
                %v198 = vld [vmem:[%s152 + $0x58] sm:%s145]
                %199 = vst [vmem:[%s153 + $0x58] sm:%s145] %v198
                %v200 = vld [vmem:[%s152 + $0x5c] sm:%s145]
                %201 = vst [vmem:[%s153 + $0x5c] sm:%s145] %v200
                %v202 = vld [vmem:[%s152 + $0x60] sm:%s145]
                %203 = vst [vmem:[%s153 + $0x60] sm:%s145] %v202
                %v204 = vld [vmem:[%s152 + $0x64] sm:%s145]
                %205 = vst [vmem:[%s153 + $0x64] sm:%s145] %v204
                %v206 = vld [vmem:[%s152 + $0xd0] sm:%s145]
                %207 = vst [vmem:[%s153 + $0x68] sm:%s145] %v206
                %v208 = vld [vmem:[%s152 + $0xd4] sm:%s145]
                %209 = vst [vmem:[%s153 + $0x6c] sm:%s145] %v208
                %v210 = vld [vmem:[%s152 + $0xd8] sm:%s145]
                %211 = vst [vmem:[%s153 + $0x70] sm:%s145] %v210
                %v212 = vld [vmem:[%s152 + $0xdc] sm:%s145]
                %213 = vst [vmem:[%s153 + $0x74] sm:%s145] %v212
                %v214 = vld [vmem:[%s152 + $0xe0] sm:%s145]
                %215 = vst [vmem:[%s153 + $0x78] sm:%s145] %v214
                %v216 = vld [vmem:[%s152 + $0xe4] sm:%s145]
                %217 = vst [vmem:[%s153 + $0x7c] sm:%s145] %v216
                %v218 = vld [vmem:[%s152 + $0xe8] sm:%s145]
                %219 = vst [vmem:[%s153 + $0x80] sm:%s145] %v218
                %v220 = vld [vmem:[%s152 + $0xec] sm:%s145]
                %221 = vst [vmem:[%s153 + $0x84] sm:%s145] %v220
                %v222 = vld [vmem:[%s152 + $0xf0] sm:%s145]
                %223 = vst [vmem:[%s153 + $0x88] sm:%s145] %v222
                %v224 = vld [vmem:[%s152 + $0xf4] sm:%s145]
                %225 = vst [vmem:[%s153 + $0x8c] sm:%s145] %v224
                %v226 = vld [vmem:[%s152 + $0xf8] sm:%s145]
                %227 = vst [vmem:[%s153 + $0x90] sm:%s145] %v226
                %v228 = vld [vmem:[%s152 + $0xfc] sm:%s145]
                %229 = vst [vmem:[%s153 + $0x94] sm:%s145] %v228
                %v230 = vld [vmem:[%s152 + $0x100] sm:%s145]
                %231 = vst [vmem:[%s153 + $0x98] sm:%s145] %v230
                %v232 = vld [vmem:[%s152 + $0x104] sm:%s145]
                %233 = vst [vmem:[%s153 + $0x9c] sm:%s145] %v232
                %v234 = vld [vmem:[%s152 + $0x108] sm:%s145]
                %235 = vst [vmem:[%s153 + $0xa0] sm:%s145] %v234
                %v236 = vld [vmem:[%s152 + $0x10c] sm:%s145]
                %237 = vst [vmem:[%s153 + $0xa4] sm:%s145] %v236
                %v238 = vld [vmem:[%s152 + $0x110] sm:%s145]
                %239 = vst [vmem:[%s153 + $0xa8] sm:%s145] %v238
                %v240 = vld [vmem:[%s152 + $0x114] sm:%s145]
                %241 = vst [vmem:[%s153 + $0xac] sm:%s145] %v240
                %v242 = vld [vmem:[%s152 + $0x118] sm:%s145]
                %243 = vst [vmem:[%s153 + $0xb0] sm:%s145] %v242
                %v244 = vld [vmem:[%s152 + $0x11c] sm:%s145]
                %245 = vst [vmem:[%s153 + $0xb4] sm:%s145] %v244
                %v246 = vld [vmem:[%s152 + $0x120] sm:%s145]
                %247 = vst [vmem:[%s153 + $0xb8] sm:%s145] %v246
                %v248 = vld [vmem:[%s152 + $0x124] sm:%s145]
                %249 = vst [vmem:[%s153 + $0xbc] sm:%s145] %v248
                %v250 = vld [vmem:[%s152 + $0x128] sm:%s145]
                %251 = vst [vmem:[%s153 + $0xc0] sm:%s145] %v250
                %v252 = vld [vmem:[%s152 + $0x12c] sm:%s145]
                %253 = vst [vmem:[%s153 + $0xc4] sm:%s145] %v252
                %v254 = vld [vmem:[%s152 + $0x130] sm:%s145]
                %255 = vst [vmem:[%s153 + $0xc8] sm:%s145] %v254
                %v256 = vld [vmem:[%s152 + $0x134] sm:%s145]
                %257 = vst [vmem:[%s153 + $0xcc] sm:%s145] %v256
                %v258 = vld [vmem:[%s152 + $0x1a0] sm:%s145]
                %259 = vst [vmem:[%s153 + $0xd0] sm:%s145] %v258
                %v260 = vld [vmem:[%s152 + $0x1a4] sm:%s145]
                %261 = vst [vmem:[%s153 + $0xd4] sm:%s145] %v260
                %v262 = vld [vmem:[%s152 + $0x1a8] sm:%s145]
                %263 = vst [vmem:[%s153 + $0xd8] sm:%s145] %v262
                %v264 = vld [vmem:[%s152 + $0x1ac] sm:%s145]
                %265 = vst [vmem:[%s153 + $0xdc] sm:%s145] %v264
                %v266 = vld [vmem:[%s152 + $0x1b0] sm:%s145]
                %267 = vst [vmem:[%s153 + $0xe0] sm:%s145] %v266
                %v268 = vld [vmem:[%s152 + $0x1b4] sm:%s145]
                %269 = vst [vmem:[%s153 + $0xe4] sm:%s145] %v268
                %v270 = vld [vmem:[%s152 + $0x1b8] sm:%s145]
                %271 = vst [vmem:[%s153 + $0xe8] sm:%s145] %v270
                %v272 = vld [vmem:[%s152 + $0x1bc] sm:%s145]
                %273 = vst [vmem:[%s153 + $0xec] sm:%s145] %v272
                %v274 = vld [vmem:[%s152 + $0x1c0] sm:%s145]
                %275 = vst [vmem:[%s153 + $0xf0] sm:%s145] %v274
                %v276 = vld [vmem:[%s152 + $0x1c4] sm:%s145]
                %277 = vst [vmem:[%s153 + $0xf4] sm:%s145] %v276
                %v278 = vld [vmem:[%s152 + $0x1c8] sm:%s145]
                %279 = vst [vmem:[%s153 + $0xf8] sm:%s145] %v278
                %v280 = vld [vmem:[%s152 + $0x1cc] sm:%s145]
                %281 = vst [vmem:[%s153 + $0xfc] sm:%s145] %v280
                %v282 = vld [vmem:[%s152 + $0x1d0] sm:%s145]
                %283 = vst [vmem:[%s153 + $0x100] sm:%s145] %v282
                %v284 = vld [vmem:[%s152 + $0x1d4] sm:%s145]
                %285 = vst [vmem:[%s153 + $0x104] sm:%s145] %v284
                %v286 = vld [vmem:[%s152 + $0x1d8] sm:%s145]
                %287 = vst [vmem:[%s153 + $0x108] sm:%s145] %v286
                %v288 = vld [vmem:[%s152 + $0x1dc] sm:%s145]
                %289 = vst [vmem:[%s153 + $0x10c] sm:%s145] %v288
                %v290 = vld [vmem:[%s152 + $0x1e0] sm:%s145]
                %291 = vst [vmem:[%s153 + $0x110] sm:%s145] %v290
                %v292 = vld [vmem:[%s152 + $0x1e4] sm:%s145]
                %293 = vst [vmem:[%s153 + $0x114] sm:%s145] %v292
                %v294 = vld [vmem:[%s152 + $0x1e8] sm:%s145]
                %295 = vst [vmem:[%s153 + $0x118] sm:%s145] %v294
                %v296 = vld [vmem:[%s152 + $0x1ec] sm:%s145]
                %297 = vst [vmem:[%s153 + $0x11c] sm:%s145] %v296
                %v298 = vld [vmem:[%s152 + $0x1f0] sm:%s145]
                %299 = vst [vmem:[%s153 + $0x120] sm:%s145] %v298
                %v300 = vld [vmem:[%s152 + $0x1f4] sm:%s145]
                %301 = vst [vmem:[%s153 + $0x124] sm:%s145] %v300
                %v302 = vld [vmem:[%s152 + $0x1f8] sm:%s145]
                %303 = vst [vmem:[%s153 + $0x128] sm:%s145] %v302
                %v304 = vld [vmem:[%s152 + $0x1fc] sm:%s145]
                %305 = vst [vmem:[%s153 + $0x12c] sm:%s145] %v304
                %v306 = vld [vmem:[%s152 + $0x200] sm:%s145]
                %307 = vst [vmem:[%s153 + $0x130] sm:%s145] %v306
                %v308 = vld [vmem:[%s152 + $0x204] sm:%s145]
                %309 = vst [vmem:[%s153 + $0x134] sm:%s145] %v308
                %v310 = vld [vmem:[%s152 + $0x270] sm:%s145]
                %311 = vst [vmem:[%s153 + $0x138] sm:%s145] %v310
                %v312 = vld [vmem:[%s152 + $0x274] sm:%s145]
                %313 = vst [vmem:[%s153 + $0x13c] sm:%s145] %v312
                %v314 = vld [vmem:[%s152 + $0x278] sm:%s145]
                %315 = vst [vmem:[%s153 + $0x140] sm:%s145] %v314
                %v316 = vld [vmem:[%s152 + $0x27c] sm:%s145]
                %317 = vst [vmem:[%s153 + $0x144] sm:%s145] %v316
                %v318 = vld [vmem:[%s152 + $0x280] sm:%s145]
                %319 = vst [vmem:[%s153 + $0x148] sm:%s145] %v318
                %v320 = vld [vmem:[%s152 + $0x284] sm:%s145]
                %321 = vst [vmem:[%s153 + $0x14c] sm:%s145] %v320
                %v322 = vld [vmem:[%s152 + $0x288] sm:%s145]
                %323 = vst [vmem:[%s153 + $0x150] sm:%s145] %v322
                %v324 = vld [vmem:[%s152 + $0x28c] sm:%s145]
                %325 = vst [vmem:[%s153 + $0x154] sm:%s145] %v324
                %v326 = vld [vmem:[%s152 + $0x290] sm:%s145]
                %327 = vst [vmem:[%s153 + $0x158] sm:%s145] %v326
                %v328 = vld [vmem:[%s152 + $0x294] sm:%s145]
                %329 = vst [vmem:[%s153 + $0x15c] sm:%s145] %v328
                %v330 = vld [vmem:[%s152 + $0x298] sm:%s145]
                %331 = vst [vmem:[%s153 + $0x160] sm:%s145] %v330
                %v332 = vld [vmem:[%s152 + $0x29c] sm:%s145]
                %333 = vst [vmem:[%s153 + $0x164] sm:%s145] %v332
                %v334 = vld [vmem:[%s152 + $0x2a0] sm:%s145]
                %335 = vst [vmem:[%s153 + $0x168] sm:%s145] %v334
                %v336 = vld [vmem:[%s152 + $0x2a4] sm:%s145]
                %337 = vst [vmem:[%s153 + $0x16c] sm:%s145] %v336
                %v338 = vld [vmem:[%s152 + $0x2a8] sm:%s145]
                %339 = vst [vmem:[%s153 + $0x170] sm:%s145] %v338
                %v340 = vld [vmem:[%s152 + $0x2ac] sm:%s145]
                %341 = vst [vmem:[%s153 + $0x174] sm:%s145] %v340
                %v342 = vld [vmem:[%s152 + $0x2b0] sm:%s145]
                %343 = vst [vmem:[%s153 + $0x178] sm:%s145] %v342
                %v344 = vld [vmem:[%s152 + $0x2b4] sm:%s145]
                %345 = vst [vmem:[%s153 + $0x17c] sm:%s145] %v344
                %v346 = vld [vmem:[%s152 + $0x2b8] sm:%s145]
                %347 = vst [vmem:[%s153 + $0x180] sm:%s145] %v346
                %v348 = vld [vmem:[%s152 + $0x2bc] sm:%s145]
                %349 = vst [vmem:[%s153 + $0x184] sm:%s145] %v348
                %v350 = vld [vmem:[%s152 + $0x2c0] sm:%s145]
                %351 = vst [vmem:[%s153 + $0x188] sm:%s145] %v350
                %v352 = vld [vmem:[%s152 + $0x2c4] sm:%s145]
                %353 = vst [vmem:[%s153 + $0x18c] sm:%s145] %v352
                %v354 = vld [vmem:[%s152 + $0x2c8] sm:%s145]
                %355 = vst [vmem:[%s153 + $0x190] sm:%s145] %v354
                %v356 = vld [vmem:[%s152 + $0x2cc] sm:%s145]
                %357 = vst [vmem:[%s153 + $0x194] sm:%s145] %v356
                %v358 = vld [vmem:[%s152 + $0x2d0] sm:%s145]
                %359 = vst [vmem:[%s153 + $0x198] sm:%s145] %v358
                %v360 = vld [vmem:[%s152 + $0x2d4] sm:%s145]
                %361 = vst [vmem:[%s153 + $0x19c] sm:%s145] %v360
              $region45: #{cnn_cifar10_forward.3} parent=39 // loop_footer
                %s151 = sadd.s32 1, %s147
              $region46: #{cnn_cifar10_forward.3} parent=39 // loop_footer_branch
                %146 = sbr.rel target = $region42
              $region47: #{cnn_cifar10_forward.3} parent=39 // loop_exit
                _
            $region40: #{cnn_cifar10_forward.3} parent=31 // pred_fallthru
              _
          $region32: #{cnn_cifar10_forward.3} parent=27 // pred_fallthru
            _
          %590 = vnop
        $region28: #{cnn_cifar10_forward.3} parent=23 // pred_fallthru
          _
      $region24: #{cnn_cifar10_forward.3} parent=5 // pred_fallthru
        _
      %p591 = scmp.le.s32.totalorder 1, %s9
      %p592 = scmp.lt.s32.totalorder %s9, 3
      %p593 = pnand %p591, %p592
      %p594 = pneg %p593
      // Predicated region
      $region66: #{cnn_cifar10_forward.3} parent=5 // pred_check
        _
      $region67: #{cnn_cifar10_forward.3} parent=5 // pred_check_branch
        %596 = sbr.rel (%p593) target = $region69
      $region68: #{cnn_cifar10_forward.3} parent=5 // pred_region
        %s597 = ssub.s32 %s9, 1
        %s598 = sand.u32 %s22, 1
        %s599 = sand.u32 %s22, 1
        %s600 = smul.addr %s599, 416
        %s601 = scalar_lea.vmem [#allocation2], %s600
        // Predicated region
        $region70: #{cnn_cifar10_forward.3} parent=68 // pred_check
          %p602 = pneg %p35
        $region71: #{cnn_cifar10_forward.3} parent=68 // pred_check_branch
          %604 = sbr.rel (%p602) target = $region73
        $region72: #{cnn_cifar10_forward.3} parent=68 // pred_region
          _
        $region73: #{cnn_cifar10_forward.3} parent=68 // pred_fallthru
          _
        %s605 = sand.u32 %s22, 1
        %s606 = sand.u32 %s22, 1
        %s607 = smul.addr %s606, 416
        %s608 = scalar_lea.vmem [#allocation2], %s607
        %p609 = pneg %p35
        %p610 = pneg %p32
        %p611 = pneg %p56
        %p612 = pneg %p53
        %p613 = pneg %p77
        %p614 = pneg %p74
        %p615 = pneg %p103
        %p616 = pneg %p100
        %s617 = smul.u32 26, %s14
        %p618 = scmp.lt.s32.totalorder %s617, 51
        %s619 = scalar_select %p618, %s617, 51
        %s620 = smul.addr %s619, 8
        %s621 = scalar_lea.vmem %s3, %s620
        %s622 = smul.u32 26, %s14
        %s623 = smul.u32 26, %s14
        %p624 = scmp.lt.s32.totalorder %s623, 51
        %s625 = scalar_select %p624, %s623, 51
        %s626 = smul.addr %s625, 8
        %s627 = scalar_lea.vmem %s3, %s626
        %s628 = smul.u32 26, %s14
        %v630 = vld [vmem:[%s601] sm:$0xf]
        %v631 = vld [vmem:[%s601 + $0x4] sm:$0xf]
        %v632 = vld [vmem:[%s601 + $0x8] sm:$0xf]
        %v633 = vld [vmem:[%s601 + $0xc] sm:$0xf]
        %v634 = vld [vmem:[%s601 + $0x10] sm:$0xf]
        %v635 = vld [vmem:[%s601 + $0x14] sm:$0xf]
        %v636 = vld [vmem:[%s601 + $0x18] sm:$0xf]
        %v637 = vld [vmem:[%s601 + $0x1c] sm:$0xf]
        %v638 = vld [vmem:[%s601 + $0x20] sm:$0xf]
        %v639 = vld [vmem:[%s601 + $0x24] sm:$0xf]
        %v640 = vld [vmem:[%s601 + $0x28] sm:$0xf]
        %v641 = vld [vmem:[%s601 + $0x2c] sm:$0xf]
        %v642 = vld [vmem:[%s601 + $0x30] sm:$0xf]
        %v643 = vld [vmem:[%s601 + $0x34] sm:$0xf]
        %v644 = vld [vmem:[%s601 + $0x38] sm:$0xf]
        %v645 = vld [vmem:[%s601 + $0x3c] sm:$0xf]
        %v646 = vld [vmem:[%s601 + $0x40] sm:$0xf]
        %v647 = vld [vmem:[%s601 + $0x44] sm:$0xf]
        %v648 = vld [vmem:[%s601 + $0x48] sm:$0xf]
        %v649 = vld [vmem:[%s601 + $0x4c] sm:$0xf]
        %v650 = vld [vmem:[%s601 + $0x50] sm:$0xf]
        %v651 = vld [vmem:[%s601 + $0x54] sm:$0xf]
        %v652 = vld [vmem:[%s601 + $0x58] sm:$0xf]
        %v653 = vld [vmem:[%s601 + $0x5c] sm:$0xf]
        %v654 = vld [vmem:[%s601 + $0x60] sm:$0xf]
        %v655 = vld [vmem:[%s601 + $0x64] sm:$0xf]
        %v656 = vld [vmem:[%s601 + $0x68] sm:$0xf]
        %v657 = vld [vmem:[%s601 + $0x6c] sm:$0xf]
        %v658 = vld [vmem:[%s601 + $0x70] sm:$0xf]
        %v659 = vld [vmem:[%s601 + $0x74] sm:$0xf]
        %v660 = vld [vmem:[%s601 + $0x78] sm:$0xf]
        %v661 = vld [vmem:[%s601 + $0x7c] sm:$0xf]
        %v662 = vld [vmem:[%s601 + $0x80] sm:$0xf]
        %v663 = vld [vmem:[%s601 + $0x84] sm:$0xf]
        %v664 = vld [vmem:[%s601 + $0x88] sm:$0xf]
        %v665 = vld [vmem:[%s601 + $0x8c] sm:$0xf]
        %v666 = vld [vmem:[%s601 + $0x90] sm:$0xf]
        %v667 = vld [vmem:[%s601 + $0x94] sm:$0xf]
        %v668 = vld [vmem:[%s601 + $0x98] sm:$0xf]
        %v669 = vld [vmem:[%s601 + $0x9c] sm:$0xf]
        %v670 = vld [vmem:[%s601 + $0xa0] sm:$0xf]
        %v671 = vld [vmem:[%s601 + $0xa4] sm:$0xf]
        %v672 = vld [vmem:[%s601 + $0xa8] sm:$0xf]
        %v673 = vld [vmem:[%s601 + $0xac] sm:$0xf]
        %v674 = vld [vmem:[%s601 + $0xb0] sm:$0xf]
        %v675 = vld [vmem:[%s601 + $0xb4] sm:$0xf]
        %v676 = vld [vmem:[%s601 + $0xb8] sm:$0xf]
        %v677 = vld [vmem:[%s601 + $0xbc] sm:$0xf]
        %v678 = vld [vmem:[%s601 + $0xc0] sm:$0xf]
        %v679 = vld [vmem:[%s601 + $0xc4] sm:$0xf]
        %v680 = vld [vmem:[%s601 + $0xc8] sm:$0xf]
        %v681 = vld [vmem:[%s601 + $0xcc] sm:$0xf]
        %v682 = vld [vmem:[%s601 + $0xd0] sm:$0xf]
        %v683 = vld [vmem:[%s601 + $0xd4] sm:$0xf]
        %v684 = vld [vmem:[%s601 + $0xd8] sm:$0xf]
        %v685 = vld [vmem:[%s601 + $0xdc] sm:$0xf]
        %v686 = vld [vmem:[%s601 + $0xe0] sm:$0xf]
        %v687 = vld [vmem:[%s601 + $0xe4] sm:$0xf]
        %v688 = vld [vmem:[%s601 + $0xe8] sm:$0xf]
        %v689 = vld [vmem:[%s601 + $0xec] sm:$0xf]
        %v690 = vld [vmem:[%s601 + $0xf0] sm:$0xf]
        %v691 = vld [vmem:[%s601 + $0xf4] sm:$0xf]
        %v692 = vld [vmem:[%s601 + $0xf8] sm:$0xf]
        %v693 = vld [vmem:[%s601 + $0xfc] sm:$0xf]
        %v694 = vld [vmem:[%s601 + $0x100] sm:$0xf]
        %v695 = vld [vmem:[%s601 + $0x104] sm:$0xf]
        %v696 = vld [vmem:[%s601 + $0x108] sm:$0xf]
        %v697 = vld [vmem:[%s601 + $0x10c] sm:$0xf]
        %v698 = vld [vmem:[%s601 + $0x110] sm:$0xf]
        %v699 = vld [vmem:[%s601 + $0x114] sm:$0xf]
        %v700 = vld [vmem:[%s601 + $0x118] sm:$0xf]
        %v701 = vld [vmem:[%s601 + $0x11c] sm:$0xf]
        %v702 = vld [vmem:[%s601 + $0x120] sm:$0xf]
        %v703 = vld [vmem:[%s601 + $0x124] sm:$0xf]
        %v704 = vld [vmem:[%s601 + $0x128] sm:$0xf]
        %v705 = vld [vmem:[%s601 + $0x12c] sm:$0xf]
        %v706 = vld [vmem:[%s601 + $0x130] sm:$0xf]
        %v707 = vld [vmem:[%s601 + $0x134] sm:$0xf]
        %v708 = vld [vmem:[%s601 + $0x138] sm:$0xf]
        %v709 = vld [vmem:[%s601 + $0x13c] sm:$0xf]
        %v710 = vld [vmem:[%s601 + $0x140] sm:$0xf]
        %v711 = vld [vmem:[%s601 + $0x144] sm:$0xf]
        %v712 = vld [vmem:[%s601 + $0x148] sm:$0xf]
        %v713 = vld [vmem:[%s601 + $0x14c] sm:$0xf]
        %v714 = vld [vmem:[%s601 + $0x150] sm:$0xf]
        %v715 = vld [vmem:[%s601 + $0x154] sm:$0xf]
        %v716 = vld [vmem:[%s601 + $0x158] sm:$0xf]
        %v717 = vld [vmem:[%s601 + $0x15c] sm:$0xf]
        %v718 = vld [vmem:[%s601 + $0x160] sm:$0xf]
        %v719 = vld [vmem:[%s601 + $0x164] sm:$0xf]
        %v720 = vld [vmem:[%s601 + $0x168] sm:$0xf]
        %v721 = vld [vmem:[%s601 + $0x16c] sm:$0xf]
        %v722 = vld [vmem:[%s601 + $0x170] sm:$0xf]
        %v723 = vld [vmem:[%s601 + $0x174] sm:$0xf]
        %v724 = vld [vmem:[%s601 + $0x178] sm:$0xf]
        %v725 = vld [vmem:[%s601 + $0x17c] sm:$0xf]
        %v726 = vld [vmem:[%s601 + $0x180] sm:$0xf]
        %v727 = vld [vmem:[%s601 + $0x184] sm:$0xf]
        %v728 = vld [vmem:[%s601 + $0x188] sm:$0xf]
        %v729 = vld [vmem:[%s601 + $0x18c] sm:$0xf]
        %v730 = vld [vmem:[%s601 + $0x190] sm:$0xf]
        %v731 = vld [vmem:[%s601 + $0x194] sm:$0xf]
        %v732 = vld [vmem:[%s601 + $0x198] sm:$0xf]
        %v733 = vld [vmem:[%s601 + $0x19c] sm:$0xf]
        %v734 = vld [vmem:[%s1] sm:$0xf]
        %v735 = vld [vmem:[%s1 + $0x4] sm:$0xf]
        %v736 = vld [vmem:[%s1 + $0x8] sm:$0xf]
        %v737 = vld [vmem:[%s1 + $0xc] sm:$0xf]
        %v738 = vld [vmem:[%s1 + $0x10] sm:$0xf]
        %v739 = vld [vmem:[%s1 + $0x14] sm:$0xf]
        %v740 = vld [vmem:[%s1 + $0x18] sm:$0xf]
        %v741 = vld [vmem:[%s1 + $0x1c] sm:$0xf]
        %v742 = vld [vmem:[%s1 + $0x20] sm:$0xf]
        %v743 = vld [vmem:[%s1 + $0x24] sm:$0xf]
        %v848 = vunpack.c.l.b16 %v630
        %v849 = vunpack.c.l.b16 %v631
        %v850 = vunpack.c.l.b16 %v632
        %v851 = vunpack.c.l.b16 %v633
        %v852 = vunpack.c.l.b16 %v634
        %v853 = vunpack.c.l.b16 %v635
        %v854 = vunpack.c.l.b16 %v636
        %v855 = vunpack.c.l.b16 %v637
        %v856 = vunpack.c.l.b16 %v638
        %v857 = vunpack.c.l.b16 %v639
        %v858 = vunpack.c.l.b16 %v640
        %v859 = vunpack.c.l.b16 %v641
        %v860 = vunpack.c.l.b16 %v642
        %v861 = vunpack.c.l.b16 %v643
        %v862 = vunpack.c.l.b16 %v644
        %v863 = vunpack.c.l.b16 %v645
        %v864 = vunpack.c.l.b16 %v646
        %v865 = vunpack.c.l.b16 %v647
        %v866 = vunpack.c.l.b16 %v648
        %v867 = vunpack.c.l.b16 %v649
        %v868 = vunpack.c.l.b16 %v650
        %v869 = vunpack.c.l.b16 %v651
        %v870 = vunpack.c.l.b16 %v652
        %v871 = vunpack.c.l.b16 %v653
        %v872 = vunpack.c.l.b16 %v654
        %v873 = vunpack.c.l.b16 %v655
        %v874 = vunpack.c.l.b16 %v656
        %v875 = vunpack.c.l.b16 %v657
        %v876 = vunpack.c.l.b16 %v658
        %v877 = vunpack.c.l.b16 %v659
        %v878 = vunpack.c.l.b16 %v660
        %v879 = vunpack.c.l.b16 %v661
        %v880 = vunpack.c.l.b16 %v662
        %v881 = vunpack.c.l.b16 %v663
        %v882 = vunpack.c.l.b16 %v664
        %v883 = vunpack.c.l.b16 %v665
        %v884 = vunpack.c.l.b16 %v666
        %v885 = vunpack.c.l.b16 %v667
        %v886 = vunpack.c.l.b16 %v668
        %v887 = vunpack.c.l.b16 %v669
        %v888 = vunpack.c.l.b16 %v670
        %v889 = vunpack.c.l.b16 %v671
        %v890 = vunpack.c.l.b16 %v672
        %v891 = vunpack.c.l.b16 %v673
        %v892 = vunpack.c.l.b16 %v674
        %v893 = vunpack.c.l.b16 %v675
        %v894 = vunpack.c.l.b16 %v676
        %v895 = vunpack.c.l.b16 %v677
        %v896 = vunpack.c.l.b16 %v678
        %v897 = vunpack.c.l.b16 %v679
        %v898 = vunpack.c.l.b16 %v680
        %v899 = vunpack.c.l.b16 %v681
        %v900 = vunpack.c.l.b16 %v682
        %v901 = vunpack.c.l.b16 %v683
        %v902 = vunpack.c.l.b16 %v684
        %v903 = vunpack.c.l.b16 %v685
        %v904 = vunpack.c.l.b16 %v686
        %v905 = vunpack.c.l.b16 %v687
        %v906 = vunpack.c.l.b16 %v688
        %v907 = vunpack.c.l.b16 %v689
        %v908 = vunpack.c.l.b16 %v690
        %v909 = vunpack.c.l.b16 %v691
        %v910 = vunpack.c.l.b16 %v692
        %v911 = vunpack.c.l.b16 %v693
        %v912 = vunpack.c.l.b16 %v694
        %v913 = vunpack.c.l.b16 %v695
        %v914 = vunpack.c.l.b16 %v696
        %v915 = vunpack.c.l.b16 %v697
        %v916 = vunpack.c.l.b16 %v698
        %v917 = vunpack.c.l.b16 %v699
        %v918 = vunpack.c.l.b16 %v700
        %v919 = vunpack.c.l.b16 %v701
        %v920 = vunpack.c.l.b16 %v702
        %v921 = vunpack.c.l.b16 %v703
        %v922 = vunpack.c.l.b16 %v704
        %v923 = vunpack.c.l.b16 %v705
        %v924 = vunpack.c.l.b16 %v706
        %v925 = vunpack.c.l.b16 %v707
        %v926 = vunpack.c.l.b16 %v708
        %v927 = vunpack.c.l.b16 %v709
        %v928 = vunpack.c.l.b16 %v710
        %v929 = vunpack.c.l.b16 %v711
        %v930 = vunpack.c.l.b16 %v712
        %v931 = vunpack.c.l.b16 %v713
        %v932 = vunpack.c.l.b16 %v714
        %v933 = vunpack.c.l.b16 %v715
        %v934 = vunpack.c.l.b16 %v716
        %v935 = vunpack.c.l.b16 %v717
        %v936 = vunpack.c.l.b16 %v718
        %v937 = vunpack.c.l.b16 %v719
        %v938 = vunpack.c.l.b16 %v720
        %v939 = vunpack.c.l.b16 %v721
        %v940 = vunpack.c.l.b16 %v722
        %v941 = vunpack.c.l.b16 %v723
        %v942 = vunpack.c.l.b16 %v724
        %v943 = vunpack.c.l.b16 %v725
        %v944 = vunpack.c.l.b16 %v726
        %v945 = vunpack.c.l.b16 %v727
        %v946 = vunpack.c.l.b16 %v728
        %v947 = vunpack.c.l.b16 %v729
        %v948 = vunpack.c.l.b16 %v730
        %v949 = vunpack.c.l.b16 %v731
        %v950 = vunpack.c.l.b16 %v732
        %v951 = vunpack.c.l.b16 %v733
        %v952 = vpack.c.b16 %v849, %v848
        %v953 = vpack.c.b16 %v851, %v850
        %v954 = vpack.c.b16 %v853, %v852
        %v955 = vpack.c.b16 %v855, %v854
        %v956 = vpack.c.b16 %v857, %v856
        %v957 = vpack.c.b16 %v859, %v858
        %v958 = vpack.c.b16 %v861, %v860
        %v959 = vpack.c.b16 %v863, %v862
        %v960 = vpack.c.b16 %v865, %v864
        %v961 = vpack.c.b16 %v867, %v866
        %v962 = vpack.c.b16 %v869, %v868
        %v963 = vpack.c.b16 %v871, %v870
        %v964 = vpack.c.b16 %v873, %v872
        %v965 = vpack.c.b16 %v875, %v874
        %v966 = vpack.c.b16 %v877, %v876
        %v967 = vpack.c.b16 %v879, %v878
        %v968 = vpack.c.b16 %v881, %v880
        %v969 = vpack.c.b16 %v883, %v882
        %v970 = vpack.c.b16 %v885, %v884
        %v971 = vpack.c.b16 %v887, %v886
        %v972 = vpack.c.b16 %v889, %v888
        %v973 = vpack.c.b16 %v891, %v890
        %v974 = vpack.c.b16 %v893, %v892
        %v975 = vpack.c.b16 %v895, %v894
        %v976 = vpack.c.b16 %v897, %v896
        %v977 = vpack.c.b16 %v899, %v898
        %v978 = vpack.c.b16 %v901, %v900
        %v979 = vpack.c.b16 %v903, %v902
        %v980 = vpack.c.b16 %v905, %v904
        %v981 = vpack.c.b16 %v907, %v906
        %v982 = vpack.c.b16 %v909, %v908
        %v983 = vpack.c.b16 %v911, %v910
        %v984 = vpack.c.b16 %v913, %v912
        %v985 = vpack.c.b16 %v915, %v914
        %v986 = vpack.c.b16 %v917, %v916
        %v987 = vpack.c.b16 %v919, %v918
        %v988 = vpack.c.b16 %v921, %v920
        %v989 = vpack.c.b16 %v923, %v922
        %v990 = vpack.c.b16 %v925, %v924
        %v991 = vpack.c.b16 %v927, %v926
        %v992 = vpack.c.b16 %v929, %v928
        %v993 = vpack.c.b16 %v931, %v930
        %v994 = vpack.c.b16 %v933, %v932
        %v995 = vpack.c.b16 %v935, %v934
        %v996 = vpack.c.b16 %v937, %v936
        %v997 = vpack.c.b16 %v939, %v938
        %v998 = vpack.c.b16 %v941, %v940
        %v999 = vpack.c.b16 %v943, %v942
        %v1000 = vpack.c.b16 %v945, %v944
        %v1001 = vpack.c.b16 %v947, %v946
        %v1002 = vpack.c.b16 %v949, %v948
        %v1003 = vpack.c.b16 %v951, %v950
        %v1014 = vunpack.c.l.b16 %v734
        %v1015 = vunpack.c.l.b16 %v735
        %v1016 = vunpack.c.l.b16 %v736
        %v1017 = vunpack.c.l.b16 %v737
        %v1018 = vunpack.c.l.b16 %v738
        %v1019 = vunpack.c.l.b16 %v739
        %v1020 = vunpack.c.l.b16 %v740
        %v1021 = vunpack.c.l.b16 %v741
        %v1022 = vunpack.c.l.b16 %v742
        %v1023 = vunpack.c.l.b16 %v743
        %v1024 = vpack.c.b16 %v1015, %v1014
        %v1025 = vpack.c.b16 %v1017, %v1016
        %v1026 = vpack.c.b16 %v1019, %v1018
        %v1027 = vpack.c.b16 %v1021, %v1020
        %v1028 = vpack.c.b16 %v1023, %v1022
        %vm1034 = vcmask 654336
        %v1036 = vsel %vm1034, %v952, 0
        %v1039 = vsel %vm1034, %v953, 0
        %v1042 = vsel %vm1034, %v954, 0
        %v1045 = vsel %vm1034, %v955, 0
        %v1048 = vsel %vm1034, %v956, 0
        %v1051 = vsel %vm1034, %v957, 0
        %v1054 = vsel %vm1034, %v958, 0
        %v1057 = vsel %vm1034, %v959, 0
        %v1060 = vsel %vm1034, %v960, 0
        %v1063 = vsel %vm1034, %v961, 0
        %v1066 = vsel %vm1034, %v962, 0
        %v1069 = vsel %vm1034, %v963, 0
        %v1072 = vsel %vm1034, %v964, 0
        %v1075 = vsel %vm1034, %v965, 0
        %v1078 = vsel %vm1034, %v966, 0
        %v1081 = vsel %vm1034, %v967, 0
        %v1084 = vsel %vm1034, %v968, 0
        %v1087 = vsel %vm1034, %v969, 0
        %v1090 = vsel %vm1034, %v970, 0
        %v1093 = vsel %vm1034, %v971, 0
        %v1096 = vsel %vm1034, %v972, 0
        %v1099 = vsel %vm1034, %v973, 0
        %v1102 = vsel %vm1034, %v974, 0
        %v1105 = vsel %vm1034, %v975, 0
        %v1108 = vsel %vm1034, %v976, 0
        %v1111 = vsel %vm1034, %v977, 0
        %v1114 = vsel %vm1034, %v978, 0
        %v1117 = vsel %vm1034, %v979, 0
        %v1120 = vsel %vm1034, %v980, 0
        %v1123 = vsel %vm1034, %v981, 0
        %v1126 = vsel %vm1034, %v982, 0
        %v1129 = vsel %vm1034, %v983, 0
        %v1132 = vsel %vm1034, %v984, 0
        %v1135 = vsel %vm1034, %v985, 0
        %v1138 = vsel %vm1034, %v986, 0
        %v1141 = vsel %vm1034, %v987, 0
        %v1144 = vsel %vm1034, %v988, 0
        %v1147 = vsel %vm1034, %v989, 0
        %v1150 = vsel %vm1034, %v990, 0
        %v1153 = vsel %vm1034, %v991, 0
        %v1156 = vsel %vm1034, %v992, 0
        %v1159 = vsel %vm1034, %v993, 0
        %v1162 = vsel %vm1034, %v994, 0
        %v1165 = vsel %vm1034, %v995, 0
        %v1168 = vsel %vm1034, %v996, 0
        %v1171 = vsel %vm1034, %v997, 0
        %v1174 = vsel %vm1034, %v998, 0
        %v1177 = vsel %vm1034, %v999, 0
        %v1180 = vsel %vm1034, %v1000, 0
        %v1183 = vsel %vm1034, %v1001, 0
        %v1186 = vsel %vm1034, %v1002, 0
        %v1189 = vsel %vm1034, %v1003, 0
        %1191 = vmatprep.subr.bf16.mxu0 0
        %1192 = vmatpush1.bf16.msra.mxu0 0
        %1193 = vmatprep.subr.bf16.mxu0 0
        %1194 = vmatpush1.bf16.msra.mxu0 0
        %1195 = vmatprep.subr.bf16.mxu0 0
        %1196 = vmatpush1.bf16.msra.mxu0 0
        %1197 = vmatprep.subr.bf16.mxu0 0
        %1198 = vmatpush1.bf16.msra.mxu0 %v1028
        %1199 = vmatprep.subr.bf16.mxu0 0
        %1200 = vmatpush1.bf16.msra.mxu0 %v1027
        %1201 = vmatprep.subr.bf16.mxu0 0
        %1202 = vmatpush1.bf16.msra.mxu0 %v1026
        %1203 = vmatprep.subr.bf16.mxu0 0
        %1204 = vmatpush1.bf16.msra.mxu0 %v1025
        %1205 = vmatprep.subr.bf16.mxu0 0
        %1206 = vmatpush1.bf16.msra.mxu0 %v1024
        %1207 = vmatprep.subr.bf16.mxu0 0
        %1208 = vmatpush2.bf16.msra.mxu0 0
        %1209 = vmatprep.subr.bf16.mxu0 0
        %1210 = vmatpush2.bf16.msra.mxu0 0
        %1211 = vmatprep.subr.bf16.mxu0 0
        %1212 = vmatpush2.bf16.msra.mxu0 0
        %1213 = vmatprep.subr.bf16.mxu0 0
        %1214 = vmatpush2.bf16.msra.mxu0 0
        %1215 = vmatprep.subr.bf16.mxu0 0
        %1216 = vmatpush2.bf16.msra.mxu0 0
        %1217 = vmatprep.subr.bf16.mxu0 0
        %1218 = vmatpush2.bf16.msra.mxu0 0
        %1219 = vmatprep.subr.bf16.mxu0 0
        %1220 = vmatpush2.bf16.msra.mxu0 0
        %1221 = vmatprep.subr.bf16.mxu0 0
        %1222 = vmatpush2.bf16.msra.mxu0 0
        %1223 = vmatprep.mubr.bf16.mxu0 0
        %1224 = vmatmul.mubr.bf16.gmra.mxu0 %v1036
        %v1225 = vpop.f32.mrf.mxu0
        %v1226 = vadd.f32 0.0, %v1225
        %v1227 = vpop.f32.mrf.mxu0
        %v1228 = vpop.f32.mrf.mxu0
        %v1229 = vadd.f32 0.0, %v1228
        %v1230 = vpop.f32.mrf.mxu0
        %1231 = vmatprep.mubr.bf16.mxu0 0
        %1232 = vmatmul.mubr.bf16.gmra.mxu0 %v1039
        %v1233 = vpop.f32.mrf.mxu0
        %v1234 = vadd.f32 0.0, %v1233
        %v1235 = vpop.f32.mrf.mxu0
        %v1236 = vpop.f32.mrf.mxu0
        %v1237 = vadd.f32 0.0, %v1236
        %v1238 = vpop.f32.mrf.mxu0
        %1239 = vmatprep.mubr.bf16.mxu0 0
        %1240 = vmatmul.mubr.bf16.gmra.mxu0 %v1042
        %v1241 = vpop.f32.mrf.mxu0
        %v1242 = vadd.f32 0.0, %v1241
        %v1243 = vpop.f32.mrf.mxu0
        %v1244 = vpop.f32.mrf.mxu0
        %v1245 = vadd.f32 0.0, %v1244
        %v1246 = vpop.f32.mrf.mxu0
        %1247 = vmatprep.mubr.bf16.mxu0 0
        %1248 = vmatmul.mubr.bf16.gmra.mxu0 %v1045
        %v1249 = vpop.f32.mrf.mxu0
        %v1250 = vadd.f32 0.0, %v1249
        %v1251 = vpop.f32.mrf.mxu0
        %v1252 = vpop.f32.mrf.mxu0
        %v1253 = vadd.f32 0.0, %v1252
        %v1254 = vpop.f32.mrf.mxu0
        %1255 = vmatprep.mubr.bf16.mxu0 0
        %1256 = vmatmul.mubr.bf16.gmra.mxu0 %v1048
        %v1257 = vpop.f32.mrf.mxu0
        %v1258 = vadd.f32 0.0, %v1257
        %v1259 = vpop.f32.mrf.mxu0
        %v1260 = vpop.f32.mrf.mxu0
        %v1261 = vadd.f32 0.0, %v1260
        %v1262 = vpop.f32.mrf.mxu0
        %1263 = vmatprep.mubr.bf16.mxu0 0
        %1264 = vmatmul.mubr.bf16.gmra.mxu0 %v1051
        %v1265 = vpop.f32.mrf.mxu0
        %v1266 = vadd.f32 0.0, %v1265
        %v1267 = vpop.f32.mrf.mxu0
        %v1268 = vpop.f32.mrf.mxu0
        %v1269 = vadd.f32 0.0, %v1268
        %v1270 = vpop.f32.mrf.mxu0
        %1271 = vmatprep.mubr.bf16.mxu0 0
        %1272 = vmatmul.mubr.bf16.gmra.mxu0 %v1054
        %v1273 = vpop.f32.mrf.mxu0
        %v1274 = vadd.f32 0.0, %v1273
        %v1275 = vpop.f32.mrf.mxu0
        %v1276 = vpop.f32.mrf.mxu0
        %v1277 = vadd.f32 0.0, %v1276
        %v1278 = vpop.f32.mrf.mxu0
        %1279 = vmatprep.mubr.bf16.mxu0 0
        %1280 = vmatmul.mubr.bf16.gmra.mxu0 %v1057
        %v1281 = vpop.f32.mrf.mxu0
        %v1282 = vadd.f32 0.0, %v1281
        %v1283 = vpop.f32.mrf.mxu0
        %v1284 = vpop.f32.mrf.mxu0
        %v1285 = vadd.f32 0.0, %v1284
        %v1286 = vpop.f32.mrf.mxu0
        %1287 = vmatprep.mubr.bf16.mxu0 0
        %1288 = vmatmul.mubr.bf16.gmra.mxu0 %v1060
        %v1289 = vpop.f32.mrf.mxu0
        %v1290 = vadd.f32 0.0, %v1289
        %v1291 = vpop.f32.mrf.mxu0
        %v1292 = vpop.f32.mrf.mxu0
        %v1293 = vadd.f32 0.0, %v1292
        %v1294 = vpop.f32.mrf.mxu0
        %1295 = vmatprep.mubr.bf16.mxu0 0
        %1296 = vmatmul.mubr.bf16.gmra.mxu0 %v1063
        %v1297 = vpop.f32.mrf.mxu0
        %v1298 = vadd.f32 0.0, %v1297
        %v1299 = vpop.f32.mrf.mxu0
        %v1300 = vpop.f32.mrf.mxu0
        %v1301 = vadd.f32 0.0, %v1300
        %v1302 = vpop.f32.mrf.mxu0
        %1303 = vmatprep.mubr.bf16.mxu0 0
        %1304 = vmatmul.mubr.bf16.gmra.mxu0 %v1066
        %v1305 = vpop.f32.mrf.mxu0
        %v1306 = vadd.f32 0.0, %v1305
        %v1307 = vpop.f32.mrf.mxu0
        %v1308 = vpop.f32.mrf.mxu0
        %v1309 = vadd.f32 0.0, %v1308
        %v1310 = vpop.f32.mrf.mxu0
        %1311 = vmatprep.mubr.bf16.mxu0 0
        %1312 = vmatmul.mubr.bf16.gmra.mxu0 %v1069
        %v1313 = vpop.f32.mrf.mxu0
        %v1314 = vadd.f32 0.0, %v1313
        %v1315 = vpop.f32.mrf.mxu0
        %v1316 = vpop.f32.mrf.mxu0
        %v1317 = vadd.f32 0.0, %v1316
        %v1318 = vpop.f32.mrf.mxu0
        %1319 = vmatprep.mubr.bf16.mxu0 0
        %1320 = vmatmul.mubr.bf16.gmra.mxu0 %v1072
        %v1321 = vpop.f32.mrf.mxu0
        %v1322 = vadd.f32 0.0, %v1321
        %v1323 = vpop.f32.mrf.mxu0
        %v1324 = vpop.f32.mrf.mxu0
        %v1325 = vadd.f32 0.0, %v1324
        %v1326 = vpop.f32.mrf.mxu0
        %1327 = vmatprep.mubr.bf16.mxu0 0
        %1328 = vmatmul.mubr.bf16.gmra.mxu0 %v1075
        %v1329 = vpop.f32.mrf.mxu0
        %v1330 = vadd.f32 0.0, %v1329
        %v1331 = vpop.f32.mrf.mxu0
        %v1332 = vpop.f32.mrf.mxu0
        %v1333 = vadd.f32 0.0, %v1332
        %v1334 = vpop.f32.mrf.mxu0
        %1335 = vmatprep.mubr.bf16.mxu0 0
        %1336 = vmatmul.mubr.bf16.gmra.mxu0 %v1078
        %v1337 = vpop.f32.mrf.mxu0
        %v1338 = vadd.f32 0.0, %v1337
        %v1339 = vpop.f32.mrf.mxu0
        %v1340 = vpop.f32.mrf.mxu0
        %v1341 = vadd.f32 0.0, %v1340
        %v1342 = vpop.f32.mrf.mxu0
        %1343 = vmatprep.mubr.bf16.mxu0 0
        %1344 = vmatmul.mubr.bf16.gmra.mxu0 %v1081
        %v1345 = vpop.f32.mrf.mxu0
        %v1346 = vadd.f32 0.0, %v1345
        %v1347 = vpop.f32.mrf.mxu0
        %v1348 = vpop.f32.mrf.mxu0
        %v1349 = vadd.f32 0.0, %v1348
        %v1350 = vpop.f32.mrf.mxu0
        %1351 = vmatprep.mubr.bf16.mxu0 0
        %1352 = vmatmul.mubr.bf16.gmra.mxu0 %v1084
        %v1353 = vpop.f32.mrf.mxu0
        %v1354 = vadd.f32 0.0, %v1353
        %v1355 = vpop.f32.mrf.mxu0
        %v1356 = vpop.f32.mrf.mxu0
        %v1357 = vadd.f32 0.0, %v1356
        %v1358 = vpop.f32.mrf.mxu0
        %1359 = vmatprep.mubr.bf16.mxu0 0
        %1360 = vmatmul.mubr.bf16.gmra.mxu0 %v1087
        %v1361 = vpop.f32.mrf.mxu0
        %v1362 = vadd.f32 0.0, %v1361
        %v1363 = vpop.f32.mrf.mxu0
        %v1364 = vpop.f32.mrf.mxu0
        %v1365 = vadd.f32 0.0, %v1364
        %v1366 = vpop.f32.mrf.mxu0
        %1367 = vmatprep.mubr.bf16.mxu0 0
        %1368 = vmatmul.mubr.bf16.gmra.mxu0 %v1090
        %v1369 = vpop.f32.mrf.mxu0
        %v1370 = vadd.f32 0.0, %v1369
        %v1371 = vpop.f32.mrf.mxu0
        %v1372 = vpop.f32.mrf.mxu0
        %v1373 = vadd.f32 0.0, %v1372
        %v1374 = vpop.f32.mrf.mxu0
        %1375 = vmatprep.mubr.bf16.mxu0 0
        %1376 = vmatmul.mubr.bf16.gmra.mxu0 %v1093
        %v1377 = vpop.f32.mrf.mxu0
        %v1378 = vadd.f32 0.0, %v1377
        %v1379 = vpop.f32.mrf.mxu0
        %v1380 = vpop.f32.mrf.mxu0
        %v1381 = vadd.f32 0.0, %v1380
        %v1382 = vpop.f32.mrf.mxu0
        %1383 = vmatprep.mubr.bf16.mxu0 0
        %1384 = vmatmul.mubr.bf16.gmra.mxu0 %v1096
        %v1385 = vpop.f32.mrf.mxu0
        %v1386 = vadd.f32 0.0, %v1385
        %v1387 = vpop.f32.mrf.mxu0
        %v1388 = vpop.f32.mrf.mxu0
        %v1389 = vadd.f32 0.0, %v1388
        %v1390 = vpop.f32.mrf.mxu0
        %1391 = vmatprep.mubr.bf16.mxu0 0
        %1392 = vmatmul.mubr.bf16.gmra.mxu0 %v1099
        %v1393 = vpop.f32.mrf.mxu0
        %v1394 = vadd.f32 0.0, %v1393
        %v1395 = vpop.f32.mrf.mxu0
        %v1396 = vpop.f32.mrf.mxu0
        %v1397 = vadd.f32 0.0, %v1396
        %v1398 = vpop.f32.mrf.mxu0
        %1399 = vmatprep.mubr.bf16.mxu0 0
        %1400 = vmatmul.mubr.bf16.gmra.mxu0 %v1102
        %v1401 = vpop.f32.mrf.mxu0
        %v1402 = vadd.f32 0.0, %v1401
        %v1403 = vpop.f32.mrf.mxu0
        %v1404 = vpop.f32.mrf.mxu0
        %v1405 = vadd.f32 0.0, %v1404
        %v1406 = vpop.f32.mrf.mxu0
        %1407 = vmatprep.mubr.bf16.mxu0 0
        %1408 = vmatmul.mubr.bf16.gmra.mxu0 %v1105
        %v1409 = vpop.f32.mrf.mxu0
        %v1410 = vadd.f32 0.0, %v1409
        %v1411 = vpop.f32.mrf.mxu0
        %v1412 = vpop.f32.mrf.mxu0
        %v1413 = vadd.f32 0.0, %v1412
        %v1414 = vpop.f32.mrf.mxu0
        %1415 = vmatprep.mubr.bf16.mxu0 0
        %1416 = vmatmul.mubr.bf16.gmra.mxu0 %v1108
        %v1417 = vpop.f32.mrf.mxu0
        %v1418 = vadd.f32 0.0, %v1417
        %v1419 = vpop.f32.mrf.mxu0
        %v1420 = vpop.f32.mrf.mxu0
        %v1421 = vadd.f32 0.0, %v1420
        %v1422 = vpop.f32.mrf.mxu0
        %1423 = vmatprep.mubr.bf16.mxu0 0
        %1424 = vmatmul.mubr.bf16.gmra.mxu0 %v1111
        %v1425 = vpop.f32.mrf.mxu0
        %v1426 = vadd.f32 0.0, %v1425
        %v1427 = vpop.f32.mrf.mxu0
        %v1428 = vpop.f32.mrf.mxu0
        %v1429 = vadd.f32 0.0, %v1428
        %v1430 = vpop.f32.mrf.mxu0
        %1431 = vmatprep.mubr.bf16.mxu0 0
        %1432 = vmatmul.mubr.bf16.gmra.mxu0 %v1114
        %v1433 = vpop.f32.mrf.mxu0
        %v1434 = vadd.f32 0.0, %v1433
        %v1435 = vpop.f32.mrf.mxu0
        %v1436 = vpop.f32.mrf.mxu0
        %v1437 = vadd.f32 0.0, %v1436
        %v1438 = vpop.f32.mrf.mxu0
        %1439 = vmatprep.mubr.bf16.mxu0 0
        %1440 = vmatmul.mubr.bf16.gmra.mxu0 %v1117
        %v1441 = vpop.f32.mrf.mxu0
        %v1442 = vadd.f32 0.0, %v1441
        %v1443 = vpop.f32.mrf.mxu0
        %v1444 = vpop.f32.mrf.mxu0
        %v1445 = vadd.f32 0.0, %v1444
        %v1446 = vpop.f32.mrf.mxu0
        %1447 = vmatprep.mubr.bf16.mxu0 0
        %1448 = vmatmul.mubr.bf16.gmra.mxu0 %v1120
        %v1449 = vpop.f32.mrf.mxu0
        %v1450 = vadd.f32 0.0, %v1449
        %v1451 = vpop.f32.mrf.mxu0
        %v1452 = vpop.f32.mrf.mxu0
        %v1453 = vadd.f32 0.0, %v1452
        %v1454 = vpop.f32.mrf.mxu0
        %1455 = vmatprep.mubr.bf16.mxu0 0
        %1456 = vmatmul.mubr.bf16.gmra.mxu0 %v1123
        %v1457 = vpop.f32.mrf.mxu0
        %v1458 = vadd.f32 0.0, %v1457
        %v1459 = vpop.f32.mrf.mxu0
        %v1460 = vpop.f32.mrf.mxu0
        %v1461 = vadd.f32 0.0, %v1460
        %v1462 = vpop.f32.mrf.mxu0
        %1463 = vmatprep.mubr.bf16.mxu0 0
        %1464 = vmatmul.mubr.bf16.gmra.mxu0 %v1126
        %v1465 = vpop.f32.mrf.mxu0
        %v1466 = vadd.f32 0.0, %v1465
        %v1467 = vpop.f32.mrf.mxu0
        %v1468 = vpop.f32.mrf.mxu0
        %v1469 = vadd.f32 0.0, %v1468
        %v1470 = vpop.f32.mrf.mxu0
        %1471 = vmatprep.mubr.bf16.mxu0 0
        %1472 = vmatmul.mubr.bf16.gmra.mxu0 %v1129
        %v1473 = vpop.f32.mrf.mxu0
        %v1474 = vadd.f32 0.0, %v1473
        %v1475 = vpop.f32.mrf.mxu0
        %v1476 = vpop.f32.mrf.mxu0
        %v1477 = vadd.f32 0.0, %v1476
        %v1478 = vpop.f32.mrf.mxu0
        %1479 = vmatprep.mubr.bf16.mxu0 0
        %1480 = vmatmul.mubr.bf16.gmra.mxu0 %v1132
        %v1481 = vpop.f32.mrf.mxu0
        %v1482 = vadd.f32 0.0, %v1481
        %v1483 = vpop.f32.mrf.mxu0
        %v1484 = vpop.f32.mrf.mxu0
        %v1485 = vadd.f32 0.0, %v1484
        %v1486 = vpop.f32.mrf.mxu0
        %1487 = vmatprep.mubr.bf16.mxu0 0
        %1488 = vmatmul.mubr.bf16.gmra.mxu0 %v1135
        %v1489 = vpop.f32.mrf.mxu0
        %v1490 = vadd.f32 0.0, %v1489
        %v1491 = vpop.f32.mrf.mxu0
        %v1492 = vpop.f32.mrf.mxu0
        %v1493 = vadd.f32 0.0, %v1492
        %v1494 = vpop.f32.mrf.mxu0
        %1495 = vmatprep.mubr.bf16.mxu0 0
        %1496 = vmatmul.mubr.bf16.gmra.mxu0 %v1138
        %v1497 = vpop.f32.mrf.mxu0
        %v1498 = vadd.f32 0.0, %v1497
        %v1499 = vpop.f32.mrf.mxu0
        %v1500 = vpop.f32.mrf.mxu0
        %v1501 = vadd.f32 0.0, %v1500
        %v1502 = vpop.f32.mrf.mxu0
        %1503 = vmatprep.mubr.bf16.mxu0 0
        %1504 = vmatmul.mubr.bf16.gmra.mxu0 %v1141
        %v1505 = vpop.f32.mrf.mxu0
        %v1506 = vadd.f32 0.0, %v1505
        %v1507 = vpop.f32.mrf.mxu0
        %v1508 = vpop.f32.mrf.mxu0
        %v1509 = vadd.f32 0.0, %v1508
        %v1510 = vpop.f32.mrf.mxu0
        %1511 = vmatprep.mubr.bf16.mxu0 0
        %1512 = vmatmul.mubr.bf16.gmra.mxu0 %v1144
        %v1513 = vpop.f32.mrf.mxu0
        %v1514 = vadd.f32 0.0, %v1513
        %v1515 = vpop.f32.mrf.mxu0
        %v1516 = vpop.f32.mrf.mxu0
        %v1517 = vadd.f32 0.0, %v1516
        %v1518 = vpop.f32.mrf.mxu0
        %1519 = vmatprep.mubr.bf16.mxu0 0
        %1520 = vmatmul.mubr.bf16.gmra.mxu0 %v1147
        %v1521 = vpop.f32.mrf.mxu0
        %v1522 = vadd.f32 0.0, %v1521
        %v1523 = vpop.f32.mrf.mxu0
        %v1524 = vpop.f32.mrf.mxu0
        %v1525 = vadd.f32 0.0, %v1524
        %v1526 = vpop.f32.mrf.mxu0
        %1527 = vmatprep.mubr.bf16.mxu0 0
        %1528 = vmatmul.mubr.bf16.gmra.mxu0 %v1150
        %v1529 = vpop.f32.mrf.mxu0
        %v1530 = vadd.f32 0.0, %v1529
        %v1531 = vpop.f32.mrf.mxu0
        %v1532 = vpop.f32.mrf.mxu0
        %v1533 = vadd.f32 0.0, %v1532
        %v1534 = vpop.f32.mrf.mxu0
        %1535 = vmatprep.mubr.bf16.mxu0 0
        %1536 = vmatmul.mubr.bf16.gmra.mxu0 %v1153
        %v1537 = vpop.f32.mrf.mxu0
        %v1538 = vadd.f32 0.0, %v1537
        %v1539 = vpop.f32.mrf.mxu0
        %v1540 = vpop.f32.mrf.mxu0
        %v1541 = vadd.f32 0.0, %v1540
        %v1542 = vpop.f32.mrf.mxu0
        %1543 = vmatprep.mubr.bf16.mxu0 0
        %1544 = vmatmul.mubr.bf16.gmra.mxu0 %v1156
        %v1545 = vpop.f32.mrf.mxu0
        %v1546 = vadd.f32 0.0, %v1545
        %v1547 = vpop.f32.mrf.mxu0
        %v1548 = vpop.f32.mrf.mxu0
        %v1549 = vadd.f32 0.0, %v1548
        %v1550 = vpop.f32.mrf.mxu0
        %1551 = vmatprep.mubr.bf16.mxu0 0
        %1552 = vmatmul.mubr.bf16.gmra.mxu0 %v1159
        %v1553 = vpop.f32.mrf.mxu0
        %v1554 = vadd.f32 0.0, %v1553
        %v1555 = vpop.f32.mrf.mxu0
        %v1556 = vpop.f32.mrf.mxu0
        %v1557 = vadd.f32 0.0, %v1556
        %v1558 = vpop.f32.mrf.mxu0
        %1559 = vmatprep.mubr.bf16.mxu0 0
        %1560 = vmatmul.mubr.bf16.gmra.mxu0 %v1162
        %v1561 = vpop.f32.mrf.mxu0
        %v1562 = vadd.f32 0.0, %v1561
        %v1563 = vpop.f32.mrf.mxu0
        %v1564 = vpop.f32.mrf.mxu0
        %v1565 = vadd.f32 0.0, %v1564
        %v1566 = vpop.f32.mrf.mxu0
        %1567 = vmatprep.mubr.bf16.mxu0 0
        %1568 = vmatmul.mubr.bf16.gmra.mxu0 %v1165
        %v1569 = vpop.f32.mrf.mxu0
        %v1570 = vadd.f32 0.0, %v1569
        %v1571 = vpop.f32.mrf.mxu0
        %v1572 = vpop.f32.mrf.mxu0
        %v1573 = vadd.f32 0.0, %v1572
        %v1574 = vpop.f32.mrf.mxu0
        %1575 = vmatprep.mubr.bf16.mxu0 0
        %1576 = vmatmul.mubr.bf16.gmra.mxu0 %v1168
        %v1577 = vpop.f32.mrf.mxu0
        %v1578 = vadd.f32 0.0, %v1577
        %v1579 = vpop.f32.mrf.mxu0
        %v1580 = vpop.f32.mrf.mxu0
        %v1581 = vadd.f32 0.0, %v1580
        %v1582 = vpop.f32.mrf.mxu0
        %1583 = vmatprep.mubr.bf16.mxu0 0
        %1584 = vmatmul.mubr.bf16.gmra.mxu0 %v1171
        %v1585 = vpop.f32.mrf.mxu0
        %v1586 = vadd.f32 0.0, %v1585
        %v1587 = vpop.f32.mrf.mxu0
        %v1588 = vpop.f32.mrf.mxu0
        %v1589 = vadd.f32 0.0, %v1588
        %v1590 = vpop.f32.mrf.mxu0
        %1591 = vmatprep.mubr.bf16.mxu0 0
        %1592 = vmatmul.mubr.bf16.gmra.mxu0 %v1174
        %v1593 = vpop.f32.mrf.mxu0
        %v1594 = vadd.f32 0.0, %v1593
        %v1595 = vpop.f32.mrf.mxu0
        %v1596 = vpop.f32.mrf.mxu0
        %v1597 = vadd.f32 0.0, %v1596
        %v1598 = vpop.f32.mrf.mxu0
        %1599 = vmatprep.mubr.bf16.mxu0 0
        %1600 = vmatmul.mubr.bf16.gmra.mxu0 %v1177
        %v1601 = vpop.f32.mrf.mxu0
        %v1602 = vadd.f32 0.0, %v1601
        %v1603 = vpop.f32.mrf.mxu0
        %v1604 = vpop.f32.mrf.mxu0
        %v1605 = vadd.f32 0.0, %v1604
        %v1606 = vpop.f32.mrf.mxu0
        %1607 = vmatprep.mubr.bf16.mxu0 0
        %1608 = vmatmul.mubr.bf16.gmra.mxu0 %v1180
        %v1609 = vpop.f32.mrf.mxu0
        %v1610 = vadd.f32 0.0, %v1609
        %v1611 = vpop.f32.mrf.mxu0
        %v1612 = vpop.f32.mrf.mxu0
        %v1613 = vadd.f32 0.0, %v1612
        %v1614 = vpop.f32.mrf.mxu0
        %1615 = vmatprep.mubr.bf16.mxu0 0
        %1616 = vmatmul.mubr.bf16.gmra.mxu0 %v1183
        %v1617 = vpop.f32.mrf.mxu0
        %v1618 = vadd.f32 0.0, %v1617
        %v1619 = vpop.f32.mrf.mxu0
        %v1620 = vpop.f32.mrf.mxu0
        %v1621 = vadd.f32 0.0, %v1620
        %v1622 = vpop.f32.mrf.mxu0
        %1623 = vmatprep.mubr.bf16.mxu0 0
        %1624 = vmatmul.mubr.bf16.gmra.mxu0 %v1186
        %v1625 = vpop.f32.mrf.mxu0
        %v1626 = vadd.f32 0.0, %v1625
        %v1627 = vpop.f32.mrf.mxu0
        %v1628 = vpop.f32.mrf.mxu0
        %v1629 = vadd.f32 0.0, %v1628
        %v1630 = vpop.f32.mrf.mxu0
        %1631 = vmatprep.mubr.bf16.mxu0 0
        %1632 = vmatmul.mubr.bf16.gmra.mxu0 %v1189
        %v1633 = vpop.f32.mrf.mxu0
        %v1634 = vadd.f32 0.0, %v1633
        %v1635 = vpop.f32.mrf.mxu0
        %v1636 = vpop.f32.mrf.mxu0
        %v1637 = vadd.f32 0.0, %v1636
        %v1638 = vpop.f32.mrf.mxu0
        %1639 = vdwg.mxu0
        %v1640 = vmax.f32 %v1226, %v1330
        %v1641 = vmax.f32 %v1229, %v1333
        %v1642 = vmax.f32 %v1234, %v1338
        %v1643 = vmax.f32 %v1237, %v1341
        %v1644 = vmax.f32 %v1242, %v1346
        %v1645 = vmax.f32 %v1245, %v1349
        %v1646 = vmax.f32 %v1250, %v1354
        %v1647 = vmax.f32 %v1253, %v1357
        %v1648 = vmax.f32 %v1258, %v1362
        %v1649 = vmax.f32 %v1261, %v1365
        %v1650 = vmax.f32 %v1266, %v1370
        %v1651 = vmax.f32 %v1269, %v1373
        %v1652 = vmax.f32 %v1274, %v1378
        %v1653 = vmax.f32 %v1277, %v1381
        %v1654 = vmax.f32 %v1282, %v1386
        %v1655 = vmax.f32 %v1285, %v1389
        %v1656 = vmax.f32 %v1290, %v1394
        %v1657 = vmax.f32 %v1293, %v1397
        %v1658 = vmax.f32 %v1298, %v1402
        %v1659 = vmax.f32 %v1301, %v1405
        %v1660 = vmax.f32 %v1306, %v1410
        %v1661 = vmax.f32 %v1309, %v1413
        %v1662 = vmax.f32 %v1314, %v1418
        %v1663 = vmax.f32 %v1317, %v1421
        %v1664 = vmax.f32 %v1322, %v1426
        %v1665 = vmax.f32 %v1325, %v1429
        %v1666 = vmax.f32 %v1434, %v1538
        %v1667 = vmax.f32 %v1437, %v1541
        %v1668 = vmax.f32 %v1442, %v1546
        %v1669 = vmax.f32 %v1445, %v1549
        %v1670 = vmax.f32 %v1450, %v1554
        %v1671 = vmax.f32 %v1453, %v1557
        %v1672 = vmax.f32 %v1458, %v1562
        %v1673 = vmax.f32 %v1461, %v1565
        %v1674 = vmax.f32 %v1466, %v1570
        %v1675 = vmax.f32 %v1469, %v1573
        %v1676 = vmax.f32 %v1474, %v1578
        %v1677 = vmax.f32 %v1477, %v1581
        %v1678 = vmax.f32 %v1482, %v1586
        %v1679 = vmax.f32 %v1485, %v1589
        %v1680 = vmax.f32 %v1490, %v1594
        %v1681 = vmax.f32 %v1493, %v1597
        %v1682 = vmax.f32 %v1498, %v1602
        %v1683 = vmax.f32 %v1501, %v1605
        %v1684 = vmax.f32 %v1506, %v1610
        %v1685 = vmax.f32 %v1509, %v1613
        %v1686 = vmax.f32 %v1514, %v1618
        %v1687 = vmax.f32 %v1517, %v1621
        %v1688 = vmax.f32 %v1522, %v1626
        %v1689 = vmax.f32 %v1525, %v1629
        %v1690 = vmax.f32 %v1530, %v1634
        %v1691 = vmax.f32 %v1533, %v1637
        %v1692 = vmax.f32 %v1640, %v1666
        %v1693 = vmax.f32 %v1641, %v1667
        %v1694 = vmax.f32 %v1642, %v1668
        %v1695 = vmax.f32 %v1643, %v1669
        %v1696 = vmax.f32 %v1644, %v1670
        %v1697 = vmax.f32 %v1645, %v1671
        %v1698 = vmax.f32 %v1646, %v1672
        %v1699 = vmax.f32 %v1647, %v1673
        %v1700 = vmax.f32 %v1648, %v1674
        %v1701 = vmax.f32 %v1649, %v1675
        %v1702 = vmax.f32 %v1650, %v1676
        %v1703 = vmax.f32 %v1651, %v1677
        %v1704 = vmax.f32 %v1652, %v1678
        %v1705 = vmax.f32 %v1653, %v1679
        %v1706 = vmax.f32 %v1654, %v1680
        %v1707 = vmax.f32 %v1655, %v1681
        %v1708 = vmax.f32 %v1656, %v1682
        %v1709 = vmax.f32 %v1657, %v1683
        %v1710 = vmax.f32 %v1658, %v1684
        %v1711 = vmax.f32 %v1659, %v1685
        %v1712 = vmax.f32 %v1660, %v1686
        %v1713 = vmax.f32 %v1661, %v1687
        %v1714 = vmax.f32 %v1662, %v1688
        %v1715 = vmax.f32 %v1663, %v1689
        %v1716 = vmax.f32 %v1664, %v1690
        %v1717 = vmax.f32 %v1665, %v1691
        %v1718 = vld [vmem:[%s2] sm:$0x1]
        %v1720 = vlaneseq
        %v1721 = vshrl.u32 %v1720, 7
        %v1722 = vsub.s32 0, %v1721
        %v1723 = vrot.slane %v1718, %v1722
        %v1725 = vadd.f32 %v1692, %v1723
        %v1726 = vadd.f32 %v1693, %v1723
        %v1727 = vadd.f32 %v1694, %v1723
        %v1728 = vadd.f32 %v1695, %v1723
        %v1729 = vadd.f32 %v1696, %v1723
        %v1730 = vadd.f32 %v1697, %v1723
        %v1731 = vadd.f32 %v1698, %v1723
        %v1732 = vadd.f32 %v1699, %v1723
        %v1733 = vadd.f32 %v1700, %v1723
        %v1734 = vadd.f32 %v1701, %v1723
        %v1735 = vadd.f32 %v1702, %v1723
        %v1736 = vadd.f32 %v1703, %v1723
        %v1737 = vadd.f32 %v1704, %v1723
        %v1738 = vadd.f32 %v1705, %v1723
        %v1739 = vadd.f32 %v1706, %v1723
        %v1740 = vadd.f32 %v1707, %v1723
        %v1741 = vadd.f32 %v1708, %v1723
        %v1742 = vadd.f32 %v1709, %v1723
        %v1743 = vadd.f32 %v1710, %v1723
        %v1744 = vadd.f32 %v1711, %v1723
        %v1745 = vadd.f32 %v1712, %v1723
        %v1746 = vadd.f32 %v1713, %v1723
        %v1747 = vadd.f32 %v1714, %v1723
        %v1748 = vadd.f32 %v1715, %v1723
        %v1749 = vadd.f32 %v1716, %v1723
        %v1750 = vadd.f32 %v1717, %v1723
        %v1751 = vmax.f32 %v1725, 0.0
        %v1752 = vmax.f32 %v1726, 0.0
        %v1753 = vmax.f32 %v1727, 0.0
        %v1754 = vmax.f32 %v1728, 0.0
        %v1755 = vmax.f32 %v1729, 0.0
        %v1756 = vmax.f32 %v1730, 0.0
        %v1757 = vmax.f32 %v1731, 0.0
        %v1758 = vmax.f32 %v1732, 0.0
        %v1759 = vmax.f32 %v1733, 0.0
        %v1760 = vmax.f32 %v1734, 0.0
        %v1761 = vmax.f32 %v1735, 0.0
        %v1762 = vmax.f32 %v1736, 0.0
        %v1763 = vmax.f32 %v1737, 0.0
        %v1764 = vmax.f32 %v1738, 0.0
        %v1765 = vmax.f32 %v1739, 0.0
        %v1766 = vmax.f32 %v1740, 0.0
        %v1767 = vmax.f32 %v1741, 0.0
        %v1768 = vmax.f32 %v1742, 0.0
        %v1769 = vmax.f32 %v1743, 0.0
        %v1770 = vmax.f32 %v1744, 0.0
        %v1771 = vmax.f32 %v1745, 0.0
        %v1772 = vmax.f32 %v1746, 0.0
        %v1773 = vmax.f32 %v1747, 0.0
        %v1774 = vmax.f32 %v1748, 0.0
        %v1775 = vmax.f32 %v1749, 0.0
        %v1776 = vmax.f32 %v1750, 0.0
        %1777 = vst [vmem:[%s627] sm:$0xff] %v1751
        %1778 = vst [vmem:[%s627 + $0x8] sm:$0xff] %v1752
        %1779 = vst [vmem:[%s627 + $0x10] sm:$0xff] %v1753
        %1780 = vst [vmem:[%s627 + $0x18] sm:$0xff] %v1754
        %1781 = vst [vmem:[%s627 + $0x20] sm:$0xff] %v1755
        %1782 = vst [vmem:[%s627 + $0x28] sm:$0xff] %v1756
        %1783 = vst [vmem:[%s627 + $0x30] sm:$0xff] %v1757
        %1784 = vst [vmem:[%s627 + $0x38] sm:$0xff] %v1758
        %1785 = vst [vmem:[%s627 + $0x40] sm:$0xff] %v1759
        %1786 = vst [vmem:[%s627 + $0x48] sm:$0xff] %v1760
        %1787 = vst [vmem:[%s627 + $0x50] sm:$0xff] %v1761
        %1788 = vst [vmem:[%s627 + $0x58] sm:$0xff] %v1762
        %1789 = vst [vmem:[%s627 + $0x60] sm:$0xff] %v1763
        %1790 = vst [vmem:[%s627 + $0x68] sm:$0xff] %v1764
        %1791 = vst [vmem:[%s627 + $0x70] sm:$0xff] %v1765
        %1792 = vst [vmem:[%s627 + $0x78] sm:$0xff] %v1766
        %1793 = vst [vmem:[%s627 + $0x80] sm:$0xff] %v1767
        %1794 = vst [vmem:[%s627 + $0x88] sm:$0xff] %v1768
        %1795 = vst [vmem:[%s627 + $0x90] sm:$0xff] %v1769
        %1796 = vst [vmem:[%s627 + $0x98] sm:$0xff] %v1770
        %1797 = vst [vmem:[%s627 + $0xa0] sm:$0xff] %v1771
        %1798 = vst [vmem:[%s627 + $0xa8] sm:$0xff] %v1772
        %1799 = vst [vmem:[%s627 + $0xb0] sm:$0xff] %v1773
        %1800 = vst [vmem:[%s627 + $0xb8] sm:$0xff] %v1774
        %1801 = vst [vmem:[%s627 + $0xc0] sm:$0xff] %v1775
        %1802 = vst [vmem:[%s627 + $0xc8] sm:$0xff] %v1776
        %s1803 = smul.u32 26, %s14
        %p1804 = scmp.lt.s32.totalorder %s1803, 51
        %s1805 = scalar_select %p1804, %s1803, 51
        %s1806 = smul.addr %s1805, 8
        %s1807 = scalar_lea.vmem %s3, %s1806
        // Predicated region
        $region74: #{cnn_cifar10_forward.3} parent=68 // pred_check
          %p1808 = pneg %p100
        $region75: #{cnn_cifar10_forward.3} parent=68 // pred_check_branch
          %1810 = sbr.rel (%p1808) target = $region77
        $region76: #{cnn_cifar10_forward.3} parent=68 // pred_region
          %s1811 = smul.u32 26, %s14
        $region77: #{cnn_cifar10_forward.3} parent=68 // pred_fallthru
          _
      $region69: #{cnn_cifar10_forward.3} parent=5 // pred_fallthru
        _
      %p1812 = scmp.le.s32.totalorder 2, %s9
      // Predicated region
      $region78: #{cnn_cifar10_forward.3} parent=5 // pred_check
        %p1813 = pneg %p1812
      $region79: #{cnn_cifar10_forward.3} parent=5 // pred_check_branch
        %1815 = sbr.rel (%p1813) target = $region81
      $region80: #{cnn_cifar10_forward.3} parent=5 // pred_region
        %s1816 = ssub.s32 %s9, 2
        // Predicated region
        $region82: #{cnn_cifar10_forward.3} parent=80 // pred_check
          %p1817 = pneg %p106
        $region83: #{cnn_cifar10_forward.3} parent=80 // pred_check_branch
          %1819 = sbr.rel (%p1817) target = $region85
        $region84: #{cnn_cifar10_forward.3} parent=80 // pred_region
          %s1820 = smul.u32 26, %s15
          %p1821 = scmp.lt.s32.totalorder %s1820, 51
          %s1822 = scalar_select %p1821, %s1820, 51
          %s1823 = smul.addr %s1822, 8
          %s1824 = scalar_lea.vmem %s3, %s1823
        $region85: #{cnn_cifar10_forward.3} parent=80 // pred_fallthru
          _
      $region81: #{cnn_cifar10_forward.3} parent=5 // pred_fallthru
        _
    $region6: #{cnn_cifar10_forward.3} parent=1 // loop_footer
      %s13 = sadd.s32 1, %s9
    $region7: #{cnn_cifar10_forward.3} parent=1 // loop_footer_branch
      %8 = sbr.rel target = $region3
    $region8: #{cnn_cifar10_forward.3} parent=1 // loop_exit
      _

// kernel: cnn_cifar10_forward.4
$region0: #{cnn_cifar10_forward.4}
  #allocation0 [shape = 'u32[]', space=smem, size = 0x4, offset = 0x4, fixed_abs, tag = 'smem constant byte address 0x4 - core index']
  #allocation1 [shape = 'u32[144,128]{1,0:T(1,128)}', space=vmem, size = 0x12000, scoped, tag = 'internal scratch']
  %s0 = inlined_call_operand.vmem [shape: bf16[4,64,160], index: 0, kind: input, shape index: {}]
  %s1 = inlined_call_operand.vmem [shape: bf16[160,128], index: 1, kind: input, shape index: {}]
  %s2 = inlined_call_operand.vmem [shape: f32[1,128], index: 2, kind: input, shape index: {}]
  %s3 = inlined_call_operand.vmem [shape: f32[64,128], index: 3, kind: output, shape index: {}]
  %s4 = sld [smem:[#allocation0]]
  $region83: #{cnn_cifar10_forward.4} parent=0
    _
  %s6 = ssub.s32 1, %s4
  %s7 = scalar_select 0, %s6, %s4
  $region1: #{cnn_cifar10_forward.4} parent=0
    #allocation2 [shape = 'u8[131072]{0}', space=vmem, size = 0x20000, scoped, tag = 'input window, operand 0']
    loop: start=0, step=1, limit=4
    $region2: #{cnn_cifar10_forward.4} parent=1 // loop_pre_header
      _
    $region3: #{cnn_cifar10_forward.4} parent=1 // loop_header
      %s9 = sphi 0, %s13
      %p10 = scmp.ge.s32.totalorder %s9, 4
      %s19 = sphi 0, %s21
      %s22 = sphi 0, %s19
      %s23 = sphi 0, %s22
      %s39 = sphi 0, %s23
      %s43 = sphi 0, %s43
      %s45 = sphi 0, %s43
      %s46 = sphi 0, %s45
      %s60 = sphi 0, %s46
      %s64 = sphi 0, %s64
      %s66 = sphi 0, %s64
      %s67 = sphi 0, %s66
      %s81 = sphi 0, %s67
      %s87 = sphi 0, %s89
      %s90 = sphi 0, %s87
      %s91 = sphi 0, %s90
      %s107 = sphi 0, %s91
    $region4: #{cnn_cifar10_forward.4} parent=1 // loop_header_branch
      %12 = sbr.rel (%p10) target = $region8
    $region5: #{cnn_cifar10_forward.4} parent=1 // loop_body
      %s14 = ssub.s32 %s9, 1
      %s15 = ssub.s32 %s9, 2
      %s16 = sadd.s32 %s9, 1
      %s17 = ssub.s32 %s9, %s16
      %p18 = scmp.eq.s32.totalorder %s17, 0
      %s20 = sadd.s32 %s19, 1
      %s21 = scalar_select %p18, %s19, %s20
      %p24 = pneg %p18
      %p25 = scmp.eq.s32.totalorder %s9, 1
      %p26 = por %p24, %p25
      %p27 = scmp.ne.s32.totalorder %s19, %s22
      %p28 = scmp.eq.s32.totalorder %s9, 0
      %p29 = por %p27, %p28
      %p30 = scmp.ne.s32.totalorder %s19, %s22
      %p31 = scmp.eq.s32.totalorder %s14, 1
      %p32 = por %p30, %p31
      %p33 = scmp.ne.s32.totalorder %s22, %s23
      %p34 = scmp.eq.s32.totalorder %s14, 0
      %p35 = por %p33, %p34
      %p36 = scmp.ne.s32.totalorder %s22, %s23
      %p37 = scmp.eq.s32.totalorder %s15, 1
      %p38 = por %p36, %p37
      %p40 = scmp.ne.s32.totalorder %s23, %s39
      %p41 = scmp.eq.s32.totalorder %s15, 0
      %p42 = por %p40, %p41
      %s44 = sadd.s32 %s43, 1
      %p47 = scmp.eq.s32.totalorder %s9, 1
      %p48 = scmp.ne.s32.totalorder %s43, %s45
      %p49 = scmp.eq.s32.totalorder %s9, 0
      %p50 = por %p48, %p49
      %p51 = scmp.ne.s32.totalorder %s43, %s45
      %p52 = scmp.eq.s32.totalorder %s14, 1
      %p53 = por %p51, %p52
      %p54 = scmp.ne.s32.totalorder %s45, %s46
      %p55 = scmp.eq.s32.totalorder %s14, 0
      %p56 = por %p54, %p55
      %p57 = scmp.ne.s32.totalorder %s45, %s46
      %p58 = scmp.eq.s32.totalorder %s15, 1
      %p59 = por %p57, %p58
      %p61 = scmp.ne.s32.totalorder %s46, %s60
      %p62 = scmp.eq.s32.totalorder %s15, 0
      %p63 = por %p61, %p62
      %s65 = sadd.s32 %s64, 1
      %p68 = scmp.eq.s32.totalorder %s9, 1
      %p69 = scmp.ne.s32.totalorder %s64, %s66
      %p70 = scmp.eq.s32.totalorder %s9, 0
      %p71 = por %p69, %p70
      %p72 = scmp.ne.s32.totalorder %s64, %s66
      %p73 = scmp.eq.s32.totalorder %s14, 1
      %p74 = por %p72, %p73
      %p75 = scmp.ne.s32.totalorder %s66, %s67
      %p76 = scmp.eq.s32.totalorder %s14, 0
      %p77 = por %p75, %p76
      %p78 = scmp.ne.s32.totalorder %s66, %s67
      %p79 = scmp.eq.s32.totalorder %s15, 1
      %p80 = por %p78, %p79
      %p82 = scmp.ne.s32.totalorder %s67, %s81
      %p83 = scmp.eq.s32.totalorder %s15, 0
      %p84 = por %p82, %p83
      %s85 = ssub.s32 %s9, %s16
      %p86 = scmp.eq.s32.totalorder %s85, 0
      %s88 = sadd.s32 %s87, 1
      %s89 = scalar_select %p86, %s87, %s88
      %p92 = pneg %p86
      %p93 = scmp.eq.s32.totalorder %s9, 1
      %p94 = por %p92, %p93
      %p95 = scmp.ne.s32.totalorder %s87, %s90
      %p96 = scmp.eq.s32.totalorder %s9, 0
      %p97 = por %p95, %p96
      %p98 = scmp.ne.s32.totalorder %s87, %s90
      %p99 = scmp.eq.s32.totalorder %s14, 1
      %p100 = por %p98, %p99
      %p101 = scmp.ne.s32.totalorder %s90, %s91
      %p102 = scmp.eq.s32.totalorder %s14, 0
      %p103 = por %p101, %p102
      %p104 = scmp.ne.s32.totalorder %s90, %s91
      %p105 = scmp.eq.s32.totalorder %s15, 1
      %p106 = por %p104, %p105
      %p108 = scmp.ne.s32.totalorder %s91, %s107
      %p109 = scmp.eq.s32.totalorder %s15, 0
      %p110 = por %p108, %p109
      %p111 = scmp.le.s32.totalorder 1, %s9
      %p112 = scmp.lt.s32.totalorder %s9, 3
      %p113 = pnand %p111, %p112
      %p114 = pneg %p113
      // Predicated region
      $region9: #{cnn_cifar10_forward.4} parent=5 // pred_check
        _
      $region10: #{cnn_cifar10_forward.4} parent=5 // pred_check_branch
        %116 = sbr.rel (%p113) target = $region12
      $region11: #{cnn_cifar10_forward.4} parent=5 // pred_region
        %s117 = ssub.s32 %s9, 1
        // Predicated region
        $region13: #{cnn_cifar10_forward.4} parent=11 // pred_check
          %p118 = pneg %p56
        $region14: #{cnn_cifar10_forward.4} parent=11 // pred_check_branch
          %120 = sbr.rel (%p118) target = $region16
        $region15: #{cnn_cifar10_forward.4} parent=11 // pred_region
          _
        $region16: #{cnn_cifar10_forward.4} parent=11 // pred_fallthru
          _
        // Predicated region
        $region17: #{cnn_cifar10_forward.4} parent=11 // pred_check
          %p121 = pneg %p77
        $region18: #{cnn_cifar10_forward.4} parent=11 // pred_check_branch
          %123 = sbr.rel (%p121) target = $region20
        $region19: #{cnn_cifar10_forward.4} parent=11 // pred_region
          _
        $region20: #{cnn_cifar10_forward.4} parent=11 // pred_fallthru
          _
      $region12: #{cnn_cifar10_forward.4} parent=5 // pred_fallthru
        _
      %p124 = scmp.lt.s32.totalorder %s9, 2
      // Predicated region
      $region21: #{cnn_cifar10_forward.4} parent=5 // pred_check
        %p125 = pneg %p124
      $region22: #{cnn_cifar10_forward.4} parent=5 // pred_check_branch
        %127 = sbr.rel (%p125) target = $region24
      $region23: #{cnn_cifar10_forward.4} parent=5 // pred_region
        // Predicated region
        $region25: #{cnn_cifar10_forward.4} parent=23 // pred_check
          %p128 = pneg %p29
        $region26: #{cnn_cifar10_forward.4} parent=23 // pred_check_branch
          %130 = sbr.rel (%p128) target = $region28
        $region27: #{cnn_cifar10_forward.4} parent=23 // pred_region
          %s131 = sand.u32 %s19, 1
          %s132 = sand.u32 %s19, 1
          %s133 = smul.addr %s132, 128
          %s134 = scalar_lea.vmem [#allocation2], %s133
          %s135 = smul.u32 4, %s9
          %s136 = smul.addr %s135, 2
          %s137 = smul.addr %s136, 4
          %s138 = scalar_lea.vmem %s0, %s137
          // Predicated region
          $region29: #{cnn_cifar10_forward.4} parent=27 // pred_check
            _
          $region30: #{cnn_cifar10_forward.4} parent=27 // pred_check_branch
            %140 = sbr.rel (0) target = $region32
          $region31: #{cnn_cifar10_forward.4} parent=27 // pred_region
            // Predicated region
            $region33: #{cnn_cifar10_forward.4} parent=31 // pred_check
              _
            $region34: #{cnn_cifar10_forward.4} parent=31 // pred_check_branch
              %142 = sbr.rel (0) target = $region36
            $region35: #{cnn_cifar10_forward.4} parent=31 // pred_region
              // Predicated region
              $region48: #{cnn_cifar10_forward.4} parent=35 // pred_check
                _
              $region49: #{cnn_cifar10_forward.4} parent=35 // pred_check_branch
                %188 = sbr.rel (0) target = $region51
              $region50: #{cnn_cifar10_forward.4} parent=35 // pred_region
                loop: start=0, step=1, limit=1
                $region52: #{cnn_cifar10_forward.4} parent=50 // loop_pre_header
                  _
                $region53: #{cnn_cifar10_forward.4} parent=50 // loop_header
                  %s190 = sphi 0, %s194
                  %p191 = scmp.ge.s32.totalorder %s190, 1
                  %s195 = sphi %s138, %s138
                  %s196 = sphi %s134, %s134
                $region54: #{cnn_cifar10_forward.4} parent=50 // loop_header_branch
                  %193 = sbr.rel (%p191) target = $region58
                $region55: #{cnn_cifar10_forward.4} parent=50 // loop_body
                  %v197 = vld [vmem:[%s195] sm:$0xff]
                  %198 = vst [vmem:[%s196] sm:$0xff] %v197
                  %v199 = vld [vmem:[%s195 + $0x8] sm:$0xff]
                  %200 = vst [vmem:[%s196 + $0x8] sm:$0xff] %v199
                  %v201 = vld [vmem:[%s195 + $0x10] sm:$0xff]
                  %202 = vst [vmem:[%s196 + $0x10] sm:$0xff] %v201
                  %v203 = vld [vmem:[%s195 + $0x18] sm:$0xff]
                  %204 = vst [vmem:[%s196 + $0x18] sm:$0xff] %v203
                  %v205 = vld [vmem:[%s195 + $0x40] sm:$0xff]
                  %206 = vst [vmem:[%s196 + $0x20] sm:$0xff] %v205
                  %v207 = vld [vmem:[%s195 + $0x48] sm:$0xff]
                  %208 = vst [vmem:[%s196 + $0x28] sm:$0xff] %v207
                  %v209 = vld [vmem:[%s195 + $0x50] sm:$0xff]
                  %210 = vst [vmem:[%s196 + $0x30] sm:$0xff] %v209
                  %v211 = vld [vmem:[%s195 + $0x58] sm:$0xff]
                  %212 = vst [vmem:[%s196 + $0x38] sm:$0xff] %v211
                  %v213 = vld [vmem:[%s195 + $0x80] sm:$0xff]
                  %214 = vst [vmem:[%s196 + $0x40] sm:$0xff] %v213
                  %v215 = vld [vmem:[%s195 + $0x88] sm:$0xff]
                  %216 = vst [vmem:[%s196 + $0x48] sm:$0xff] %v215
                  %v217 = vld [vmem:[%s195 + $0x90] sm:$0xff]
                  %218 = vst [vmem:[%s196 + $0x50] sm:$0xff] %v217
                  %v219 = vld [vmem:[%s195 + $0x98] sm:$0xff]
                  %220 = vst [vmem:[%s196 + $0x58] sm:$0xff] %v219
                  %v221 = vld [vmem:[%s195 + $0xc0] sm:$0xff]
                  %222 = vst [vmem:[%s196 + $0x60] sm:$0xff] %v221
                  %v223 = vld [vmem:[%s195 + $0xc8] sm:$0xff]
                  %224 = vst [vmem:[%s196 + $0x68] sm:$0xff] %v223
                  %v225 = vld [vmem:[%s195 + $0xd0] sm:$0xff]
                  %226 = vst [vmem:[%s196 + $0x70] sm:$0xff] %v225
                  %v227 = vld [vmem:[%s195 + $0xd8] sm:$0xff]
                  %228 = vst [vmem:[%s196 + $0x78] sm:$0xff] %v227
                $region56: #{cnn_cifar10_forward.4} parent=50 // loop_footer
                  %s194 = sadd.s32 1, %s190
                $region57: #{cnn_cifar10_forward.4} parent=50 // loop_footer_branch
                  %189 = sbr.rel target = $region53
                $region58: #{cnn_cifar10_forward.4} parent=50 // loop_exit
                  _
              $region51: #{cnn_cifar10_forward.4} parent=35 // pred_fallthru
                _
              // Predicated region
              $region59: #{cnn_cifar10_forward.4} parent=35 // pred_check
                _
              $region60: #{cnn_cifar10_forward.4} parent=35 // pred_check_branch
                %230 = sbr.rel target = $region62
              $region61: #{cnn_cifar10_forward.4} parent=35 // pred_region
                _
              $region62: #{cnn_cifar10_forward.4} parent=35 // pred_fallthru
                _
            $region36: #{cnn_cifar10_forward.4} parent=31 // pred_fallthru
              _
            // Predicated region
            $region37: #{cnn_cifar10_forward.4} parent=31 // pred_check
              _
            $region38: #{cnn_cifar10_forward.4} parent=31 // pred_check_branch
              %144 = sbr.rel target = $region40
            $region39: #{cnn_cifar10_forward.4} parent=31 // pred_region
              %s146 = ssub.s32 256, 1
              loop: start=0, step=1, limit=1
              $region41: #{cnn_cifar10_forward.4} parent=39 // loop_pre_header
                _
              $region42: #{cnn_cifar10_forward.4} parent=39 // loop_header
                %s148 = sphi 0, %s152
                %p149 = scmp.ge.s32.totalorder %s148, 1
                %s153 = sphi %s138, %s138
                %s154 = sphi %s134, %s134
              $region43: #{cnn_cifar10_forward.4} parent=39 // loop_header_branch
                %151 = sbr.rel (%p149) target = $region47
              $region44: #{cnn_cifar10_forward.4} parent=39 // loop_body
                %v155 = vld [vmem:[%s153] sm:%s146]
                %156 = vst [vmem:[%s154] sm:%s146] %v155
                %v157 = vld [vmem:[%s153 + $0x8] sm:%s146]
                %158 = vst [vmem:[%s154 + $0x8] sm:%s146] %v157
                %v159 = vld [vmem:[%s153 + $0x10] sm:%s146]
                %160 = vst [vmem:[%s154 + $0x10] sm:%s146] %v159
                %v161 = vld [vmem:[%s153 + $0x18] sm:%s146]
                %162 = vst [vmem:[%s154 + $0x18] sm:%s146] %v161
                %v163 = vld [vmem:[%s153 + $0x40] sm:%s146]
                %164 = vst [vmem:[%s154 + $0x20] sm:%s146] %v163
                %v165 = vld [vmem:[%s153 + $0x48] sm:%s146]
                %166 = vst [vmem:[%s154 + $0x28] sm:%s146] %v165
                %v167 = vld [vmem:[%s153 + $0x50] sm:%s146]
                %168 = vst [vmem:[%s154 + $0x30] sm:%s146] %v167
                %v169 = vld [vmem:[%s153 + $0x58] sm:%s146]
                %170 = vst [vmem:[%s154 + $0x38] sm:%s146] %v169
                %v171 = vld [vmem:[%s153 + $0x80] sm:%s146]
                %172 = vst [vmem:[%s154 + $0x40] sm:%s146] %v171
                %v173 = vld [vmem:[%s153 + $0x88] sm:%s146]
                %174 = vst [vmem:[%s154 + $0x48] sm:%s146] %v173
                %v175 = vld [vmem:[%s153 + $0x90] sm:%s146]
                %176 = vst [vmem:[%s154 + $0x50] sm:%s146] %v175
                %v177 = vld [vmem:[%s153 + $0x98] sm:%s146]
                %178 = vst [vmem:[%s154 + $0x58] sm:%s146] %v177
                %v179 = vld [vmem:[%s153 + $0xc0] sm:%s146]
                %180 = vst [vmem:[%s154 + $0x60] sm:%s146] %v179
                %v181 = vld [vmem:[%s153 + $0xc8] sm:%s146]
                %182 = vst [vmem:[%s154 + $0x68] sm:%s146] %v181
                %v183 = vld [vmem:[%s153 + $0xd0] sm:%s146]
                %184 = vst [vmem:[%s154 + $0x70] sm:%s146] %v183
                %v185 = vld [vmem:[%s153 + $0xd8] sm:%s146]
                %186 = vst [vmem:[%s154 + $0x78] sm:%s146] %v185
              $region45: #{cnn_cifar10_forward.4} parent=39 // loop_footer
                %s152 = sadd.s32 1, %s148
              $region46: #{cnn_cifar10_forward.4} parent=39 // loop_footer_branch
                %147 = sbr.rel target = $region42
              $region47: #{cnn_cifar10_forward.4} parent=39 // loop_exit
                _
            $region40: #{cnn_cifar10_forward.4} parent=31 // pred_fallthru
              _
          $region32: #{cnn_cifar10_forward.4} parent=27 // pred_fallthru
            _
          %231 = vnop
        $region28: #{cnn_cifar10_forward.4} parent=23 // pred_fallthru
          _
      $region24: #{cnn_cifar10_forward.4} parent=5 // pred_fallthru
        _
      %p232 = scmp.le.s32.totalorder 1, %s9
      %p233 = scmp.lt.s32.totalorder %s9, 3
      %p234 = pnand %p232, %p233
      %p235 = pneg %p234
      // Predicated region
      $region63: #{cnn_cifar10_forward.4} parent=5 // pred_check
        _
      $region64: #{cnn_cifar10_forward.4} parent=5 // pred_check_branch
        %237 = sbr.rel (%p234) target = $region66
      $region65: #{cnn_cifar10_forward.4} parent=5 // pred_region
        %s238 = ssub.s32 %s9, 1
        %s239 = sand.u32 %s22, 1
        %s240 = sand.u32 %s22, 1
        %s241 = smul.addr %s240, 128
        %s242 = scalar_lea.vmem [#allocation2], %s241
        // Predicated region
        $region67: #{cnn_cifar10_forward.4} parent=65 // pred_check
          %p243 = pneg %p35
        $region68: #{cnn_cifar10_forward.4} parent=65 // pred_check_branch
          %245 = sbr.rel (%p243) target = $region70
        $region69: #{cnn_cifar10_forward.4} parent=65 // pred_region
          _
        $region70: #{cnn_cifar10_forward.4} parent=65 // pred_fallthru
          _
        %s246 = sand.u32 %s22, 1
        %s247 = sand.u32 %s22, 1
        %s248 = smul.addr %s247, 128
        %s249 = scalar_lea.vmem [#allocation2], %s248
        %p250 = pneg %p35
        %p251 = pneg %p32
        %p252 = pneg %p56
        %p253 = pneg %p53
        %p254 = pneg %p77
        %p255 = pneg %p74
        %p256 = pneg %p103
        %p257 = pneg %p100
        %s258 = smul.u32 4, %s14
        %p259 = scmp.lt.s32.totalorder %s258, 7
        %s260 = scalar_select %p259, %s258, 7
        %s261 = smul.addr %s260, 8
        %s262 = scalar_lea.vmem %s3, %s261
        %s263 = smul.u32 4, %s14
        %s264 = smul.u32 4, %s14
        %p265 = scmp.lt.s32.totalorder %s264, 7
        %s266 = scalar_select %p265, %s264, 7
        %s267 = smul.addr %s266, 8
        %s268 = scalar_lea.vmem %s3, %s267
        %s269 = smul.u32 4, %s14
        %v271 = vld [vmem:[%s242] sm:$0xff]
        %v272 = vld [vmem:[%s242 + $0x8] sm:$0xff]
        %v273 = vld [vmem:[%s242 + $0x10] sm:$0xff]
        %v274 = vld [vmem:[%s242 + $0x18] sm:$0xff]
        %v275 = vld [vmem:[%s242 + $0x20] sm:$0xff]
        %v276 = vld [vmem:[%s242 + $0x28] sm:$0xff]
        %v277 = vld [vmem:[%s242 + $0x30] sm:$0xff]
        %v278 = vld [vmem:[%s242 + $0x38] sm:$0xff]
        %v279 = vld [vmem:[%s242 + $0x40] sm:$0xff]
        %v280 = vld [vmem:[%s242 + $0x48] sm:$0xff]
        %v281 = vld [vmem:[%s242 + $0x50] sm:$0xff]
        %v282 = vld [vmem:[%s242 + $0x58] sm:$0xff]
        %v283 = vld [vmem:[%s242 + $0x60] sm:$0xff]
        %v284 = vld [vmem:[%s242 + $0x68] sm:$0xff]
        %v285 = vld [vmem:[%s242 + $0x70] sm:$0xff]
        %v286 = vld [vmem:[%s242 + $0x78] sm:$0xff]
        %v287 = vld [vmem:[%s1] sm:$0xf]
        %v288 = vld [vmem:[%s1 + $0x4] sm:$0xf]
        %v289 = vld [vmem:[%s1 + $0x8] sm:$0xf]
        %v290 = vld [vmem:[%s1 + $0xc] sm:$0xf]
        %v291 = vld [vmem:[%s1 + $0x10] sm:$0xf]
        %v292 = vld [vmem:[%s1 + $0x14] sm:$0xf]
        %v293 = vld [vmem:[%s1 + $0x18] sm:$0xf]
        %v294 = vld [vmem:[%s1 + $0x1c] sm:$0xf]
        %v295 = vld [vmem:[%s1 + $0x20] sm:$0xf]
        %v296 = vld [vmem:[%s1 + $0x24] sm:$0xf]
        %v297 = vld [vmem:[%s1 + $0x28] sm:$0xf]
        %v298 = vld [vmem:[%s1 + $0x2c] sm:$0xf]
        %v299 = vld [vmem:[%s1 + $0x30] sm:$0xf]
        %v300 = vld [vmem:[%s1 + $0x34] sm:$0xf]
        %v301 = vld [vmem:[%s1 + $0x38] sm:$0xf]
        %v302 = vld [vmem:[%s1 + $0x3c] sm:$0xf]
        %v303 = vld [vmem:[%s1 + $0x40] sm:$0xf]
        %v304 = vld [vmem:[%s1 + $0x44] sm:$0xf]
        %v305 = vld [vmem:[%s1 + $0x48] sm:$0xf]
        %v306 = vld [vmem:[%s1 + $0x4c] sm:$0xf]
        %v323 = vunpack.c.l.b16 %v271
        %v324 = vunpack.c.h.b16 %v271
        %v325 = vunpack.c.l.b16 %v272
        %v326 = vunpack.c.h.b16 %v272
        %v327 = vunpack.c.l.b16 %v273
        %v328 = vunpack.c.h.b16 %v273
        %v329 = vunpack.c.l.b16 %v274
        %v330 = vunpack.c.h.b16 %v274
        %v331 = vunpack.c.l.b16 %v275
        %v332 = vunpack.c.h.b16 %v275
        %v333 = vunpack.c.l.b16 %v276
        %v334 = vunpack.c.h.b16 %v276
        %v335 = vunpack.c.l.b16 %v277
        %v336 = vunpack.c.h.b16 %v277
        %v337 = vunpack.c.l.b16 %v278
        %v338 = vunpack.c.h.b16 %v278
        %v339 = vunpack.c.l.b16 %v279
        %v340 = vunpack.c.h.b16 %v279
        %v341 = vunpack.c.l.b16 %v280
        %v342 = vunpack.c.h.b16 %v280
        %v343 = vunpack.c.l.b16 %v281
        %v344 = vunpack.c.h.b16 %v281
        %v345 = vunpack.c.l.b16 %v282
        %v346 = vunpack.c.h.b16 %v282
        %v347 = vunpack.c.l.b16 %v283
        %v348 = vunpack.c.h.b16 %v283
        %v349 = vunpack.c.l.b16 %v284
        %v350 = vunpack.c.h.b16 %v284
        %v351 = vunpack.c.l.b16 %v285
        %v352 = vunpack.c.h.b16 %v285
        %v353 = vunpack.c.l.b16 %v286
        %v354 = vunpack.c.h.b16 %v286
        %v355 = vpack.c.b16 %v325, %v323
        %v356 = vpack.c.b16 %v326, %v324
        %v357 = vpack.c.b16 %v329, %v327
        %v358 = vpack.c.b16 %v330, %v328
        %v359 = vpack.c.b16 %v333, %v331
        %v360 = vpack.c.b16 %v334, %v332
        %v361 = vpack.c.b16 %v337, %v335
        %v362 = vpack.c.b16 %v338, %v336
        %v363 = vpack.c.b16 %v341, %v339
        %v364 = vpack.c.b16 %v342, %v340
        %v365 = vpack.c.b16 %v345, %v343
        %v366 = vpack.c.b16 %v346, %v344
        %v367 = vpack.c.b16 %v349, %v347
        %v368 = vpack.c.b16 %v350, %v348
        %v369 = vpack.c.b16 %v353, %v351
        %v370 = vpack.c.b16 %v354, %v352
        %v399 = vunpack.c.l.b16 %v287
        %v400 = vunpack.c.l.b16 %v288
        %v401 = vunpack.c.l.b16 %v289
        %v402 = vunpack.c.l.b16 %v290
        %v403 = vunpack.c.l.b16 %v291
        %v404 = vunpack.c.l.b16 %v292
        %v405 = vunpack.c.l.b16 %v293
        %v406 = vunpack.c.l.b16 %v294
        %v407 = vunpack.c.l.b16 %v295
        %v408 = vunpack.c.l.b16 %v296
        %v409 = vunpack.c.l.b16 %v297
        %v410 = vunpack.c.l.b16 %v298
        %v411 = vunpack.c.l.b16 %v299
        %v412 = vunpack.c.l.b16 %v300
        %v413 = vunpack.c.l.b16 %v301
        %v414 = vunpack.c.l.b16 %v302
        %v415 = vunpack.c.l.b16 %v303
        %v416 = vunpack.c.l.b16 %v304
        %v417 = vunpack.c.l.b16 %v305
        %v418 = vunpack.c.l.b16 %v306
        %v419 = vpack.c.b16 %v400, %v399
        %v420 = vpack.c.b16 %v402, %v401
        %v421 = vpack.c.b16 %v404, %v403
        %v422 = vpack.c.b16 %v406, %v405
        %v423 = vpack.c.b16 %v408, %v407
        %v424 = vpack.c.b16 %v410, %v409
        %v425 = vpack.c.b16 %v412, %v411
        %v426 = vpack.c.b16 %v414, %v413
        %v427 = vpack.c.b16 %v416, %v415
        %v428 = vpack.c.b16 %v418, %v417
        %vm439 = vcmask 261120
        %v441 = vsel %vm439, %v356, 0
        %v444 = vsel %vm439, %v358, 0
        %v447 = vsel %vm439, %v360, 0
        %v450 = vsel %vm439, %v362, 0
        %v453 = vsel %vm439, %v364, 0
        %v456 = vsel %vm439, %v366, 0
        %v459 = vsel %vm439, %v368, 0
        %v462 = vsel %vm439, %v370, 0
        %464 = vmatprep.subr.bf16.mxu0 0
        %465 = vmatpush1.bf16.msra.mxu0 %v426
        %466 = vmatprep.subr.bf16.mxu0 0
        %467 = vmatpush1.bf16.msra.mxu0 %v425
        %468 = vmatprep.subr.bf16.mxu0 0
        %469 = vmatpush1.bf16.msra.mxu0 %v424
        %470 = vmatprep.subr.bf16.mxu0 0
        %471 = vmatpush1.bf16.msra.mxu0 %v423
        %472 = vmatprep.subr.bf16.mxu0 0
        %473 = vmatpush1.bf16.msra.mxu0 %v422
        %474 = vmatprep.subr.bf16.mxu0 0
        %475 = vmatpush1.bf16.msra.mxu0 %v421
        %476 = vmatprep.subr.bf16.mxu0 0
        %477 = vmatpush1.bf16.msra.mxu0 %v420
        %478 = vmatprep.subr.bf16.mxu0 0
        %479 = vmatpush1.bf16.msra.mxu0 %v419
        %480 = vmatprep.subr.bf16.mxu0 0
        %481 = vmatpush2.bf16.msra.mxu0 0
        %482 = vmatprep.subr.bf16.mxu0 0
        %483 = vmatpush2.bf16.msra.mxu0 0
        %484 = vmatprep.subr.bf16.mxu0 0
        %485 = vmatpush2.bf16.msra.mxu0 0
        %486 = vmatprep.subr.bf16.mxu0 0
        %487 = vmatpush2.bf16.msra.mxu0 0
        %488 = vmatprep.subr.bf16.mxu0 0
        %489 = vmatpush2.bf16.msra.mxu0 0
        %490 = vmatprep.subr.bf16.mxu0 0
        %491 = vmatpush2.bf16.msra.mxu0 0
        %492 = vmatprep.subr.bf16.mxu0 0
        %493 = vmatpush2.bf16.msra.mxu0 %v428
        %494 = vmatprep.subr.bf16.mxu0 0
        %495 = vmatpush2.bf16.msra.mxu0 %v427
        %496 = vmatprep.mubr.bf16.mxu0 %v441
        %497 = vmatmul.mubr.bf16.gmra.mxu0 %v355
        %v498 = vpop.f32.mrf.mxu0
        %v499 = vadd.f32 0.0, %v498
        %v500 = vpop.f32.mrf.mxu0
        %v501 = vpop.f32.mrf.mxu0
        %v502 = vadd.f32 0.0, %v501
        %v503 = vpop.f32.mrf.mxu0
        %504 = vmatprep.mubr.bf16.mxu0 %v444
        %505 = vmatmul.mubr.bf16.gmra.mxu0 %v357
        %v506 = vpop.f32.mrf.mxu0
        %v507 = vadd.f32 0.0, %v506
        %v508 = vpop.f32.mrf.mxu0
        %v509 = vpop.f32.mrf.mxu0
        %v510 = vadd.f32 0.0, %v509
        %v511 = vpop.f32.mrf.mxu0
        %512 = vmatprep.mubr.bf16.mxu0 %v447
        %513 = vmatmul.mubr.bf16.gmra.mxu0 %v359
        %v514 = vpop.f32.mrf.mxu0
        %v515 = vadd.f32 0.0, %v514
        %v516 = vpop.f32.mrf.mxu0
        %v517 = vpop.f32.mrf.mxu0
        %v518 = vadd.f32 0.0, %v517
        %v519 = vpop.f32.mrf.mxu0
        %520 = vmatprep.mubr.bf16.mxu0 %v450
        %521 = vmatmul.mubr.bf16.gmra.mxu0 %v361
        %v522 = vpop.f32.mrf.mxu0
        %v523 = vadd.f32 0.0, %v522
        %v524 = vpop.f32.mrf.mxu0
        %v525 = vpop.f32.mrf.mxu0
        %v526 = vadd.f32 0.0, %v525
        %v527 = vpop.f32.mrf.mxu0
        %528 = vmatprep.mubr.bf16.mxu0 %v453
        %529 = vmatmul.mubr.bf16.gmra.mxu0 %v363
        %v530 = vpop.f32.mrf.mxu0
        %v531 = vadd.f32 0.0, %v530
        %v532 = vpop.f32.mrf.mxu0
        %v533 = vpop.f32.mrf.mxu0
        %v534 = vadd.f32 0.0, %v533
        %v535 = vpop.f32.mrf.mxu0
        %536 = vmatprep.mubr.bf16.mxu0 %v456
        %537 = vmatmul.mubr.bf16.gmra.mxu0 %v365
        %v538 = vpop.f32.mrf.mxu0
        %v539 = vadd.f32 0.0, %v538
        %v540 = vpop.f32.mrf.mxu0
        %v541 = vpop.f32.mrf.mxu0
        %v542 = vadd.f32 0.0, %v541
        %v543 = vpop.f32.mrf.mxu0
        %544 = vmatprep.mubr.bf16.mxu0 %v459
        %545 = vmatmul.mubr.bf16.gmra.mxu0 %v367
        %v546 = vpop.f32.mrf.mxu0
        %v547 = vadd.f32 0.0, %v546
        %v548 = vpop.f32.mrf.mxu0
        %v549 = vpop.f32.mrf.mxu0
        %v550 = vadd.f32 0.0, %v549
        %v551 = vpop.f32.mrf.mxu0
        %552 = vmatprep.mubr.bf16.mxu0 %v462
        %553 = vmatmul.mubr.bf16.gmra.mxu0 %v369
        %v554 = vpop.f32.mrf.mxu0
        %v555 = vadd.f32 0.0, %v554
        %v556 = vpop.f32.mrf.mxu0
        %v557 = vpop.f32.mrf.mxu0
        %v558 = vadd.f32 0.0, %v557
        %v559 = vpop.f32.mrf.mxu0
        %560 = vdwg.mxu0
        %v561 = vmax.f32 %v499, %v515
        %v562 = vmax.f32 %v502, %v518
        %v563 = vmax.f32 %v507, %v523
        %v564 = vmax.f32 %v510, %v526
        %v565 = vmax.f32 %v531, %v547
        %v566 = vmax.f32 %v534, %v550
        %v567 = vmax.f32 %v539, %v555
        %v568 = vmax.f32 %v542, %v558
        %v569 = vmax.f32 %v561, %v565
        %v570 = vmax.f32 %v562, %v566
        %v571 = vmax.f32 %v563, %v567
        %v572 = vmax.f32 %v564, %v568
        %v573 = vld [vmem:[%s2] sm:$0x1]
        %v575 = vlaneseq
        %v576 = vshrl.u32 %v575, 7
        %v577 = vsub.s32 0, %v576
        %v578 = vrot.slane %v573, %v577
        %v580 = vadd.f32 %v569, %v578
        %v581 = vadd.f32 %v570, %v578
        %v582 = vadd.f32 %v571, %v578
        %v583 = vadd.f32 %v572, %v578
        %v584 = vmax.f32 %v580, 0.0
        %v585 = vmax.f32 %v581, 0.0
        %v586 = vmax.f32 %v582, 0.0
        %v587 = vmax.f32 %v583, 0.0
        %588 = vst [vmem:[%s268] sm:$0xff] %v584
        %589 = vst [vmem:[%s268 + $0x8] sm:$0xff] %v585
        %590 = vst [vmem:[%s268 + $0x10] sm:$0xff] %v586
        %591 = vst [vmem:[%s268 + $0x18] sm:$0xff] %v587
        %s592 = smul.u32 4, %s14
        %p593 = scmp.lt.s32.totalorder %s592, 7
        %s594 = scalar_select %p593, %s592, 7
        %s595 = smul.addr %s594, 8
        %s596 = scalar_lea.vmem %s3, %s595
        // Predicated region
        $region71: #{cnn_cifar10_forward.4} parent=65 // pred_check
          %p597 = pneg %p100
        $region72: #{cnn_cifar10_forward.4} parent=65 // pred_check_branch
          %599 = sbr.rel (%p597) target = $region74
        $region73: #{cnn_cifar10_forward.4} parent=65 // pred_region
          %s600 = smul.u32 4, %s14
        $region74: #{cnn_cifar10_forward.4} parent=65 // pred_fallthru
          _
      $region66: #{cnn_cifar10_forward.4} parent=5 // pred_fallthru
        _
      %p601 = scmp.le.s32.totalorder 2, %s9
      // Predicated region
      $region75: #{cnn_cifar10_forward.4} parent=5 // pred_check
        %p602 = pneg %p601
      $region76: #{cnn_cifar10_forward.4} parent=5 // pred_check_branch
        %604 = sbr.rel (%p602) target = $region78
      $region77: #{cnn_cifar10_forward.4} parent=5 // pred_region
        %s605 = ssub.s32 %s9, 2
        // Predicated region
        $region79: #{cnn_cifar10_forward.4} parent=77 // pred_check
          %p606 = pneg %p106
        $region80: #{cnn_cifar10_forward.4} parent=77 // pred_check_branch
          %608 = sbr.rel (%p606) target = $region82
        $region81: #{cnn_cifar10_forward.4} parent=77 // pred_region
          %s609 = smul.u32 4, %s15
          %p610 = scmp.lt.s32.totalorder %s609, 7
          %s611 = scalar_select %p610, %s609, 7
          %s612 = smul.addr %s611, 8
          %s613 = scalar_lea.vmem %s3, %s612
        $region82: #{cnn_cifar10_forward.4} parent=77 // pred_fallthru
          _
      $region78: #{cnn_cifar10_forward.4} parent=5 // pred_fallthru
        _
    $region6: #{cnn_cifar10_forward.4} parent=1 // loop_footer
      %s13 = sadd.s32 1, %s9
    $region7: #{cnn_cifar10_forward.4} parent=1 // loop_footer_branch
      %8 = sbr.rel target = $region3
    $region8: #{cnn_cifar10_forward.4} parent=1 // loop_exit
      _

// kernel: cnn_cifar10_forward.5
$region0: #{cnn_cifar10_forward.5}
  #allocation0 [shape = 'u32[]', space=smem, size = 0x4, offset = 0x4, fixed_abs, tag = 'smem constant byte address 0x4 - core index']
  #allocation1 [shape = 'u32[144,128]{1,0:T(1,128)}', space=vmem, size = 0x12000, scoped, tag = 'internal scratch']
  %s0 = inlined_call_operand.vmem [shape: f32[8,400], index: 0, kind: input, shape index: {}]
  %s1 = inlined_call_operand.vmem [shape: f32[400,256], index: 1, kind: input, shape index: {}]
  %s2 = inlined_call_operand.vmem [shape: f32[1,256], index: 2, kind: input, shape index: {}]
  %s3 = inlined_call_operand.vmem [shape: f32[256,128], index: 3, kind: input, shape index: {}]
  %s4 = inlined_call_operand.vmem [shape: f32[1,128], index: 4, kind: input, shape index: {}]
  %s5 = inlined_call_operand.vmem [shape: f32[128,128], index: 5, kind: input, shape index: {}]
  %s6 = inlined_call_operand.vmem [shape: f32[1,128], index: 6, kind: input, shape index: {}]
  %s7 = inlined_call_operand.vmem [shape: f32[8,128], index: 7, kind: output, shape index: {0}]
  %s8 = inlined_call_operand.vmem [shape: f32[8,128], index: 8, kind: output, shape index: {1}]
  %9 = xla_tuple %s7, %s8
  %s10 = sld [smem:[#allocation0]]
  $region46: #{cnn_cifar10_forward.5} parent=0
    _
  %s12 = ssub.s32 1, %s10
  %s13 = scalar_select 0, %s12, %s10
  // Predicated region
  $region2: #{cnn_cifar10_forward.5} parent=0 // pred_check
    _
  $region3: #{cnn_cifar10_forward.5} parent=0 // pred_check_branch
    %15 = sbr.rel (0) target = $region5
  $region4: #{cnn_cifar10_forward.5} parent=0 // pred_region
    _
  $region5: #{cnn_cifar10_forward.5} parent=0 // pred_fallthru
    _
  // Predicated region
  $region6: #{cnn_cifar10_forward.5} parent=0 // pred_check
    _
  $region7: #{cnn_cifar10_forward.5} parent=0 // pred_check_branch
    %17 = sbr.rel (0) target = $region9
  $region8: #{cnn_cifar10_forward.5} parent=0 // pred_region
    _
  $region9: #{cnn_cifar10_forward.5} parent=0 // pred_fallthru
    _
  // Predicated region
  $region10: #{cnn_cifar10_forward.5} parent=0 // pred_check
    _
  $region11: #{cnn_cifar10_forward.5} parent=0 // pred_check_branch
    %19 = sbr.rel (0) target = $region13
  $region12: #{cnn_cifar10_forward.5} parent=0 // pred_region
    _
  $region13: #{cnn_cifar10_forward.5} parent=0 // pred_fallthru
    _
  // Predicated region
  $region14: #{cnn_cifar10_forward.5} parent=0 // pred_check
    _
  $region15: #{cnn_cifar10_forward.5} parent=0 // pred_check_branch
    %21 = sbr.rel (0) target = $region17
  $region16: #{cnn_cifar10_forward.5} parent=0 // pred_region
    _
  $region17: #{cnn_cifar10_forward.5} parent=0 // pred_fallthru
    _
  // Predicated region
  $region18: #{cnn_cifar10_forward.5} parent=0 // pred_check
    _
  $region19: #{cnn_cifar10_forward.5} parent=0 // pred_check_branch
    %23 = sbr.rel (0) target = $region21
  $region20: #{cnn_cifar10_forward.5} parent=0 // pred_region
    _
  $region21: #{cnn_cifar10_forward.5} parent=0 // pred_fallthru
    _
  // Predicated region
  $region22: #{cnn_cifar10_forward.5} parent=0 // pred_check
    _
  $region23: #{cnn_cifar10_forward.5} parent=0 // pred_check_branch
    %25 = sbr.rel (0) target = $region25
  $region24: #{cnn_cifar10_forward.5} parent=0 // pred_region
    _
  $region25: #{cnn_cifar10_forward.5} parent=0 // pred_fallthru
    _
  // Predicated region
  $region26: #{cnn_cifar10_forward.5} parent=0 // pred_check
    _
  $region27: #{cnn_cifar10_forward.5} parent=0 // pred_check_branch
    %27 = sbr.rel (0) target = $region29
  $region28: #{cnn_cifar10_forward.5} parent=0 // pred_region
    _
  $region29: #{cnn_cifar10_forward.5} parent=0 // pred_fallthru
    _
  %v28 = vld [vmem:[%s0] sm:$0xff]
  %v29 = vld [vmem:[%s0 + $0x8] sm:$0xff]
  %v30 = vld [vmem:[%s0 + $0x10] sm:$0xff]
  %v31 = vld [vmem:[%s0 + $0x18] sm:$0xff]
  %v32 = vld [vmem:[%s1] sm:$0xff]
  %v33 = vld [vmem:[%s1 + $0x8] sm:$0xff]
  %v34 = vld [vmem:[%s1 + $0x10] sm:$0xff]
  %v35 = vld [vmem:[%s1 + $0x18] sm:$0xff]
  %v36 = vld [vmem:[%s1 + $0x20] sm:$0xff]
  %v37 = vld [vmem:[%s1 + $0x28] sm:$0xff]
  %v38 = vld [vmem:[%s1 + $0x30] sm:$0xff]
  %v39 = vld [vmem:[%s1 + $0x38] sm:$0xff]
  %v40 = vld [vmem:[%s1 + $0x40] sm:$0xff]
  %v41 = vld [vmem:[%s1 + $0x48] sm:$0xff]
  %v42 = vld [vmem:[%s1 + $0x50] sm:$0xff]
  %v43 = vld [vmem:[%s1 + $0x58] sm:$0xff]
  %v44 = vld [vmem:[%s1 + $0x60] sm:$0xff]
  %v45 = vld [vmem:[%s1 + $0x68] sm:$0xff]
  %v46 = vld [vmem:[%s1 + $0x70] sm:$0xff]
  %v47 = vld [vmem:[%s1 + $0x78] sm:$0xff]
  %v48 = vld [vmem:[%s1 + $0x80] sm:$0xff]
  %v49 = vld [vmem:[%s1 + $0x88] sm:$0xff]
  %v50 = vld [vmem:[%s1 + $0x90] sm:$0xff]
  %v51 = vld [vmem:[%s1 + $0x98] sm:$0xff]
  %v52 = vld [vmem:[%s1 + $0xa0] sm:$0xff]
  %v53 = vld [vmem:[%s1 + $0xa8] sm:$0xff]
  %v54 = vld [vmem:[%s1 + $0xb0] sm:$0xff]
  %v55 = vld [vmem:[%s1 + $0xb8] sm:$0xff]
  %v56 = vld [vmem:[%s1 + $0xc0] sm:$0xff]
  %v57 = vld [vmem:[%s1 + $0xc8] sm:$0xff]
  %v58 = vld [vmem:[%s1 + $0xd0] sm:$0xff]
  %v59 = vld [vmem:[%s1 + $0xd8] sm:$0xff]
  %v60 = vld [vmem:[%s1 + $0xe0] sm:$0xff]
  %v61 = vld [vmem:[%s1 + $0xe8] sm:$0xff]
  %v62 = vld [vmem:[%s1 + $0xf0] sm:$0xff]
  %v63 = vld [vmem:[%s1 + $0xf8] sm:$0xff]
  %v64 = vld [vmem:[%s1 + $0x100] sm:$0xff]
  %v65 = vld [vmem:[%s1 + $0x108] sm:$0xff]
  %v66 = vld [vmem:[%s1 + $0x110] sm:$0xff]
  %v67 = vld [vmem:[%s1 + $0x118] sm:$0xff]
  %v68 = vld [vmem:[%s1 + $0x120] sm:$0xff]
  %v69 = vld [vmem:[%s1 + $0x128] sm:$0xff]
  %v70 = vld [vmem:[%s1 + $0x130] sm:$0xff]
  %v71 = vld [vmem:[%s1 + $0x138] sm:$0xff]
  %v72 = vld [vmem:[%s1 + $0x140] sm:$0xff]
  %v73 = vld [vmem:[%s1 + $0x148] sm:$0xff]
  %v74 = vld [vmem:[%s1 + $0x150] sm:$0xff]
  %v75 = vld [vmem:[%s1 + $0x158] sm:$0xff]
  %v76 = vld [vmem:[%s1 + $0x160] sm:$0xff]
  %v77 = vld [vmem:[%s1 + $0x168] sm:$0xff]
  %v78 = vld [vmem:[%s1 + $0x170] sm:$0xff]
  %v79 = vld [vmem:[%s1 + $0x178] sm:$0xff]
  %v80 = vld [vmem:[%s1 + $0x180] sm:$0xff]
  %v81 = vld [vmem:[%s1 + $0x188] sm:$0xff]
  %v82 = vld [vmem:[%s1 + $0x190] sm:$0xff]
  %v83 = vld [vmem:[%s1 + $0x198] sm:$0xff]
  %v84 = vld [vmem:[%s1 + $0x1a0] sm:$0xff]
  %v85 = vld [vmem:[%s1 + $0x1a8] sm:$0xff]
  %v86 = vld [vmem:[%s1 + $0x1b0] sm:$0xff]
  %v87 = vld [vmem:[%s1 + $0x1b8] sm:$0xff]
  %v88 = vld [vmem:[%s1 + $0x1c0] sm:$0xff]
  %v89 = vld [vmem:[%s1 + $0x1c8] sm:$0xff]
  %v90 = vld [vmem:[%s1 + $0x1d0] sm:$0xff]
  %v91 = vld [vmem:[%s1 + $0x1d8] sm:$0xff]
  %v92 = vld [vmem:[%s1 + $0x1e0] sm:$0xff]
  %v93 = vld [vmem:[%s1 + $0x1e8] sm:$0xff]
  %v94 = vld [vmem:[%s1 + $0x1f0] sm:$0xff]
  %v95 = vld [vmem:[%s1 + $0x1f8] sm:$0xff]
  %v96 = vld [vmem:[%s1 + $0x200] sm:$0xff]
  %v97 = vld [vmem:[%s1 + $0x208] sm:$0xff]
  %v98 = vld [vmem:[%s1 + $0x210] sm:$0xff]
  %v99 = vld [vmem:[%s1 + $0x218] sm:$0xff]
  %v100 = vld [vmem:[%s1 + $0x220] sm:$0xff]
  %v101 = vld [vmem:[%s1 + $0x228] sm:$0xff]
  %v102 = vld [vmem:[%s1 + $0x230] sm:$0xff]
  %v103 = vld [vmem:[%s1 + $0x238] sm:$0xff]
  %v104 = vld [vmem:[%s1 + $0x240] sm:$0xff]
  %v105 = vld [vmem:[%s1 + $0x248] sm:$0xff]
  %v106 = vld [vmem:[%s1 + $0x250] sm:$0xff]
  %v107 = vld [vmem:[%s1 + $0x258] sm:$0xff]
  %v108 = vld [vmem:[%s1 + $0x260] sm:$0xff]
  %v109 = vld [vmem:[%s1 + $0x268] sm:$0xff]
  %v110 = vld [vmem:[%s1 + $0x270] sm:$0xff]
  %v111 = vld [vmem:[%s1 + $0x278] sm:$0xff]
  %v112 = vld [vmem:[%s1 + $0x280] sm:$0xff]
  %v113 = vld [vmem:[%s1 + $0x288] sm:$0xff]
  %v114 = vld [vmem:[%s1 + $0x290] sm:$0xff]
  %v115 = vld [vmem:[%s1 + $0x298] sm:$0xff]
  %v116 = vld [vmem:[%s1 + $0x2a0] sm:$0xff]
  %v117 = vld [vmem:[%s1 + $0x2a8] sm:$0xff]
  %v118 = vld [vmem:[%s1 + $0x2b0] sm:$0xff]
  %v119 = vld [vmem:[%s1 + $0x2b8] sm:$0xff]
  %v120 = vld [vmem:[%s1 + $0x2c0] sm:$0xff]
  %v121 = vld [vmem:[%s1 + $0x2c8] sm:$0xff]
  %v122 = vld [vmem:[%s1 + $0x2d0] sm:$0xff]
  %v123 = vld [vmem:[%s1 + $0x2d8] sm:$0xff]
  %v124 = vld [vmem:[%s1 + $0x2e0] sm:$0xff]
  %v125 = vld [vmem:[%s1 + $0x2e8] sm:$0xff]
  %v126 = vld [vmem:[%s1 + $0x2f0] sm:$0xff]
  %v127 = vld [vmem:[%s1 + $0x2f8] sm:$0xff]
  %v128 = vld [vmem:[%s1 + $0x300] sm:$0xff]
  %v129 = vld [vmem:[%s1 + $0x308] sm:$0xff]
  %v130 = vld [vmem:[%s1 + $0x310] sm:$0xff]
  %v131 = vld [vmem:[%s1 + $0x318] sm:$0xff]
  %v132 = vld [vmem:[%s2] sm:$0x3]
  %v134 = vlaneseq
  %v135 = vshrl.u32 %v134, 7
  %v136 = vsub.s32 0, %v135
  %v137 = vrot.slane %v132, %v136
  %v138 = vlaneseq
  %v139 = vshrl.u32 %v138, 7
  %v140 = vsub.s32 1, %v139
  %v141 = vrot.slane %v132, %v140
  %vm144 = vcmask 130048
  %v146 = vsel %vm144, %v31, 0
  %148 = vmatprep.subr.mxu0 %v63
  %149 = vmatpush1.msra.mxu0 %v62
  %150 = vmatprep.subr.mxu0 %v61
  %151 = vmatpush1.msra.mxu0 %v60
  %152 = vmatprep.subr.mxu0 %v59
  %153 = vmatpush1.msra.mxu0 %v58
  %154 = vmatprep.subr.mxu0 %v57
  %155 = vmatpush1.msra.mxu0 %v56
  %156 = vmatprep.subr.mxu0 %v55
  %157 = vmatpush1.msra.mxu0 %v54
  %158 = vmatprep.subr.mxu0 %v53
  %159 = vmatpush1.msra.mxu0 %v52
  %160 = vmatprep.subr.mxu0 %v51
  %161 = vmatpush1.msra.mxu0 %v50
  %162 = vmatprep.subr.mxu0 %v49
  %163 = vmatpush1.msra.mxu0 %v48
  %164 = vmatprep.subr.mxu0 %v47
  %165 = vmatpush1.msra.mxu0 %v46
  %166 = vmatprep.subr.mxu0 %v45
  %167 = vmatpush1.msra.mxu0 %v44
  %168 = vmatprep.subr.mxu0 %v43
  %169 = vmatpush1.msra.mxu0 %v42
  %170 = vmatprep.subr.mxu0 %v41
  %171 = vmatpush1.msra.mxu0 %v40
  %172 = vmatprep.subr.mxu0 %v39
  %173 = vmatpush1.msra.mxu0 %v38
  %174 = vmatprep.subr.mxu0 %v37
  %175 = vmatpush1.msra.mxu0 %v36
  %176 = vmatprep.subr.mxu0 %v35
  %177 = vmatpush1.msra.mxu0 %v34
  %178 = vmatprep.subr.mxu0 %v33
  %179 = vmatpush1.msra.mxu0 %v32
  %180 = vmatprep.subr.mxu0 %v95
  %181 = vmatpush2.msra.mxu0 %v94
  %182 = vmatprep.subr.mxu0 %v93
  %183 = vmatpush2.msra.mxu0 %v92
  %184 = vmatprep.subr.mxu0 %v91
  %185 = vmatpush2.msra.mxu0 %v90
  %186 = vmatprep.subr.mxu0 %v89
  %187 = vmatpush2.msra.mxu0 %v88
  %188 = vmatprep.subr.mxu0 %v87
  %189 = vmatpush2.msra.mxu0 %v86
  %190 = vmatprep.subr.mxu0 %v85
  %191 = vmatpush2.msra.mxu0 %v84
  %192 = vmatprep.subr.mxu0 %v83
  %193 = vmatpush2.msra.mxu0 %v82
  %194 = vmatprep.subr.mxu0 %v81
  %195 = vmatpush2.msra.mxu0 %v80
  %196 = vmatprep.subr.mxu0 %v79
  %197 = vmatpush2.msra.mxu0 %v78
  %198 = vmatprep.subr.mxu0 %v77
  %199 = vmatpush2.msra.mxu0 %v76
  %200 = vmatprep.subr.mxu0 %v75
  %201 = vmatpush2.msra.mxu0 %v74
  %202 = vmatprep.subr.mxu0 %v73
  %203 = vmatpush2.msra.mxu0 %v72
  %204 = vmatprep.subr.mxu0 %v71
  %205 = vmatpush2.msra.mxu0 %v70
  %206 = vmatprep.subr.mxu0 %v69
  %207 = vmatpush2.msra.mxu0 %v68
  %208 = vmatprep.subr.mxu0 %v67
  %209 = vmatpush2.msra.mxu0 %v66
  %210 = vmatprep.subr.mxu0 %v65
  %211 = vmatpush2.msra.mxu0 %v64
  %212 = vmatprep.mubr.f32.mxu0 %v29
  %213 = vmatmul.mubr.f32.gmra.mxu0 %v28
  %v214 = vpop.f32.mrf.mxu0
  %v215 = vadd.f32 %v137, %v214
  %v216 = vpop.f32.mrf.mxu0
  %v217 = vadd.f32 %v141, %v216
  %218 = vdwg.mxu0
  %219 = vmatprep.subr.mxu0 %v127
  %220 = vmatpush1.msra.mxu0 %v126
  %221 = vmatprep.subr.mxu0 %v125
  %222 = vmatpush1.msra.mxu0 %v124
  %223 = vmatprep.subr.mxu0 %v123
  %224 = vmatpush1.msra.mxu0 %v122
  %225 = vmatprep.subr.mxu0 %v121
  %226 = vmatpush1.msra.mxu0 %v120
  %227 = vmatprep.subr.mxu0 %v119
  %228 = vmatpush1.msra.mxu0 %v118
  %229 = vmatprep.subr.mxu0 %v117
  %230 = vmatpush1.msra.mxu0 %v116
  %231 = vmatprep.subr.mxu0 %v115
  %232 = vmatpush1.msra.mxu0 %v114
  %233 = vmatprep.subr.mxu0 %v113
  %234 = vmatpush1.msra.mxu0 %v112
  %235 = vmatprep.subr.mxu0 %v111
  %236 = vmatpush1.msra.mxu0 %v110
  %237 = vmatprep.subr.mxu0 %v109
  %238 = vmatpush1.msra.mxu0 %v108
  %239 = vmatprep.subr.mxu0 %v107
  %240 = vmatpush1.msra.mxu0 %v106
  %241 = vmatprep.subr.mxu0 %v105
  %242 = vmatpush1.msra.mxu0 %v104
  %243 = vmatprep.subr.mxu0 %v103
  %244 = vmatpush1.msra.mxu0 %v102
  %245 = vmatprep.subr.mxu0 %v101
  %246 = vmatpush1.msra.mxu0 %v100
  %247 = vmatprep.subr.mxu0 %v99
  %248 = vmatpush1.msra.mxu0 %v98
  %249 = vmatprep.subr.mxu0 %v97
  %250 = vmatpush1.msra.mxu0 %v96
  %251 = vmatprep.subr.mxu0 0.0
  %252 = vmatpush2.msra.mxu0 0.0
  %253 = vmatprep.subr.mxu0 0.0
  %254 = vmatpush2.msra.mxu0 0.0
  %255 = vmatprep.subr.mxu0 0.0
  %256 = vmatpush2.msra.mxu0 0.0
  %257 = vmatprep.subr.mxu0 0.0
  %258 = vmatpush2.msra.mxu0 0.0
  %259 = vmatprep.subr.mxu0 0.0
  %260 = vmatpush2.msra.mxu0 0.0
  %261 = vmatprep.subr.mxu0 0.0
  %262 = vmatpush2.msra.mxu0 0.0
  %263 = vmatprep.subr.mxu0 0.0
  %264 = vmatpush2.msra.mxu0 0.0
  %265 = vmatprep.subr.mxu0 0.0
  %266 = vmatpush2.msra.mxu0 0.0
  %267 = vmatprep.subr.mxu0 0.0
  %268 = vmatpush2.msra.mxu0 0.0
  %269 = vmatprep.subr.mxu0 0.0
  %270 = vmatpush2.msra.mxu0 0.0
  %271 = vmatprep.subr.mxu0 0.0
  %272 = vmatpush2.msra.mxu0 0.0
  %273 = vmatprep.subr.mxu0 0.0
  %274 = vmatpush2.msra.mxu0 0.0
  %275 = vmatprep.subr.mxu0 0.0
  %276 = vmatpush2.msra.mxu0 0.0
  %277 = vmatprep.subr.mxu0 0.0
  %278 = vmatpush2.msra.mxu0 0.0
  %279 = vmatprep.subr.mxu0 %v131
  %280 = vmatpush2.msra.mxu0 %v130
  %281 = vmatprep.subr.mxu0 %v129
  %282 = vmatpush2.msra.mxu0 %v128
  %283 = vmatprep.mubr.f32.mxu0 %v146
  %284 = vmatmul.mubr.f32.gmra.mxu0 %v30
  %v285 = vpop.f32.mrf.mxu0
  %v286 = vadd.f32 %v215, %v285
  %v287 = vpop.f32.mrf.mxu0
  %v288 = vadd.f32 %v217, %v287
  %289 = vdwg.mxu0
  %v290 = vmax.f32 %v286, 0.0
  %v291 = vmax.f32 %v288, 0.0
  %v292 = vld [vmem:[%s3] sm:$0xff]
  %v293 = vld [vmem:[%s3 + $0x8] sm:$0xff]
  %v294 = vld [vmem:[%s3 + $0x10] sm:$0xff]
  %v295 = vld [vmem:[%s3 + $0x18] sm:$0xff]
  %v296 = vld [vmem:[%s3 + $0x20] sm:$0xff]
  %v297 = vld [vmem:[%s3 + $0x28] sm:$0xff]
  %v298 = vld [vmem:[%s3 + $0x30] sm:$0xff]
  %v299 = vld [vmem:[%s3 + $0x38] sm:$0xff]
  %v300 = vld [vmem:[%s3 + $0x40] sm:$0xff]
  %v301 = vld [vmem:[%s3 + $0x48] sm:$0xff]
  %v302 = vld [vmem:[%s3 + $0x50] sm:$0xff]
  %v303 = vld [vmem:[%s3 + $0x58] sm:$0xff]
  %v304 = vld [vmem:[%s3 + $0x60] sm:$0xff]
  %v305 = vld [vmem:[%s3 + $0x68] sm:$0xff]
  %v306 = vld [vmem:[%s3 + $0x70] sm:$0xff]
  %v307 = vld [vmem:[%s3 + $0x78] sm:$0xff]
  %v308 = vld [vmem:[%s3 + $0x80] sm:$0xff]
  %v309 = vld [vmem:[%s3 + $0x88] sm:$0xff]
  %v310 = vld [vmem:[%s3 + $0x90] sm:$0xff]
  %v311 = vld [vmem:[%s3 + $0x98] sm:$0xff]
  %v312 = vld [vmem:[%s3 + $0xa0] sm:$0xff]
  %v313 = vld [vmem:[%s3 + $0xa8] sm:$0xff]
  %v314 = vld [vmem:[%s3 + $0xb0] sm:$0xff]
  %v315 = vld [vmem:[%s3 + $0xb8] sm:$0xff]
  %v316 = vld [vmem:[%s3 + $0xc0] sm:$0xff]
  %v317 = vld [vmem:[%s3 + $0xc8] sm:$0xff]
  %v318 = vld [vmem:[%s3 + $0xd0] sm:$0xff]
  %v319 = vld [vmem:[%s3 + $0xd8] sm:$0xff]
  %v320 = vld [vmem:[%s3 + $0xe0] sm:$0xff]
  %v321 = vld [vmem:[%s3 + $0xe8] sm:$0xff]
  %v322 = vld [vmem:[%s3 + $0xf0] sm:$0xff]
  %v323 = vld [vmem:[%s3 + $0xf8] sm:$0xff]
  %v324 = vld [vmem:[%s4] sm:$0x1]
  %v326 = vlaneseq
  %v327 = vshrl.u32 %v326, 7
  %v328 = vsub.s32 0, %v327
  %v329 = vrot.slane %v324, %v328
  %331 = vmatprep.subr.mxu0 0.0
  %332 = vmatpush1.msra.mxu0 %v307
  %333 = vmatprep.subr.mxu0 0.0
  %334 = vmatpush1.msra.mxu0 %v306
  %335 = vmatprep.subr.mxu0 0.0
  %336 = vmatpush1.msra.mxu0 %v305
  %337 = vmatprep.subr.mxu0 0.0
  %338 = vmatpush1.msra.mxu0 %v304
  %339 = vmatprep.subr.mxu0 0.0
  %340 = vmatpush1.msra.mxu0 %v303
  %341 = vmatprep.subr.mxu0 0.0
  %342 = vmatpush1.msra.mxu0 %v302
  %343 = vmatprep.subr.mxu0 0.0
  %344 = vmatpush1.msra.mxu0 %v301
  %345 = vmatprep.subr.mxu0 0.0
  %346 = vmatpush1.msra.mxu0 %v300
  %347 = vmatprep.subr.mxu0 0.0
  %348 = vmatpush1.msra.mxu0 %v299
  %349 = vmatprep.subr.mxu0 0.0
  %350 = vmatpush1.msra.mxu0 %v298
  %351 = vmatprep.subr.mxu0 0.0
  %352 = vmatpush1.msra.mxu0 %v297
  %353 = vmatprep.subr.mxu0 0.0
  %354 = vmatpush1.msra.mxu0 %v296
  %355 = vmatprep.subr.mxu0 0.0
  %356 = vmatpush1.msra.mxu0 %v295
  %357 = vmatprep.subr.mxu0 0.0
  %358 = vmatpush1.msra.mxu0 %v294
  %359 = vmatprep.subr.mxu0 0.0
  %360 = vmatpush1.msra.mxu0 %v293
  %361 = vmatprep.subr.mxu0 0.0
  %362 = vmatpush1.msra.mxu0 %v292
  %363 = vmatprep.subr.mxu0 0.0
  %364 = vmatpush2.msra.mxu0 %v323
  %365 = vmatprep.subr.mxu0 0.0
  %366 = vmatpush2.msra.mxu0 %v322
  %367 = vmatprep.subr.mxu0 0.0
  %368 = vmatpush2.msra.mxu0 %v321
  %369 = vmatprep.subr.mxu0 0.0
  %370 = vmatpush2.msra.mxu0 %v320
  %371 = vmatprep.subr.mxu0 0.0
  %372 = vmatpush2.msra.mxu0 %v319
  %373 = vmatprep.subr.mxu0 0.0
  %374 = vmatpush2.msra.mxu0 %v318
  %375 = vmatprep.subr.mxu0 0.0
  %376 = vmatpush2.msra.mxu0 %v317
  %377 = vmatprep.subr.mxu0 0.0
  %378 = vmatpush2.msra.mxu0 %v316
  %379 = vmatprep.subr.mxu0 0.0
  %380 = vmatpush2.msra.mxu0 %v315
  %381 = vmatprep.subr.mxu0 0.0
  %382 = vmatpush2.msra.mxu0 %v314
  %383 = vmatprep.subr.mxu0 0.0
  %384 = vmatpush2.msra.mxu0 %v313
  %385 = vmatprep.subr.mxu0 0.0
  %386 = vmatpush2.msra.mxu0 %v312
  %387 = vmatprep.subr.mxu0 0.0
  %388 = vmatpush2.msra.mxu0 %v311
  %389 = vmatprep.subr.mxu0 0.0
  %390 = vmatpush2.msra.mxu0 %v310
  %391 = vmatprep.subr.mxu0 0.0
  %392 = vmatpush2.msra.mxu0 %v309
  %393 = vmatprep.subr.mxu0 0.0
  %394 = vmatpush2.msra.mxu0 %v308
  %395 = vmatprep.mubr.f32.mxu0 %v291
  %396 = vmatmul.mubr.f32.gmra.mxu0 %v290
  %v397 = vpop.f32.mrf.mxu0
  %v398 = vadd.f32 %v329, %v397
  %v399 = vpop.f32.mrf.mxu0
  %400 = vdwg.mxu0
  %401 = vst [vmem:[%s7] sm:$0xff] %v398
  %v402 = vld [vmem:[%s5] sm:$0xff]
  %v403 = vld [vmem:[%s5 + $0x8] sm:$0xff]
  %v404 = vld [vmem:[%s5 + $0x10] sm:$0xff]
  %v405 = vld [vmem:[%s5 + $0x18] sm:$0xff]
  %v406 = vld [vmem:[%s5 + $0x20] sm:$0xff]
  %v407 = vld [vmem:[%s5 + $0x28] sm:$0xff]
  %v408 = vld [vmem:[%s5 + $0x30] sm:$0xff]
  %v409 = vld [vmem:[%s5 + $0x38] sm:$0xff]
  %v410 = vld [vmem:[%s5 + $0x40] sm:$0xff]
  %v411 = vld [vmem:[%s5 + $0x48] sm:$0xff]
  %v412 = vld [vmem:[%s5 + $0x50] sm:$0xff]
  %v413 = vld [vmem:[%s5 + $0x58] sm:$0xff]
  %v414 = vld [vmem:[%s5 + $0x60] sm:$0xff]
  %v415 = vld [vmem:[%s5 + $0x68] sm:$0xff]
  %v416 = vld [vmem:[%s5 + $0x70] sm:$0xff]
  %v417 = vld [vmem:[%s5 + $0x78] sm:$0xff]
  %v418 = vld [vmem:[%s6] sm:$0x1]
  %v420 = vlaneseq
  %v421 = vshrl.u32 %v420, 7
  %v422 = vsub.s32 0, %v421
  %v423 = vrot.slane %v418, %v422
  %425 = vmatprep.subr.mxu0 0.0
  %426 = vmatpush1.msra.mxu0 %v417
  %427 = vmatprep.subr.mxu0 0.0
  %428 = vmatpush1.msra.mxu0 %v416
  %429 = vmatprep.subr.mxu0 0.0
  %430 = vmatpush1.msra.mxu0 %v415
  %431 = vmatprep.subr.mxu0 0.0
  %432 = vmatpush1.msra.mxu0 %v414
  %433 = vmatprep.subr.mxu0 0.0
  %434 = vmatpush1.msra.mxu0 %v413
  %435 = vmatprep.subr.mxu0 0.0
  %436 = vmatpush1.msra.mxu0 %v412
  %437 = vmatprep.subr.mxu0 0.0
  %438 = vmatpush1.msra.mxu0 %v411
  %439 = vmatprep.subr.mxu0 0.0
  %440 = vmatpush1.msra.mxu0 %v410
  %441 = vmatprep.subr.mxu0 0.0
  %442 = vmatpush1.msra.mxu0 %v409
  %443 = vmatprep.subr.mxu0 0.0
  %444 = vmatpush1.msra.mxu0 %v408
  %445 = vmatprep.subr.mxu0 0.0
  %446 = vmatpush1.msra.mxu0 %v407
  %447 = vmatprep.subr.mxu0 0.0
  %448 = vmatpush1.msra.mxu0 %v406
  %449 = vmatprep.subr.mxu0 0.0
  %450 = vmatpush1.msra.mxu0 %v405
  %451 = vmatprep.subr.mxu0 0.0
  %452 = vmatpush1.msra.mxu0 %v404
  %453 = vmatprep.subr.mxu0 0.0
  %454 = vmatpush1.msra.mxu0 %v403
  %455 = vmatprep.subr.mxu0 0.0
  %456 = vmatpush1.msra.mxu0 %v402
  %457 = vmatprep.subr.mxu0 0.0
  %458 = vmatpush2.msra.mxu0 0.0
  %459 = vmatprep.subr.mxu0 0.0
  %460 = vmatpush2.msra.mxu0 0.0
  %461 = vmatprep.subr.mxu0 0.0
  %462 = vmatpush2.msra.mxu0 0.0
  %463 = vmatprep.subr.mxu0 0.0
  %464 = vmatpush2.msra.mxu0 0.0
  %465 = vmatprep.subr.mxu0 0.0
  %466 = vmatpush2.msra.mxu0 0.0
  %467 = vmatprep.subr.mxu0 0.0
  %468 = vmatpush2.msra.mxu0 0.0
  %469 = vmatprep.subr.mxu0 0.0
  %470 = vmatpush2.msra.mxu0 0.0
  %471 = vmatprep.subr.mxu0 0.0
  %472 = vmatpush2.msra.mxu0 0.0
  %473 = vmatprep.subr.mxu0 0.0
  %474 = vmatpush2.msra.mxu0 0.0
  %475 = vmatprep.subr.mxu0 0.0
  %476 = vmatpush2.msra.mxu0 0.0
  %477 = vmatprep.subr.mxu0 0.0
  %478 = vmatpush2.msra.mxu0 0.0
  %479 = vmatprep.subr.mxu0 0.0
  %480 = vmatpush2.msra.mxu0 0.0
  %481 = vmatprep.subr.mxu0 0.0
  %482 = vmatpush2.msra.mxu0 0.0
  %483 = vmatprep.subr.mxu0 0.0
  %484 = vmatpush2.msra.mxu0 0.0
  %485 = vmatprep.subr.mxu0 0.0
  %486 = vmatpush2.msra.mxu0 0.0
  %487 = vmatprep.subr.mxu0 0.0
  %488 = vmatpush2.msra.mxu0 0.0
  %489 = vmatprep.mubr.f32.mxu0 0.0
  %490 = vmatmul.mubr.f32.gmra.mxu0 %v398
  %v491 = vpop.f32.mrf.mxu0
  %v492 = vadd.f32 %v423, %v491
  %v493 = vpop.f32.mrf.mxu0
  %494 = vdwg.mxu0
  %495 = vst [vmem:[%s8] sm:$0xff] %v492
  // Predicated region
  $region30: #{cnn_cifar10_forward.5} parent=0 // pred_check
    _
  $region31: #{cnn_cifar10_forward.5} parent=0 // pred_check_branch
    %497 = sbr.rel (0) target = $region33
  $region32: #{cnn_cifar10_forward.5} parent=0 // pred_region
    _
  $region33: #{cnn_cifar10_forward.5} parent=0 // pred_fallthru
    _
  // Predicated region
  $region34: #{cnn_cifar10_forward.5} parent=0 // pred_check
    _
  $region35: #{cnn_cifar10_forward.5} parent=0 // pred_check_branch
    %499 = sbr.rel (0) target = $region37
  $region36: #{cnn_cifar10_forward.5} parent=0 // pred_region
    _
  $region37: #{cnn_cifar10_forward.5} parent=0 // pred_fallthru
    _
  // Predicated region
  $region38: #{cnn_cifar10_forward.5} parent=0 // pred_check
    _
  $region39: #{cnn_cifar10_forward.5} parent=0 // pred_check_branch
    %501 = sbr.rel (0) target = $region41
  $region40: #{cnn_cifar10_forward.5} parent=0 // pred_region
    _
  $region41: #{cnn_cifar10_forward.5} parent=0 // pred_fallthru
    _
  // Predicated region
  $region42: #{cnn_cifar10_forward.5} parent=0 // pred_check
    _
  $region43: #{cnn_cifar10_forward.5} parent=0 // pred_check_branch
    %503 = sbr.rel (0) target = $region45
  $region44: #{cnn_cifar10_forward.5} parent=0 // pred_region
    _
  $region45: #{cnn_cifar10_forward.5} parent=0 // pred_fallthru
    _

</llo_original>
